<compile_context>
chip_gen: v7x
topology: tpu7x:2x2x1
jax: 0.10.0
libtpu: 0.0.40
codegen_flags: <defaults>
</compile_context>

<pallas_src>
import functools

import numpy as np

import jax
import jax.numpy as jnp
from jax import lax
from jax.experimental import pallas as pl
from jax.experimental.pallas import tpu as pltpu


# ----------------------------------------------------------------------------
# Kernel
# ----------------------------------------------------------------------------
def resblock_kernel(x_ref,
                    w1_t_ref, w1_c_ref, w1_b_ref,
                    w2_t_ref, w2_c_ref, w2_b_ref,
                    b1_ref, b2_ref, bsc_ref,
                    out_ref, *, img_rows):
    """One TILE_M-row block (a whole number of images) per grid step.

      x_ref    : (TILE_M, W*Cin)       bf16 activations (rows of several images)
      w1_t/_b  : (W*Cin,   W*Cout)     banded conv1 weights for ky=0 / ky=2
      w1_c     : (W*Cin, 2*W*Cout)     ky=1 band with the 1x1-shortcut columns fused
      w2_*     : (W*Cout,  W*Cout)     banded conv2 weights (ky=0/1/2)
      b*       : (1, W*Cout)           folded BN biases (scales folded into weights)
      out_ref  : (TILE_M, W*Cout)      f32
    """
    TILE_M, WCo = out_ref.shape
    f32 = jnp.float32
    xs = x_ref[...]                                        # (TILE_M, W*Cin) bf16

    # Row-within-image index -> masks zeroing the ky=0 / ky=2 taps at the top /
    # bottom row of every image packed into this tile (SAME padding along H).
    # TILE_M is a whole number of images, so pltpu.roll's wrapped rows are
    # exactly the rows the mask zeroes.
    rin = lax.broadcasted_iota(jnp.int32, (TILE_M, WCo), 0) % img_rows
    not_top = rin != 0
    not_bot = rin != img_rows - 1

    def shift_dn(p):        # out[i] = p[i-1], zero at image-top rows
        return jnp.where(not_top, pltpu.roll(p, 1, axis=0), 0.0)

    def shift_up(p):        # out[i] = p[i+1], zero at image-bottom rows
        return jnp.where(not_bot, pltpu.roll(p, TILE_M - 1, axis=0), 0.0)

    # conv1 (+ fused 1x1 shortcut columns).  All kx taps, the SAME W padding
    # and the BN1/BN_sc scales are folded into the banded bf16 weights, so each
    # ky tap is one wide MXU matmul on the *unshifted* activations; the ky row
    # shift commutes with the matmul and is applied to the f32 partial products
    # with an XLU roll + VPU mask (no MXU shift-matmuls, no bf16 casts of
    # shifted operands).
    p_c = jnp.dot(xs, w1_c_ref[...], preferred_element_type=f32)   # (TILE_M, 2*WCo)
    p_t = jnp.dot(xs, w1_t_ref[...], preferred_element_type=f32)
    p_b = jnp.dot(xs, w1_b_ref[...], preferred_element_type=f32)
    acc1 = shift_dn(p_t) + p_c[:, :WCo] + shift_up(p_b)
    shortcut = p_c[:, WCo:]                         # BN_sc scale already folded

    # BN1 bias + ReLU in f32, bf16 for conv2's MXU operands.
    y1 = jnp.maximum(acc1 + b1_ref[...], 0.0)
    y1b = y1.astype(xs.dtype)

    q_c = jnp.dot(y1b, w2_c_ref[...], preferred_element_type=f32)
    q_t = jnp.dot(y1b, w2_t_ref[...], preferred_element_type=f32)
    q_b = jnp.dot(y1b, w2_b_ref[...], preferred_element_type=f32)
    acc2 = shift_dn(q_t) + q_c + shift_up(q_b)

    # BN2 bias + residual (shortcut + its BN bias) + final ReLU; lane-dense store.
    out = jnp.maximum(acc2 + b2_ref[...] + shortcut + bsc_ref[...], 0.0)
    out_ref[...] = out.astype(out_ref.dtype)


# ----------------------------------------------------------------------------
# Host-side, one-time parameter repacking (inference-time weight folding)
# ----------------------------------------------------------------------------
def _banded_3x3(w_hwio, W):
    """w: (3,3,Cin,Cout) HWIO -> 3 matrices (W*Cin, W*Cout), one per ky row,
    with the kx taps and SAME zero padding along W folded into the band."""
    w = np.asarray(w_hwio, np.float32)
    _, _, cin, cout = w.shape
    mats = []
    for dy in range(3):
        m = np.zeros((W, cin, W, cout), np.float32)
        for dx in range(3):
            for j in range(W):
                jp = j + dx - 1
                if 0 <= jp < W:
                    m[jp, :, j, :] = w[dy, dx]
        mats.append(m.reshape(W * cin, W * cout))
    return mats


def _banded_1x1(w_hwio, W):
    """1x1 conv -> block-diagonal (W*Cin, W*Cout) matrix."""
    w = np.asarray(w_hwio, np.float32)[0, 0]
    cin, cout = w.shape
    m = np.zeros((W, cin, W, cout), np.float32)
    for j in range(W):
        m[j, :, j, :] = w
    return m.reshape(W * cin, W * cout)


def _fold_bn(bn, eps):
    scale = np.asarray(bn["gamma"], np.float32) / np.sqrt(
        np.asarray(bn["var"], np.float32) + eps)
    bias = np.asarray(bn["beta"], np.float32) - np.asarray(bn["mean"], np.float32) * scale
    return scale, bias


def prepare_params(raw, W, eps=1e-5):
    """Fold BN scales into the conv weights (per-output-channel, before the
    bf16 cast), build banded bf16 conv weights, fuse the 1x1 shortcut into the
    conv1 centre-row matrix, and tile the BN biases to the slab layout."""
    s1, bias1 = _fold_bn(raw["bn1"], eps)
    s2, bias2 = _fold_bn(raw["bn2"], eps)
    ssc, biassc = _fold_bn(raw["bnsc"], eps)

    w1 = np.asarray(raw["w1"], np.float32) * s1
    w2 = np.asarray(raw["w2"], np.float32) * s2
    wsc = np.asarray(raw["wsc"], np.float32) * ssc

    b1_bands = _banded_3x3(w1, W)
    b2_bands = _banded_3x3(w2, W)
    sc_band = _banded_1x1(wsc, W)
    w1_c = np.concatenate([b1_bands[1], sc_band], axis=1)   # (W*Cin, 2*W*Cout)

    bf = lambda a: jnp.asarray(a, jnp.bfloat16)
    tile = lambda v: jnp.asarray(np.tile(v, W)[None, :], jnp.float32)
    return dict(w1_t=bf(b1_bands[0]), w1_c=bf(w1_c), w1_b=bf(b1_bands[2]),
                w2_t=bf(b2_bands[0]), w2_c=bf(b2_bands[1]), w2_b=bf(b2_bands[2]),
                b1=tile(bias1), b2=tile(bias2), bsc=tile(biassc))


# ----------------------------------------------------------------------------
# Wrapper
# ----------------------------------------------------------------------------
def _pick_tile_rows(n_imgs, img_rows, target_rows=256):
    """Whole images per tile, TILE_M <= ~target, tiles evenly divide N."""
    per = max(1, min(n_imgs, max(1, target_rows // img_rows)))
    while n_imgs % per:
        per -= 1
    return per * img_rows


def resblock_forward(x_nchw, kp, tile_rows_target=256):
    """x_nchw: (N, Cin, H, W) f32 -> (N, Cout, H, W) f32."""
    N, Cin, H, W = x_nchw.shape
    WCo = kp["b1"].shape[-1]
    Cout = WCo // W
    WCi = W * Cin

    # NCHW -> NHWC -> one lane-dense (N*H, W*Cin) slab, bf16 for the MXU.
    x_slab = jnp.transpose(x_nchw, (0, 2, 3, 1)).reshape(N * H, WCi)
    x_slab = x_slab.astype(jnp.bfloat16)

    TILE_M = _pick_tile_rows(N, H, tile_rows_target)
    grid = (N * H // TILE_M,)

    const = lambda shape: pl.BlockSpec(shape, lambda i, _s=shape: (0,) * len(_s))
    kernel = functools.partial(resblock_kernel, img_rows=H)

    out_slab = pl.pallas_call(
        kernel,
        out_shape=jax.ShapeDtypeStruct((N * H, WCo), jnp.float32),
        grid_spec=pltpu.PrefetchScalarGridSpec(
            num_scalar_prefetch=0,
            grid=grid,
            in_specs=[
                pl.BlockSpec((TILE_M, WCi), lambda i: (i, 0)),
                const(kp["w1_t"].shape),
                const(kp["w1_c"].shape),
                const(kp["w1_b"].shape),
                const(kp["w2_t"].shape),
                const(kp["w2_c"].shape),
                const(kp["w2_b"].shape),
                const(kp["b1"].shape),
                const(kp["b2"].shape),
                const(kp["bsc"].shape),
            ],
            out_specs=pl.BlockSpec((TILE_M, WCo), lambda i: (i, 0)),
        ),
        compiler_params=pltpu.CompilerParams(
            dimension_semantics=("parallel",),
            vmem_limit_bytes=32 * 1024 * 1024),
    )(x_slab, kp["w1_t"], kp["w1_c"], kp["w1_b"],
      kp["w2_t"], kp["w2_c"], kp["w2_b"],
      kp["b1"], kp["b2"], kp["bsc"])

    out = out_slab.reshape(N, H, W, Cout)
    return jnp.transpose(out, (0, 3, 1, 2))


# ----------------------------------------------------------------------------
# Raw parameters + references
# ----------------------------------------------------------------------------
def make_raw_params(key, cin, cout):
    k1, k2, k3 = jax.random.split(key, 3)
    w1 = 0.1 * jax.random.normal(k1, (3, 3, cin, cout), jnp.float32)
    w2 = 0.1 * jax.random.normal(k2, (3, 3, cout, cout), jnp.float32)
    wsc = 0.1 * jax.random.normal(k3, (1, 1, cin, cout), jnp.float32)
    idx = jnp.arange(cout, dtype=jnp.float32)
    bn = lambda a, b, c, d: dict(gamma=1.0 + a * idx, beta=b * idx,
                                 mean=c * idx, var=1.0 + d * idx)
    return dict(w1=w1, w2=w2, wsc=wsc,
                bn1=bn(0.10, 0.05, 0.02, 0.03),
                bn2=bn(0.07, -0.04, 0.01, 0.02),
                bnsc=bn(0.05, 0.03, -0.01, 0.04))


def resblock_reference_f32(x_nchw, raw, eps=1e-5):
    """Exact eval-mode PyTorch module semantics, full f32."""
    x = jnp.transpose(x_nchw, (0, 2, 3, 1))
    conv = functools.partial(lax.conv_general_dilated,
                             window_strides=(1, 1), padding="SAME",
                             dimension_numbers=("NHWC", "HWIO", "NHWC"))

    def bn(t, p):
        scale = p["gamma"] / jnp.sqrt(p["var"] + eps)
        return t * scale + (p["beta"] - p["mean"] * scale)

    y = jnp.maximum(bn(conv(x, raw["w1"]), raw["bn1"]), 0.0)
    y = bn(conv(y, raw["w2"]), raw["bn2"])
    sc = bn(conv(x, raw["wsc"]), raw["bnsc"])
    return jnp.transpose(jnp.maximum(y + sc, 0.0), (0, 3, 1, 2))


def resblock_reference_matched(x_nchw, raw, eps=1e-5):
    """Same BN->weight folding and bf16 operand rounding the kernel uses
    (f32 accumulation via lax.conv).  Mathematically identical to the module
    in exact arithmetic; used for a tight numerical check."""
    s1, b1 = _fold_bn(raw["bn1"], eps)
    s2, b2 = _fold_bn(raw["bn2"], eps)
    ssc, bsc = _fold_bn(raw["bnsc"], eps)
    bf = lambda a: jnp.asarray(a, jnp.bfloat16)
    w1 = bf(np.asarray(raw["w1"], np.float32) * s1)
    w2 = bf(np.asarray(raw["w2"], np.float32) * s2)
    wsc = bf(np.asarray(raw["wsc"], np.float32) * ssc)
    x = jnp.transpose(x_nchw, (0, 2, 3, 1)).astype(jnp.bfloat16)
    conv = functools.partial(lax.conv_general_dilated,
                             window_strides=(1, 1), padding="SAME",
                             dimension_numbers=("NHWC", "HWIO", "NHWC"),
                             preferred_element_type=jnp.float32)
    y1 = jnp.maximum(conv(x, w1) + jnp.asarray(b1), 0.0)
    y2 = conv(y1.astype(jnp.bfloat16), w2) + jnp.asarray(b2)
    sc = conv(x, wsc) + jnp.asarray(bsc)
    return jnp.transpose(jnp.maximum(y2 + sc, 0.0), (0, 3, 1, 2))


if __name__ == "__main__":
    key = jax.random.PRNGKey(0)
    kx, kp = jax.random.split(key)

    # in_channels=4, out_channels=8, stride=1; H=W=16 so W*Cout = 128
    # (lane-dense output).  Batch 32 -> 512 packed rows -> two 256-row grid
    # steps (large matmul M, even 2-step parallel grid).
    N, Cin, Cout, H, W = 32, 4, 8, 16, 16
    x = jax.random.normal(kx, (N, Cin, H, W), jnp.float32)

    raw = make_raw_params(kp, Cin, Cout)
    kparams = prepare_params(raw, W)

    out = jax.block_until_ready(resblock_forward(x, kparams))
    assert out.shape == (N, Cout, H, W)
    assert out.dtype == jnp.float32

    # Tight check: same bf16 rounding / BN folding as the kernel (verifies the
    # band construction, roll+mask boundary handling, residual and ReLUs).
    ref_m = jax.block_until_ready(resblock_reference_matched(x, raw))
    err_m = float(jnp.max(jnp.abs(out - ref_m)))
    assert jnp.allclose(out, ref_m, atol=7e-3, rtol=7e-3), err_m

    # Loose sanity check vs the exact f32 module (bf16 MXU operands only).
    ref_e = jax.block_until_ready(resblock_reference_f32(x, raw))
    err_e = float(jnp.max(jnp.abs(out - ref_e)))
    assert jnp.allclose(out, ref_e, atol=6e-2, rtol=5e-2), err_e

    print("KERNEL_OK")
</pallas_src>

<mosaic_0001>
module attributes {stable_mosaic.version = 11 : i64} {
  func.func @resblock_kernel(%arg0: i32, %arg1: memref<256x64xbf16, #tpu.memory_space<vmem>>, %arg2: memref<64x128xbf16, #tpu.memory_space<vmem>>, %arg3: memref<64x256xbf16, #tpu.memory_space<vmem>>, %arg4: memref<64x128xbf16, #tpu.memory_space<vmem>>, %arg5: memref<128x128xbf16, #tpu.memory_space<vmem>>, %arg6: memref<128x128xbf16, #tpu.memory_space<vmem>>, %arg7: memref<128x128xbf16, #tpu.memory_space<vmem>>, %arg8: memref<1x128xf32, #tpu.memory_space<vmem>>, %arg9: memref<1x128xf32, #tpu.memory_space<vmem>>, %arg10: memref<1x128xf32, #tpu.memory_space<vmem>>, %arg11: memref<256x128xf32, #tpu.memory_space<vmem>>) attributes {dimension_semantics = [#tpu.dimension_semantics<parallel>], iteration_bounds = array<i64: 2>, scalar_prefetch = 0 : i64, scratch_operands = 0 : i64, tpu.core_type = #tpu.core_type<tc>, window_params = [{transform_indices = @transform_0, window_bounds = array<i64: 256, 64>}, {pipeline_mode = #tpu.pipeline_mode<synchronous>, transform_indices = @transform_1, window_bounds = array<i64: 64, 128>}, {pipeline_mode = #tpu.pipeline_mode<synchronous>, transform_indices = @transform_2, window_bounds = array<i64: 64, 256>}, {pipeline_mode = #tpu.pipeline_mode<synchronous>, transform_indices = @transform_3, window_bounds = array<i64: 64, 128>}, {pipeline_mode = #tpu.pipeline_mode<synchronous>, transform_indices = @transform_4, window_bounds = array<i64: 128, 128>}, {pipeline_mode = #tpu.pipeline_mode<synchronous>, transform_indices = @transform_5, window_bounds = array<i64: 128, 128>}, {pipeline_mode = #tpu.pipeline_mode<synchronous>, transform_indices = @transform_6, window_bounds = array<i64: 128, 128>}, {pipeline_mode = #tpu.pipeline_mode<synchronous>, transform_indices = @transform_7, window_bounds = array<i64: 1, 128>}, {pipeline_mode = #tpu.pipeline_mode<synchronous>, transform_indices = @transform_8, window_bounds = array<i64: 1, 128>}, {pipeline_mode = #tpu.pipeline_mode<synchronous>, transform_indices = @transform_9, window_bounds = array<i64: 1, 128>}, {transform_indices = @transform_10, window_bounds = array<i64: 256, 128>}]} {
    %c0 = arith.constant 0 : index
    %c0_0 = arith.constant 0 : index
    %0 = vector.load %arg1[%c0, %c0_0] : memref<256x64xbf16, #tpu.memory_space<vmem>>, vector<256x64xbf16>
    %1 = tpu.iota {dimensions = array<i32: 0>} : vector<256x128xi32>
    %c16_i32 = arith.constant 16 : i32
    %c0_i32 = arith.constant 0 : i32
    %2 = arith.cmpi eq, %c16_i32, %c0_i32 : i32
    %c1_i32 = arith.constant 1 : i32
    %3 = arith.select %2, %c1_i32, %c16_i32 : i32
    %4 = vector.broadcast %3 : i32 to vector<256x128xi32>
    %5 = arith.remsi %1, %4 : vector<256x128xi32>
    %c0_i32_1 = arith.constant 0 : i32
    %6 = vector.broadcast %c0_i32_1 : i32 to vector<256x128xi32>
    %7 = arith.cmpi ne, %5, %6 : vector<256x128xi32>
    %c0_i32_2 = arith.constant 0 : i32
    %8 = vector.broadcast %c0_i32_2 : i32 to vector<256x128xi32>
    %9 = arith.cmpi slt, %5, %8 : vector<256x128xi32>
    %c0_i32_3 = arith.constant 0 : i32
    %10 = arith.cmpi slt, %3, %c0_i32_3 : i32
    %11 = vector.broadcast %10 : i1 to vector<256x128xi1>
    %12 = vector.broadcast %11 : vector<256x128xi1> to vector<256x128xi1>
    %13 = arith.xori %9, %12 : vector<256x128xi1>
    %14 = arith.andi %13, %7 : vector<256x128xi1>
    %15 = vector.broadcast %3 : i32 to vector<256x128xi32>
    %16 = arith.addi %5, %15 : vector<256x128xi32>
    %17 = arith.select %14, %16, %5 : vector<256x128xi1>, vector<256x128xi32>
    %c0_i32_4 = arith.constant 0 : i32
    %18 = vector.broadcast %c0_i32_4 : i32 to vector<256x128xi32>
    %19 = arith.cmpi ne, %17, %18 : vector<256x128xi32>
    %c15_i32 = arith.constant 15 : i32
    %20 = vector.broadcast %c15_i32 : i32 to vector<256x128xi32>
    %21 = arith.cmpi ne, %17, %20 : vector<256x128xi32>
    %c0_5 = arith.constant 0 : index
    %c0_6 = arith.constant 0 : index
    %22 = vector.load %arg3[%c0_5, %c0_6] : memref<64x256xbf16, #tpu.memory_space<vmem>>, vector<64x256xbf16>
    %cst = arith.constant dense<0.000000e+00> : vector<256x256xf32>
    %23 = tpu.matmul %0, %22, %cst {dimension_numbers = #tpu.dot_dimension_numbers<[1], [0], [0], [1], [0, 0, 1, 1], [], []>} : vector<256x64xbf16>, vector<64x256xbf16>, vector<256x256xf32> -> vector<256x256xf32>
    %c0_7 = arith.constant 0 : index
    %c0_8 = arith.constant 0 : index
    %24 = vector.load %arg2[%c0_7, %c0_8] : memref<64x128xbf16, #tpu.memory_space<vmem>>, vector<64x128xbf16>
    %cst_9 = arith.constant dense<0.000000e+00> : vector<256x128xf32>
    %25 = tpu.matmul %0, %24, %cst_9 {dimension_numbers = #tpu.dot_dimension_numbers<[1], [0], [0], [1], [0, 0, 1, 1], [], []>} : vector<256x64xbf16>, vector<64x128xbf16>, vector<256x128xf32> -> vector<256x128xf32>
    %c0_10 = arith.constant 0 : index
    %c0_11 = arith.constant 0 : index
    %26 = vector.load %arg4[%c0_10, %c0_11] : memref<64x128xbf16, #tpu.memory_space<vmem>>, vector<64x128xbf16>
    %cst_12 = arith.constant dense<0.000000e+00> : vector<256x128xf32>
    %27 = tpu.matmul %0, %26, %cst_12 {dimension_numbers = #tpu.dot_dimension_numbers<[1], [0], [0], [1], [0, 0, 1, 1], [], []>} : vector<256x64xbf16>, vector<64x128xbf16>, vector<256x128xf32> -> vector<256x128xf32>
    %c1_i32_13 = arith.constant 1 : i32
    %28 = tpu.dynamic_rotate %25 by %c1_i32_13 dim 0 : vector<256x128xf32>, i32 -> vector<256x128xf32>
    %cst_14 = arith.constant 0.000000e+00 : f32
    %29 = vector.broadcast %cst_14 : f32 to vector<256x128xf32>
    %30 = arith.select %19, %28, %29 : vector<256x128xi1>, vector<256x128xf32>
    %31 = vector.extract_strided_slice %23 {offsets = [0, 0], sizes = [256, 128], strides = [1, 1]} : vector<256x256xf32> to vector<256x128xf32>
    %32 = arith.addf %30, %31 : vector<256x128xf32>
    %c255_i32 = arith.constant 255 : i32
    %33 = tpu.dynamic_rotate %27 by %c255_i32 dim 0 : vector<256x128xf32>, i32 -> vector<256x128xf32>
    %cst_15 = arith.constant 0.000000e+00 : f32
    %34 = vector.broadcast %cst_15 : f32 to vector<256x128xf32>
    %35 = arith.select %21, %33, %34 : vector<256x128xi1>, vector<256x128xf32>
    %36 = arith.addf %32, %35 : vector<256x128xf32>
    %37 = vector.extract_strided_slice %23 {offsets = [0, 128], sizes = [256, 128], strides = [1, 1]} : vector<256x256xf32> to vector<256x128xf32>
    %c0_16 = arith.constant 0 : index
    %c0_17 = arith.constant 0 : index
    %38 = vector.load %arg8[%c0_16, %c0_17] : memref<1x128xf32, #tpu.memory_space<vmem>>, vector<1x128xf32>
    %39 = vector.broadcast %38 : vector<1x128xf32> to vector<256x128xf32>
    %40 = arith.addf %36, %39 : vector<256x128xf32>
    %cst_18 = arith.constant 0.000000e+00 : f32
    %41 = vector.broadcast %cst_18 : f32 to vector<256x128xf32>
    %42 = arith.maximumf %40, %41 : vector<256x128xf32>
    %43 = arith.truncf %42 : vector<256x128xf32> to vector<256x128xbf16>
    %c0_19 = arith.constant 0 : index
    %c0_20 = arith.constant 0 : index
    %44 = vector.load %arg6[%c0_19, %c0_20] : memref<128x128xbf16, #tpu.memory_space<vmem>>, vector<128x128xbf16>
    %cst_21 = arith.constant dense<0.000000e+00> : vector<256x128xf32>
    %45 = tpu.matmul %43, %44, %cst_21 {dimension_numbers = #tpu.dot_dimension_numbers<[1], [0], [0], [1], [0, 0, 1, 1], [], []>} : vector<256x128xbf16>, vector<128x128xbf16>, vector<256x128xf32> -> vector<256x128xf32>
    %c0_22 = arith.constant 0 : index
    %c0_23 = arith.constant 0 : index
    %46 = vector.load %arg5[%c0_22, %c0_23] : memref<128x128xbf16, #tpu.memory_space<vmem>>, vector<128x128xbf16>
    %cst_24 = arith.constant dense<0.000000e+00> : vector<256x128xf32>
    %47 = tpu.matmul %43, %46, %cst_24 {dimension_numbers = #tpu.dot_dimension_numbers<[1], [0], [0], [1], [0, 0, 1, 1], [], []>} : vector<256x128xbf16>, vector<128x128xbf16>, vector<256x128xf32> -> vector<256x128xf32>
    %c0_25 = arith.constant 0 : index
    %c0_26 = arith.constant 0 : index
    %48 = vector.load %arg7[%c0_25, %c0_26] : memref<128x128xbf16, #tpu.memory_space<vmem>>, vector<128x128xbf16>
    %cst_27 = arith.constant dense<0.000000e+00> : vector<256x128xf32>
    %49 = tpu.matmul %43, %48, %cst_27 {dimension_numbers = #tpu.dot_dimension_numbers<[1], [0], [0], [1], [0, 0, 1, 1], [], []>} : vector<256x128xbf16>, vector<128x128xbf16>, vector<256x128xf32> -> vector<256x128xf32>
    %c1_i32_28 = arith.constant 1 : i32
    %50 = tpu.dynamic_rotate %47 by %c1_i32_28 dim 0 : vector<256x128xf32>, i32 -> vector<256x128xf32>
    %cst_29 = arith.constant 0.000000e+00 : f32
    %51 = vector.broadcast %cst_29 : f32 to vector<256x128xf32>
    %52 = arith.select %19, %50, %51 : vector<256x128xi1>, vector<256x128xf32>
    %53 = arith.addf %52, %45 : vector<256x128xf32>
    %c255_i32_30 = arith.constant 255 : i32
    %54 = tpu.dynamic_rotate %49 by %c255_i32_30 dim 0 : vector<256x128xf32>, i32 -> vector<256x128xf32>
    %cst_31 = arith.constant 0.000000e+00 : f32
    %55 = vector.broadcast %cst_31 : f32 to vector<256x128xf32>
    %56 = arith.select %21, %54, %55 : vector<256x128xi1>, vector<256x128xf32>
    %57 = arith.addf %53, %56 : vector<256x128xf32>
    %c0_32 = arith.constant 0 : index
    %c0_33 = arith.constant 0 : index
    %58 = vector.load %arg9[%c0_32, %c0_33] : memref<1x128xf32, #tpu.memory_space<vmem>>, vector<1x128xf32>
    %59 = vector.broadcast %58 : vector<1x128xf32> to vector<256x128xf32>
    %60 = arith.addf %57, %59 : vector<256x128xf32>
    %61 = arith.addf %60, %37 : vector<256x128xf32>
    %c0_34 = arith.constant 0 : index
    %c0_35 = arith.constant 0 : index
    %62 = vector.load %arg10[%c0_34, %c0_35] : memref<1x128xf32, #tpu.memory_space<vmem>>, vector<1x128xf32>
    %63 = vector.broadcast %62 : vector<1x128xf32> to vector<256x128xf32>
    %64 = arith.addf %61, %63 : vector<256x128xf32>
    %cst_36 = arith.constant 0.000000e+00 : f32
    %65 = vector.broadcast %cst_36 : f32 to vector<256x128xf32>
    %66 = arith.maximumf %64, %65 : vector<256x128xf32>
    %c0_37 = arith.constant 0 : index
    %c0_38 = arith.constant 0 : index
    %67 = vector.load %arg11[%c0_37, %c0_38] : memref<256x128xf32, #tpu.memory_space<vmem>>, vector<256x128xf32>
    tpu.vector_store %arg11[%c0_37, %c0_38], %66 {strides = array<i32>} : memref<256x128xf32, #tpu.memory_space<vmem>>, vector<256x128xf32>,
    return
  }
  func.func @transform_0(%arg0: i32) -> (i32, i32) {
    %c0_i32 = arith.constant 0 : i32
    %c0_i32_0 = arith.constant 0 : i32
    return %arg0, %c0_i32 : i32, i32
  }
  func.func @transform_1(%arg0: i32) -> (i32, i32) {
    %c0_i32 = arith.constant 0 : i32
    %c0_i32_0 = arith.constant 0 : i32
    %c0_i32_1 = arith.constant 0 : i32
    return %c0_i32, %c0_i32_0 : i32, i32
  }
  func.func @transform_2(%arg0: i32) -> (i32, i32) {
    %c0_i32 = arith.constant 0 : i32
    %c0_i32_0 = arith.constant 0 : i32
    %c0_i32_1 = arith.constant 0 : i32
    return %c0_i32, %c0_i32_0 : i32, i32
  }
  func.func @transform_3(%arg0: i32) -> (i32, i32) {
    %c0_i32 = arith.constant 0 : i32
    %c0_i32_0 = arith.constant 0 : i32
    %c0_i32_1 = arith.constant 0 : i32
    return %c0_i32, %c0_i32_0 : i32, i32
  }
  func.func @transform_4(%arg0: i32) -> (i32, i32) {
    %c0_i32 = arith.constant 0 : i32
    %c0_i32_0 = arith.constant 0 : i32
    %c0_i32_1 = arith.constant 0 : i32
    return %c0_i32, %c0_i32_0 : i32, i32
  }
  func.func @transform_5(%arg0: i32) -> (i32, i32) {
    %c0_i32 = arith.constant 0 : i32
    %c0_i32_0 = arith.constant 0 : i32
    %c0_i32_1 = arith.constant 0 : i32
    return %c0_i32, %c0_i32_0 : i32, i32
  }
  func.func @transform_6(%arg0: i32) -> (i32, i32) {
    %c0_i32 = arith.constant 0 : i32
    %c0_i32_0 = arith.constant 0 : i32
    %c0_i32_1 = arith.constant 0 : i32
    return %c0_i32, %c0_i32_0 : i32, i32
  }
  func.func @transform_7(%arg0: i32) -> (i32, i32) {
    %c0_i32 = arith.constant 0 : i32
    %c0_i32_0 = arith.constant 0 : i32
    %c0_i32_1 = arith.constant 0 : i32
    return %c0_i32, %c0_i32_0 : i32, i32
  }
  func.func @transform_8(%arg0: i32) -> (i32, i32) {
    %c0_i32 = arith.constant 0 : i32
    %c0_i32_0 = arith.constant 0 : i32
    %c0_i32_1 = arith.constant 0 : i32
    return %c0_i32, %c0_i32_0 : i32, i32
  }
  func.func @transform_9(%arg0: i32) -> (i32, i32) {
    %c0_i32 = arith.constant 0 : i32
    %c0_i32_0 = arith.constant 0 : i32
    %c0_i32_1 = arith.constant 0 : i32
    return %c0_i32, %c0_i32_0 : i32, i32
  }
  func.func @transform_10(%arg0: i32) -> (i32, i32) {
    %c0_i32 = arith.constant 0 : i32
    %c0_i32_0 = arith.constant 0 : i32
    return %arg0, %c0_i32 : i32, i32
  }
}

</mosaic_0001>

<llo_original>
// kernel: tpu_custom_call.1
$region0: #{tpu_custom_call.1}
  #allocation0 [shape = 'u32[]', space=smem, size = 0x4, offset = 0x4, fixed_abs, tag = 'smem constant byte address 0x4 - core index']
  #allocation1 [shape = 'u32[144,128]{1,0:T(1,128)}', space=vmem, size = 0x12000, scoped, tag = 'internal scratch']
  %s0 = inlined_call_operand.vmem [shape: bf16[512,64], index: 0, kind: input, shape index: {}]
  %s1 = inlined_call_operand.vmem [shape: bf16[64,128], index: 1, kind: input, shape index: {}]
  %s2 = inlined_call_operand.vmem [shape: bf16[64,256], index: 2, kind: input, shape index: {}]
  %s3 = inlined_call_operand.vmem [shape: bf16[64,128], index: 3, kind: input, shape index: {}]
  %s4 = inlined_call_operand.vmem [shape: bf16[128,128], index: 4, kind: input, shape index: {}]
  %s5 = inlined_call_operand.vmem [shape: bf16[128,128], index: 5, kind: input, shape index: {}]
  %s6 = inlined_call_operand.vmem [shape: bf16[128,128], index: 6, kind: input, shape index: {}]
  %s7 = inlined_call_operand.vmem [shape: f32[1,128], index: 7, kind: input, shape index: {}]
  %s8 = inlined_call_operand.vmem [shape: f32[1,128], index: 8, kind: input, shape index: {}]
  %s9 = inlined_call_operand.vmem [shape: f32[1,128], index: 9, kind: input, shape index: {}]
  %s10 = inlined_call_operand.hbm [shape: f32[512,128], index: 10, kind: output, shape index: {}]
  %s11 = sld [smem:[#allocation0]]
  $region73: #{tpu_custom_call.1} parent=0
    _
  %s13 = ssub.s32 1, %s11
  %s14 = scalar_select 0, %s13, %s11
  $region1: #{tpu_custom_call.1} parent=0
    #allocation2 [shape = 'u8[262144]{0}', space=vmem, size = 0x40000, scoped, tag = 'output window, operand 0']
    #allocation3 [shape = 's32[2]{0}', space=sflag, size = 0x8, scoped, tag = 'scoped memory for tpu_custom_call.1']
    %15 = vsyncpa [#allocation3], 0
    %s16 = scalar_lea.sflag [#allocation3], 1
    %17 = vsyncpa %s16, 0
    loop: start=0, step=1, limit=4
    $region2: #{tpu_custom_call.1} parent=1 // loop_pre_header
      _
    $region3: #{tpu_custom_call.1} parent=1 // loop_header
      %s19 = sphi 0, %s23
      %p20 = scmp.ge.s32.totalorder %s19, 4
      %s29 = sphi 0, %s31
      %s32 = sphi 0, %s29
      %s33 = sphi 0, %s32
      %s49 = sphi 0, %s33
      %s53 = sphi 0, %s53
      %s55 = sphi 0, %s53
      %s56 = sphi 0, %s55
      %s70 = sphi 0, %s56
      %s74 = sphi 0, %s74
      %s76 = sphi 0, %s74
      %s77 = sphi 0, %s76
      %s91 = sphi 0, %s77
      %s95 = sphi 0, %s95
      %s97 = sphi 0, %s95
      %s98 = sphi 0, %s97
      %s112 = sphi 0, %s98
      %s116 = sphi 0, %s116
      %s118 = sphi 0, %s116
      %s119 = sphi 0, %s118
      %s133 = sphi 0, %s119
      %s137 = sphi 0, %s137
      %s139 = sphi 0, %s137
      %s140 = sphi 0, %s139
      %s154 = sphi 0, %s140
      %s158 = sphi 0, %s158
      %s160 = sphi 0, %s158
      %s161 = sphi 0, %s160
      %s175 = sphi 0, %s161
      %s179 = sphi 0, %s179
      %s181 = sphi 0, %s179
      %s182 = sphi 0, %s181
      %s196 = sphi 0, %s182
      %s200 = sphi 0, %s200
      %s202 = sphi 0, %s200
      %s203 = sphi 0, %s202
      %s217 = sphi 0, %s203
      %s221 = sphi 0, %s221
      %s223 = sphi 0, %s221
      %s224 = sphi 0, %s223
      %s238 = sphi 0, %s224
      %s244 = sphi 0, %s246
      %s247 = sphi 0, %s244
      %s248 = sphi 0, %s247
      %s264 = sphi 0, %s248
    $region4: #{tpu_custom_call.1} parent=1 // loop_header_branch
      %22 = sbr.rel (%p20) target = $region8
    $region5: #{tpu_custom_call.1} parent=1 // loop_body
      %s24 = ssub.s32 %s19, 1
      %s25 = ssub.s32 %s19, 2
      %s26 = sadd.s32 %s19, 1
      %s27 = ssub.s32 %s19, %s26
      %p28 = scmp.eq.s32.totalorder %s27, 0
      %s30 = sadd.s32 %s29, 1
      %s31 = scalar_select %p28, %s29, %s30
      %p34 = pneg %p28
      %p35 = scmp.eq.s32.totalorder %s19, 1
      %p36 = por %p34, %p35
      %p37 = scmp.ne.s32.totalorder %s29, %s32
      %p38 = scmp.eq.s32.totalorder %s19, 0
      %p39 = por %p37, %p38
      %p40 = scmp.ne.s32.totalorder %s29, %s32
      %p41 = scmp.eq.s32.totalorder %s24, 1
      %p42 = por %p40, %p41
      %p43 = scmp.ne.s32.totalorder %s32, %s33
      %p44 = scmp.eq.s32.totalorder %s24, 0
      %p45 = por %p43, %p44
      %p46 = scmp.ne.s32.totalorder %s32, %s33
      %p47 = scmp.eq.s32.totalorder %s25, 1
      %p48 = por %p46, %p47
      %p50 = scmp.ne.s32.totalorder %s33, %s49
      %p51 = scmp.eq.s32.totalorder %s25, 0
      %p52 = por %p50, %p51
      %s54 = sadd.s32 %s53, 1
      %p57 = scmp.eq.s32.totalorder %s19, 1
      %p58 = scmp.ne.s32.totalorder %s53, %s55
      %p59 = scmp.eq.s32.totalorder %s19, 0
      %p60 = por %p58, %p59
      %p61 = scmp.ne.s32.totalorder %s53, %s55
      %p62 = scmp.eq.s32.totalorder %s24, 1
      %p63 = por %p61, %p62
      %p64 = scmp.ne.s32.totalorder %s55, %s56
      %p65 = scmp.eq.s32.totalorder %s24, 0
      %p66 = por %p64, %p65
      %p67 = scmp.ne.s32.totalorder %s55, %s56
      %p68 = scmp.eq.s32.totalorder %s25, 1
      %p69 = por %p67, %p68
      %p71 = scmp.ne.s32.totalorder %s56, %s70
      %p72 = scmp.eq.s32.totalorder %s25, 0
      %p73 = por %p71, %p72
      %s75 = sadd.s32 %s74, 1
      %p78 = scmp.eq.s32.totalorder %s19, 1
      %p79 = scmp.ne.s32.totalorder %s74, %s76
      %p80 = scmp.eq.s32.totalorder %s19, 0
      %p81 = por %p79, %p80
      %p82 = scmp.ne.s32.totalorder %s74, %s76
      %p83 = scmp.eq.s32.totalorder %s24, 1
      %p84 = por %p82, %p83
      %p85 = scmp.ne.s32.totalorder %s76, %s77
      %p86 = scmp.eq.s32.totalorder %s24, 0
      %p87 = por %p85, %p86
      %p88 = scmp.ne.s32.totalorder %s76, %s77
      %p89 = scmp.eq.s32.totalorder %s25, 1
      %p90 = por %p88, %p89
      %p92 = scmp.ne.s32.totalorder %s77, %s91
      %p93 = scmp.eq.s32.totalorder %s25, 0
      %p94 = por %p92, %p93
      %s96 = sadd.s32 %s95, 1
      %p99 = scmp.eq.s32.totalorder %s19, 1
      %p100 = scmp.ne.s32.totalorder %s95, %s97
      %p101 = scmp.eq.s32.totalorder %s19, 0
      %p102 = por %p100, %p101
      %p103 = scmp.ne.s32.totalorder %s95, %s97
      %p104 = scmp.eq.s32.totalorder %s24, 1
      %p105 = por %p103, %p104
      %p106 = scmp.ne.s32.totalorder %s97, %s98
      %p107 = scmp.eq.s32.totalorder %s24, 0
      %p108 = por %p106, %p107
      %p109 = scmp.ne.s32.totalorder %s97, %s98
      %p110 = scmp.eq.s32.totalorder %s25, 1
      %p111 = por %p109, %p110
      %p113 = scmp.ne.s32.totalorder %s98, %s112
      %p114 = scmp.eq.s32.totalorder %s25, 0
      %p115 = por %p113, %p114
      %s117 = sadd.s32 %s116, 1
      %p120 = scmp.eq.s32.totalorder %s19, 1
      %p121 = scmp.ne.s32.totalorder %s116, %s118
      %p122 = scmp.eq.s32.totalorder %s19, 0
      %p123 = por %p121, %p122
      %p124 = scmp.ne.s32.totalorder %s116, %s118
      %p125 = scmp.eq.s32.totalorder %s24, 1
      %p126 = por %p124, %p125
      %p127 = scmp.ne.s32.totalorder %s118, %s119
      %p128 = scmp.eq.s32.totalorder %s24, 0
      %p129 = por %p127, %p128
      %p130 = scmp.ne.s32.totalorder %s118, %s119
      %p131 = scmp.eq.s32.totalorder %s25, 1
      %p132 = por %p130, %p131
      %p134 = scmp.ne.s32.totalorder %s119, %s133
      %p135 = scmp.eq.s32.totalorder %s25, 0
      %p136 = por %p134, %p135
      %s138 = sadd.s32 %s137, 1
      %p141 = scmp.eq.s32.totalorder %s19, 1
      %p142 = scmp.ne.s32.totalorder %s137, %s139
      %p143 = scmp.eq.s32.totalorder %s19, 0
      %p144 = por %p142, %p143
      %p145 = scmp.ne.s32.totalorder %s137, %s139
      %p146 = scmp.eq.s32.totalorder %s24, 1
      %p147 = por %p145, %p146
      %p148 = scmp.ne.s32.totalorder %s139, %s140
      %p149 = scmp.eq.s32.totalorder %s24, 0
      %p150 = por %p148, %p149
      %p151 = scmp.ne.s32.totalorder %s139, %s140
      %p152 = scmp.eq.s32.totalorder %s25, 1
      %p153 = por %p151, %p152
      %p155 = scmp.ne.s32.totalorder %s140, %s154
      %p156 = scmp.eq.s32.totalorder %s25, 0
      %p157 = por %p155, %p156
      %s159 = sadd.s32 %s158, 1
      %p162 = scmp.eq.s32.totalorder %s19, 1
      %p163 = scmp.ne.s32.totalorder %s158, %s160
      %p164 = scmp.eq.s32.totalorder %s19, 0
      %p165 = por %p163, %p164
      %p166 = scmp.ne.s32.totalorder %s158, %s160
      %p167 = scmp.eq.s32.totalorder %s24, 1
      %p168 = por %p166, %p167
      %p169 = scmp.ne.s32.totalorder %s160, %s161
      %p170 = scmp.eq.s32.totalorder %s24, 0
      %p171 = por %p169, %p170
      %p172 = scmp.ne.s32.totalorder %s160, %s161
      %p173 = scmp.eq.s32.totalorder %s25, 1
      %p174 = por %p172, %p173
      %p176 = scmp.ne.s32.totalorder %s161, %s175
      %p177 = scmp.eq.s32.totalorder %s25, 0
      %p178 = por %p176, %p177
      %s180 = sadd.s32 %s179, 1
      %p183 = scmp.eq.s32.totalorder %s19, 1
      %p184 = scmp.ne.s32.totalorder %s179, %s181
      %p185 = scmp.eq.s32.totalorder %s19, 0
      %p186 = por %p184, %p185
      %p187 = scmp.ne.s32.totalorder %s179, %s181
      %p188 = scmp.eq.s32.totalorder %s24, 1
      %p189 = por %p187, %p188
      %p190 = scmp.ne.s32.totalorder %s181, %s182
      %p191 = scmp.eq.s32.totalorder %s24, 0
      %p192 = por %p190, %p191
      %p193 = scmp.ne.s32.totalorder %s181, %s182
      %p194 = scmp.eq.s32.totalorder %s25, 1
      %p195 = por %p193, %p194
      %p197 = scmp.ne.s32.totalorder %s182, %s196
      %p198 = scmp.eq.s32.totalorder %s25, 0
      %p199 = por %p197, %p198
      %s201 = sadd.s32 %s200, 1
      %p204 = scmp.eq.s32.totalorder %s19, 1
      %p205 = scmp.ne.s32.totalorder %s200, %s202
      %p206 = scmp.eq.s32.totalorder %s19, 0
      %p207 = por %p205, %p206
      %p208 = scmp.ne.s32.totalorder %s200, %s202
      %p209 = scmp.eq.s32.totalorder %s24, 1
      %p210 = por %p208, %p209
      %p211 = scmp.ne.s32.totalorder %s202, %s203
      %p212 = scmp.eq.s32.totalorder %s24, 0
      %p213 = por %p211, %p212
      %p214 = scmp.ne.s32.totalorder %s202, %s203
      %p215 = scmp.eq.s32.totalorder %s25, 1
      %p216 = por %p214, %p215
      %p218 = scmp.ne.s32.totalorder %s203, %s217
      %p219 = scmp.eq.s32.totalorder %s25, 0
      %p220 = por %p218, %p219
      %s222 = sadd.s32 %s221, 1
      %p225 = scmp.eq.s32.totalorder %s19, 1
      %p226 = scmp.ne.s32.totalorder %s221, %s223
      %p227 = scmp.eq.s32.totalorder %s19, 0
      %p228 = por %p226, %p227
      %p229 = scmp.ne.s32.totalorder %s221, %s223
      %p230 = scmp.eq.s32.totalorder %s24, 1
      %p231 = por %p229, %p230
      %p232 = scmp.ne.s32.totalorder %s223, %s224
      %p233 = scmp.eq.s32.totalorder %s24, 0
      %p234 = por %p232, %p233
      %p235 = scmp.ne.s32.totalorder %s223, %s224
      %p236 = scmp.eq.s32.totalorder %s25, 1
      %p237 = por %p235, %p236
      %p239 = scmp.ne.s32.totalorder %s224, %s238
      %p240 = scmp.eq.s32.totalorder %s25, 0
      %p241 = por %p239, %p240
      %s242 = ssub.s32 %s19, %s26
      %p243 = scmp.eq.s32.totalorder %s242, 0
      %s245 = sadd.s32 %s244, 1
      %s246 = scalar_select %p243, %s244, %s245
      %p249 = pneg %p243
      %p250 = scmp.eq.s32.totalorder %s19, 1
      %p251 = por %p249, %p250
      %p252 = scmp.ne.s32.totalorder %s244, %s247
      %p253 = scmp.eq.s32.totalorder %s19, 0
      %p254 = por %p252, %p253
      %p255 = scmp.ne.s32.totalorder %s244, %s247
      %p256 = scmp.eq.s32.totalorder %s24, 1
      %p257 = por %p255, %p256
      %p258 = scmp.ne.s32.totalorder %s247, %s248
      %p259 = scmp.eq.s32.totalorder %s24, 0
      %p260 = por %p258, %p259
      %p261 = scmp.ne.s32.totalorder %s247, %s248
      %p262 = scmp.eq.s32.totalorder %s25, 1
      %p263 = por %p261, %p262
      %p265 = scmp.ne.s32.totalorder %s248, %s264
      %p266 = scmp.eq.s32.totalorder %s25, 0
      %p267 = por %p265, %p266
      %p268 = scmp.le.s32.totalorder 1, %s19
      %p269 = scmp.lt.s32.totalorder %s19, 3
      %p270 = pnand %p268, %p269
      %p271 = pneg %p270
      // Predicated region
      $region9: #{tpu_custom_call.1} parent=5 // pred_check
        _
      $region10: #{tpu_custom_call.1} parent=5 // pred_check_branch
        %273 = sbr.rel (%p270) target = $region12
      $region11: #{tpu_custom_call.1} parent=5 // pred_region
        %s274 = ssub.s32 %s19, 1
        // Predicated region
        $region13: #{tpu_custom_call.1} parent=11 // pred_check
          %p275 = pneg %p66
        $region14: #{tpu_custom_call.1} parent=11 // pred_check_branch
          %277 = sbr.rel (%p275) target = $region16
        $region15: #{tpu_custom_call.1} parent=11 // pred_region
          _
        $region16: #{tpu_custom_call.1} parent=11 // pred_fallthru
          _
        // Predicated region
        $region17: #{tpu_custom_call.1} parent=11 // pred_check
          %p278 = pneg %p87
        $region18: #{tpu_custom_call.1} parent=11 // pred_check_branch
          %280 = sbr.rel (%p278) target = $region20
        $region19: #{tpu_custom_call.1} parent=11 // pred_region
          _
        $region20: #{tpu_custom_call.1} parent=11 // pred_fallthru
          _
        // Predicated region
        $region21: #{tpu_custom_call.1} parent=11 // pred_check
          %p281 = pneg %p108
        $region22: #{tpu_custom_call.1} parent=11 // pred_check_branch
          %283 = sbr.rel (%p281) target = $region24
        $region23: #{tpu_custom_call.1} parent=11 // pred_region
          _
        $region24: #{tpu_custom_call.1} parent=11 // pred_fallthru
          _
        // Predicated region
        $region25: #{tpu_custom_call.1} parent=11 // pred_check
          %p284 = pneg %p129
        $region26: #{tpu_custom_call.1} parent=11 // pred_check_branch
          %286 = sbr.rel (%p284) target = $region28
        $region27: #{tpu_custom_call.1} parent=11 // pred_region
          _
        $region28: #{tpu_custom_call.1} parent=11 // pred_fallthru
          _
        // Predicated region
        $region29: #{tpu_custom_call.1} parent=11 // pred_check
          %p287 = pneg %p150
        $region30: #{tpu_custom_call.1} parent=11 // pred_check_branch
          %289 = sbr.rel (%p287) target = $region32
        $region31: #{tpu_custom_call.1} parent=11 // pred_region
          _
        $region32: #{tpu_custom_call.1} parent=11 // pred_fallthru
          _
        // Predicated region
        $region33: #{tpu_custom_call.1} parent=11 // pred_check
          %p290 = pneg %p171
        $region34: #{tpu_custom_call.1} parent=11 // pred_check_branch
          %292 = sbr.rel (%p290) target = $region36
        $region35: #{tpu_custom_call.1} parent=11 // pred_region
          _
        $region36: #{tpu_custom_call.1} parent=11 // pred_fallthru
          _
        // Predicated region
        $region37: #{tpu_custom_call.1} parent=11 // pred_check
          %p293 = pneg %p192
        $region38: #{tpu_custom_call.1} parent=11 // pred_check_branch
          %295 = sbr.rel (%p293) target = $region40
        $region39: #{tpu_custom_call.1} parent=11 // pred_region
          _
        $region40: #{tpu_custom_call.1} parent=11 // pred_fallthru
          _
        // Predicated region
        $region41: #{tpu_custom_call.1} parent=11 // pred_check
          %p296 = pneg %p213
        $region42: #{tpu_custom_call.1} parent=11 // pred_check_branch
          %298 = sbr.rel (%p296) target = $region44
        $region43: #{tpu_custom_call.1} parent=11 // pred_region
          _
        $region44: #{tpu_custom_call.1} parent=11 // pred_fallthru
          _
        // Predicated region
        $region45: #{tpu_custom_call.1} parent=11 // pred_check
          %p299 = pneg %p234
        $region46: #{tpu_custom_call.1} parent=11 // pred_check_branch
          %301 = sbr.rel (%p299) target = $region48
        $region47: #{tpu_custom_call.1} parent=11 // pred_region
          _
        $region48: #{tpu_custom_call.1} parent=11 // pred_fallthru
          _
      $region12: #{tpu_custom_call.1} parent=5 // pred_fallthru
        _
      %p302 = scmp.lt.s32.totalorder %s19, 2
      // Predicated region
      $region49: #{tpu_custom_call.1} parent=5 // pred_check
        %p303 = pneg %p302
      $region50: #{tpu_custom_call.1} parent=5 // pred_check_branch
        %305 = sbr.rel (%p303) target = $region52
      $region51: #{tpu_custom_call.1} parent=5 // pred_region
        // Predicated region
        $region53: #{tpu_custom_call.1} parent=51 // pred_check
          %p306 = pneg %p39
        $region54: #{tpu_custom_call.1} parent=51 // pred_check_branch
          %308 = sbr.rel (%p306) target = $region56
        $region55: #{tpu_custom_call.1} parent=51 // pred_region
          %s309 = smul.u32 32, %s19
          %p310 = scmp.lt.s32.totalorder %s309, 63
          %s311 = scalar_select %p310, %s309, 63
          %s312 = smul.addr %s311, 4
          %s313 = scalar_lea.vmem %s0, %s312
          %s314 = smul.u32 32, %s19
        $region56: #{tpu_custom_call.1} parent=51 // pred_fallthru
          _
      $region52: #{tpu_custom_call.1} parent=5 // pred_fallthru
        _
      %p315 = scmp.le.s32.totalorder 1, %s19
      %p316 = scmp.lt.s32.totalorder %s19, 3
      %p317 = pnand %p315, %p316
      %p318 = pneg %p317
      // Predicated region
      $region57: #{tpu_custom_call.1} parent=5 // pred_check
        _
      $region58: #{tpu_custom_call.1} parent=5 // pred_check_branch
        %320 = sbr.rel (%p317) target = $region60
      $region59: #{tpu_custom_call.1} parent=5 // pred_region
        %s321 = ssub.s32 %s19, 1
        %s322 = smul.u32 32, %s24
        %p323 = scmp.lt.s32.totalorder %s322, 63
        %s324 = scalar_select %p323, %s322, 63
        %s325 = smul.addr %s324, 4
        %s326 = scalar_lea.vmem %s0, %s325
        %p327 = pneg %p45
        %p328 = pneg %p42
        %p329 = pneg %p66
        %p330 = pneg %p63
        %p331 = pneg %p87
        %p332 = pneg %p84
        %p333 = pneg %p108
        %p334 = pneg %p105
        %p335 = pneg %p129
        %p336 = pneg %p126
        %p337 = pneg %p150
        %p338 = pneg %p147
        %p339 = pneg %p171
        %p340 = pneg %p168
        %p341 = pneg %p192
        %p342 = pneg %p189
        %p343 = pneg %p213
        %p344 = pneg %p210
        %p345 = pneg %p234
        %p346 = pneg %p231
        %p347 = pneg %p260
        %p348 = pneg %p257
        %s349 = sand.u32 %s247, 1
        %s350 = scalar_lea.sflag [#allocation3], %s349
        %s351 = sand.u32 %s247, 1
        %s352 = smul.addr %s351, 256
        %s353 = scalar_lea.vmem [#allocation2], %s352
        %s354 = smul.u32 32, %s24
        %p355 = scmp.lt.s32.totalorder %s354, 63
        %s356 = scalar_select %p355, %s354, 63
        %s357 = smul.addr %s356, 4
        %s358 = scalar_lea.vmem %s0, %s357
        %s359 = smul.u32 32, %s24
        %s360 = smul.u32 32, %s24
        %v362 = vld [vmem:[%s358] sm:$0xf]
        %v363 = vld [vmem:[%s358 + $0x4] sm:$0xf]
        %v364 = vld [vmem:[%s358 + $0x8] sm:$0xf]
        %v365 = vld [vmem:[%s358 + $0xc] sm:$0xf]
        %v366 = vld [vmem:[%s358 + $0x10] sm:$0xf]
        %v367 = vld [vmem:[%s358 + $0x14] sm:$0xf]
        %v368 = vld [vmem:[%s358 + $0x18] sm:$0xf]
        %v369 = vld [vmem:[%s358 + $0x1c] sm:$0xf]
        %v370 = vld [vmem:[%s358 + $0x20] sm:$0xf]
        %v371 = vld [vmem:[%s358 + $0x24] sm:$0xf]
        %v372 = vld [vmem:[%s358 + $0x28] sm:$0xf]
        %v373 = vld [vmem:[%s358 + $0x2c] sm:$0xf]
        %v374 = vld [vmem:[%s358 + $0x30] sm:$0xf]
        %v375 = vld [vmem:[%s358 + $0x34] sm:$0xf]
        %v376 = vld [vmem:[%s358 + $0x38] sm:$0xf]
        %v377 = vld [vmem:[%s358 + $0x3c] sm:$0xf]
        %v378 = vld [vmem:[%s358 + $0x40] sm:$0xf]
        %v379 = vld [vmem:[%s358 + $0x44] sm:$0xf]
        %v380 = vld [vmem:[%s358 + $0x48] sm:$0xf]
        %v381 = vld [vmem:[%s358 + $0x4c] sm:$0xf]
        %v382 = vld [vmem:[%s358 + $0x50] sm:$0xf]
        %v383 = vld [vmem:[%s358 + $0x54] sm:$0xf]
        %v384 = vld [vmem:[%s358 + $0x58] sm:$0xf]
        %v385 = vld [vmem:[%s358 + $0x5c] sm:$0xf]
        %v386 = vld [vmem:[%s358 + $0x60] sm:$0xf]
        %v387 = vld [vmem:[%s358 + $0x64] sm:$0xf]
        %v388 = vld [vmem:[%s358 + $0x68] sm:$0xf]
        %v389 = vld [vmem:[%s358 + $0x6c] sm:$0xf]
        %v390 = vld [vmem:[%s358 + $0x70] sm:$0xf]
        %v391 = vld [vmem:[%s358 + $0x74] sm:$0xf]
        %v392 = vld [vmem:[%s358 + $0x78] sm:$0xf]
        %v393 = vld [vmem:[%s358 + $0x7c] sm:$0xf]
        %v394 = vlaneseq
        %v395 = vshrl.u32 %v394, 7
        %v396 = vadd.s32 %v395, 8
        %v397 = vadd.s32 %v395, 16
        %v398 = vadd.s32 %v395, 24
        %v399 = vadd.s32 %v395, 32
        %v400 = vadd.s32 %v395, 40
        %v401 = vadd.s32 %v395, 48
        %v402 = vadd.s32 %v395, 56
        %v403 = vadd.s32 %v395, 64
        %v404 = vadd.s32 %v395, 72
        %v405 = vadd.s32 %v395, 80
        %v406 = vadd.s32 %v395, 88
        %v407 = vadd.s32 %v395, 96
        %v408 = vadd.s32 %v395, 104
        %v409 = vadd.s32 %v395, 112
        %v410 = vadd.s32 %v395, 120
        %v411 = vadd.s32 %v395, 128
        %v412 = vadd.s32 %v395, 136
        %v413 = vadd.s32 %v395, 144
        %v414 = vadd.s32 %v395, 152
        %v415 = vadd.s32 %v395, 160
        %v416 = vadd.s32 %v395, 168
        %v417 = vadd.s32 %v395, 176
        %v418 = vadd.s32 %v395, 184
        %v419 = vadd.s32 %v395, 192
        %v420 = vadd.s32 %v395, 200
        %v421 = vadd.s32 %v395, 208
        %v422 = vadd.s32 %v395, 216
        %v423 = vadd.s32 %v395, 224
        %v424 = vadd.s32 %v395, 232
        %v425 = vadd.s32 %v395, 240
        %v426 = vadd.s32 %v395, 248
        %vm427 = vcmp.lt.s32.totalorder %v395, 0
        %v428 = vsub.s32 0, %v395
        %v429 = vsel %vm427, %v428, %v395
        %v430 = vshrl.u32 %v429, 4
        %v431 = vand.u32 %v429, 15
        %v432 = vsub.s32 0, %v431
        %v433 = vsel %vm427, %v432, %v431
        %vm434 = vcmp.lt.s32.totalorder %v396, 0
        %v435 = vsub.s32 0, %v396
        %v436 = vsel %vm434, %v435, %v396
        %v437 = vshrl.u32 %v436, 4
        %v438 = vand.u32 %v436, 15
        %v439 = vsub.s32 0, %v438
        %v440 = vsel %vm434, %v439, %v438
        %vm441 = vcmp.lt.s32.totalorder %v397, 0
        %v442 = vsub.s32 0, %v397
        %v443 = vsel %vm441, %v442, %v397
        %v444 = vshrl.u32 %v443, 4
        %v445 = vand.u32 %v443, 15
        %v446 = vsub.s32 0, %v445
        %v447 = vsel %vm441, %v446, %v445
        %vm448 = vcmp.lt.s32.totalorder %v398, 0
        %v449 = vsub.s32 0, %v398
        %v450 = vsel %vm448, %v449, %v398
        %v451 = vshrl.u32 %v450, 4
        %v452 = vand.u32 %v450, 15
        %v453 = vsub.s32 0, %v452
        %v454 = vsel %vm448, %v453, %v452
        %vm455 = vcmp.lt.s32.totalorder %v399, 0
        %v456 = vsub.s32 0, %v399
        %v457 = vsel %vm455, %v456, %v399
        %v458 = vshrl.u32 %v457, 4
        %v459 = vand.u32 %v457, 15
        %v460 = vsub.s32 0, %v459
        %v461 = vsel %vm455, %v460, %v459
        %vm462 = vcmp.lt.s32.totalorder %v400, 0
        %v463 = vsub.s32 0, %v400
        %v464 = vsel %vm462, %v463, %v400
        %v465 = vshrl.u32 %v464, 4
        %v466 = vand.u32 %v464, 15
        %v467 = vsub.s32 0, %v466
        %v468 = vsel %vm462, %v467, %v466
        %vm469 = vcmp.lt.s32.totalorder %v401, 0
        %v470 = vsub.s32 0, %v401
        %v471 = vsel %vm469, %v470, %v401
        %v472 = vshrl.u32 %v471, 4
        %v473 = vand.u32 %v471, 15
        %v474 = vsub.s32 0, %v473
        %v475 = vsel %vm469, %v474, %v473
        %vm476 = vcmp.lt.s32.totalorder %v402, 0
        %v477 = vsub.s32 0, %v402
        %v478 = vsel %vm476, %v477, %v402
        %v479 = vshrl.u32 %v478, 4
        %v480 = vand.u32 %v478, 15
        %v481 = vsub.s32 0, %v480
        %v482 = vsel %vm476, %v481, %v480
        %vm483 = vcmp.lt.s32.totalorder %v403, 0
        %v484 = vsub.s32 0, %v403
        %v485 = vsel %vm483, %v484, %v403
        %v486 = vshrl.u32 %v485, 4
        %v487 = vand.u32 %v485, 15
        %v488 = vsub.s32 0, %v487
        %v489 = vsel %vm483, %v488, %v487
        %vm490 = vcmp.lt.s32.totalorder %v404, 0
        %v491 = vsub.s32 0, %v404
        %v492 = vsel %vm490, %v491, %v404
        %v493 = vshrl.u32 %v492, 4
        %v494 = vand.u32 %v492, 15
        %v495 = vsub.s32 0, %v494
        %v496 = vsel %vm490, %v495, %v494
        %vm497 = vcmp.lt.s32.totalorder %v405, 0
        %v498 = vsub.s32 0, %v405
        %v499 = vsel %vm497, %v498, %v405
        %v500 = vshrl.u32 %v499, 4
        %v501 = vand.u32 %v499, 15
        %v502 = vsub.s32 0, %v501
        %v503 = vsel %vm497, %v502, %v501
        %vm504 = vcmp.lt.s32.totalorder %v406, 0
        %v505 = vsub.s32 0, %v406
        %v506 = vsel %vm504, %v505, %v406
        %v507 = vshrl.u32 %v506, 4
        %v508 = vand.u32 %v506, 15
        %v509 = vsub.s32 0, %v508
        %v510 = vsel %vm504, %v509, %v508
        %vm511 = vcmp.lt.s32.totalorder %v407, 0
        %v512 = vsub.s32 0, %v407
        %v513 = vsel %vm511, %v512, %v407
        %v514 = vshrl.u32 %v513, 4
        %v515 = vand.u32 %v513, 15
        %v516 = vsub.s32 0, %v515
        %v517 = vsel %vm511, %v516, %v515
        %vm518 = vcmp.lt.s32.totalorder %v408, 0
        %v519 = vsub.s32 0, %v408
        %v520 = vsel %vm518, %v519, %v408
        %v521 = vshrl.u32 %v520, 4
        %v522 = vand.u32 %v520, 15
        %v523 = vsub.s32 0, %v522
        %v524 = vsel %vm518, %v523, %v522
        %vm525 = vcmp.lt.s32.totalorder %v409, 0
        %v526 = vsub.s32 0, %v409
        %v527 = vsel %vm525, %v526, %v409
        %v528 = vshrl.u32 %v527, 4
        %v529 = vand.u32 %v527, 15
        %v530 = vsub.s32 0, %v529
        %v531 = vsel %vm525, %v530, %v529
        %vm532 = vcmp.lt.s32.totalorder %v410, 0
        %v533 = vsub.s32 0, %v410
        %v534 = vsel %vm532, %v533, %v410
        %v535 = vshrl.u32 %v534, 4
        %v536 = vand.u32 %v534, 15
        %v537 = vsub.s32 0, %v536
        %v538 = vsel %vm532, %v537, %v536
        %vm539 = vcmp.lt.s32.totalorder %v411, 0
        %v540 = vsub.s32 0, %v411
        %v541 = vsel %vm539, %v540, %v411
        %v542 = vshrl.u32 %v541, 4
        %v543 = vand.u32 %v541, 15
        %v544 = vsub.s32 0, %v543
        %v545 = vsel %vm539, %v544, %v543
        %vm546 = vcmp.lt.s32.totalorder %v412, 0
        %v547 = vsub.s32 0, %v412
        %v548 = vsel %vm546, %v547, %v412
        %v549 = vshrl.u32 %v548, 4
        %v550 = vand.u32 %v548, 15
        %v551 = vsub.s32 0, %v550
        %v552 = vsel %vm546, %v551, %v550
        %vm553 = vcmp.lt.s32.totalorder %v413, 0
        %v554 = vsub.s32 0, %v413
        %v555 = vsel %vm553, %v554, %v413
        %v556 = vshrl.u32 %v555, 4
        %v557 = vand.u32 %v555, 15
        %v558 = vsub.s32 0, %v557
        %v559 = vsel %vm553, %v558, %v557
        %vm560 = vcmp.lt.s32.totalorder %v414, 0
        %v561 = vsub.s32 0, %v414
        %v562 = vsel %vm560, %v561, %v414
        %v563 = vshrl.u32 %v562, 4
        %v564 = vand.u32 %v562, 15
        %v565 = vsub.s32 0, %v564
        %v566 = vsel %vm560, %v565, %v564
        %vm567 = vcmp.lt.s32.totalorder %v415, 0
        %v568 = vsub.s32 0, %v415
        %v569 = vsel %vm567, %v568, %v415
        %v570 = vshrl.u32 %v569, 4
        %v571 = vand.u32 %v569, 15
        %v572 = vsub.s32 0, %v571
        %v573 = vsel %vm567, %v572, %v571
        %vm574 = vcmp.lt.s32.totalorder %v416, 0
        %v575 = vsub.s32 0, %v416
        %v576 = vsel %vm574, %v575, %v416
        %v577 = vshrl.u32 %v576, 4
        %v578 = vand.u32 %v576, 15
        %v579 = vsub.s32 0, %v578
        %v580 = vsel %vm574, %v579, %v578
        %vm581 = vcmp.lt.s32.totalorder %v417, 0
        %v582 = vsub.s32 0, %v417
        %v583 = vsel %vm581, %v582, %v417
        %v584 = vshrl.u32 %v583, 4
        %v585 = vand.u32 %v583, 15
        %v586 = vsub.s32 0, %v585
        %v587 = vsel %vm581, %v586, %v585
        %vm588 = vcmp.lt.s32.totalorder %v418, 0
        %v589 = vsub.s32 0, %v418
        %v590 = vsel %vm588, %v589, %v418
        %v591 = vshrl.u32 %v590, 4
        %v592 = vand.u32 %v590, 15
        %v593 = vsub.s32 0, %v592
        %v594 = vsel %vm588, %v593, %v592
        %vm595 = vcmp.lt.s32.totalorder %v419, 0
        %v596 = vsub.s32 0, %v419
        %v597 = vsel %vm595, %v596, %v419
        %v598 = vshrl.u32 %v597, 4
        %v599 = vand.u32 %v597, 15
        %v600 = vsub.s32 0, %v599
        %v601 = vsel %vm595, %v600, %v599
        %vm602 = vcmp.lt.s32.totalorder %v420, 0
        %v603 = vsub.s32 0, %v420
        %v604 = vsel %vm602, %v603, %v420
        %v605 = vshrl.u32 %v604, 4
        %v606 = vand.u32 %v604, 15
        %v607 = vsub.s32 0, %v606
        %v608 = vsel %vm602, %v607, %v606
        %vm609 = vcmp.lt.s32.totalorder %v421, 0
        %v610 = vsub.s32 0, %v421
        %v611 = vsel %vm609, %v610, %v421
        %v612 = vshrl.u32 %v611, 4
        %v613 = vand.u32 %v611, 15
        %v614 = vsub.s32 0, %v613
        %v615 = vsel %vm609, %v614, %v613
        %vm616 = vcmp.lt.s32.totalorder %v422, 0
        %v617 = vsub.s32 0, %v422
        %v618 = vsel %vm616, %v617, %v422
        %v619 = vshrl.u32 %v618, 4
        %v620 = vand.u32 %v618, 15
        %v621 = vsub.s32 0, %v620
        %v622 = vsel %vm616, %v621, %v620
        %vm623 = vcmp.lt.s32.totalorder %v423, 0
        %v624 = vsub.s32 0, %v423
        %v625 = vsel %vm623, %v624, %v423
        %v626 = vshrl.u32 %v625, 4
        %v627 = vand.u32 %v625, 15
        %v628 = vsub.s32 0, %v627
        %v629 = vsel %vm623, %v628, %v627
        %vm630 = vcmp.lt.s32.totalorder %v424, 0
        %v631 = vsub.s32 0, %v424
        %v632 = vsel %vm630, %v631, %v424
        %v633 = vshrl.u32 %v632, 4
        %v634 = vand.u32 %v632, 15
        %v635 = vsub.s32 0, %v634
        %v636 = vsel %vm630, %v635, %v634
        %vm637 = vcmp.lt.s32.totalorder %v425, 0
        %v638 = vsub.s32 0, %v425
        %v639 = vsel %vm637, %v638, %v425
        %v640 = vshrl.u32 %v639, 4
        %v641 = vand.u32 %v639, 15
        %v642 = vsub.s32 0, %v641
        %v643 = vsel %vm637, %v642, %v641
        %vm644 = vcmp.lt.s32.totalorder %v426, 0
        %v645 = vsub.s32 0, %v426
        %v646 = vsel %vm644, %v645, %v426
        %v647 = vshrl.u32 %v646, 4
        %v648 = vand.u32 %v646, 15
        %v649 = vsub.s32 0, %v648
        %v650 = vsel %vm644, %v649, %v648
        %vm651 = vcmp.ne.s32.totalorder %v433, 0
        %vm652 = vcmp.ne.s32.totalorder %v440, 0
        %vm653 = vcmp.ne.s32.totalorder %v447, 0
        %vm654 = vcmp.ne.s32.totalorder %v454, 0
        %vm655 = vcmp.ne.s32.totalorder %v461, 0
        %vm656 = vcmp.ne.s32.totalorder %v468, 0
        %vm657 = vcmp.ne.s32.totalorder %v475, 0
        %vm658 = vcmp.ne.s32.totalorder %v482, 0
        %vm659 = vcmp.ne.s32.totalorder %v489, 0
        %vm660 = vcmp.ne.s32.totalorder %v496, 0
        %vm661 = vcmp.ne.s32.totalorder %v503, 0
        %vm662 = vcmp.ne.s32.totalorder %v510, 0
        %vm663 = vcmp.ne.s32.totalorder %v517, 0
        %vm664 = vcmp.ne.s32.totalorder %v524, 0
        %vm665 = vcmp.ne.s32.totalorder %v531, 0
        %vm666 = vcmp.ne.s32.totalorder %v538, 0
        %vm667 = vcmp.ne.s32.totalorder %v545, 0
        %vm668 = vcmp.ne.s32.totalorder %v552, 0
        %vm669 = vcmp.ne.s32.totalorder %v559, 0
        %vm670 = vcmp.ne.s32.totalorder %v566, 0
        %vm671 = vcmp.ne.s32.totalorder %v573, 0
        %vm672 = vcmp.ne.s32.totalorder %v580, 0
        %vm673 = vcmp.ne.s32.totalorder %v587, 0
        %vm674 = vcmp.ne.s32.totalorder %v594, 0
        %vm675 = vcmp.ne.s32.totalorder %v601, 0
        %vm676 = vcmp.ne.s32.totalorder %v608, 0
        %vm677 = vcmp.ne.s32.totalorder %v615, 0
        %vm678 = vcmp.ne.s32.totalorder %v622, 0
        %vm679 = vcmp.ne.s32.totalorder %v629, 0
        %vm680 = vcmp.ne.s32.totalorder %v636, 0
        %vm681 = vcmp.ne.s32.totalorder %v643, 0
        %vm682 = vcmp.ne.s32.totalorder %v650, 0
        %vm683 = vcmp.lt.s32.totalorder %v433, 0
        %vm684 = vcmp.lt.s32.totalorder %v440, 0
        %vm685 = vcmp.lt.s32.totalorder %v447, 0
        %vm686 = vcmp.lt.s32.totalorder %v454, 0
        %vm687 = vcmp.lt.s32.totalorder %v461, 0
        %vm688 = vcmp.lt.s32.totalorder %v468, 0
        %vm689 = vcmp.lt.s32.totalorder %v475, 0
        %vm690 = vcmp.lt.s32.totalorder %v482, 0
        %vm691 = vcmp.lt.s32.totalorder %v489, 0
        %vm692 = vcmp.lt.s32.totalorder %v496, 0
        %vm693 = vcmp.lt.s32.totalorder %v503, 0
        %vm694 = vcmp.lt.s32.totalorder %v510, 0
        %vm695 = vcmp.lt.s32.totalorder %v517, 0
        %vm696 = vcmp.lt.s32.totalorder %v524, 0
        %vm697 = vcmp.lt.s32.totalorder %v531, 0
        %vm698 = vcmp.lt.s32.totalorder %v538, 0
        %vm699 = vcmp.lt.s32.totalorder %v545, 0
        %vm700 = vcmp.lt.s32.totalorder %v552, 0
        %vm701 = vcmp.lt.s32.totalorder %v559, 0
        %vm702 = vcmp.lt.s32.totalorder %v566, 0
        %vm703 = vcmp.lt.s32.totalorder %v573, 0
        %vm704 = vcmp.lt.s32.totalorder %v580, 0
        %vm705 = vcmp.lt.s32.totalorder %v587, 0
        %vm706 = vcmp.lt.s32.totalorder %v594, 0
        %vm707 = vcmp.lt.s32.totalorder %v601, 0
        %vm708 = vcmp.lt.s32.totalorder %v608, 0
        %vm709 = vcmp.lt.s32.totalorder %v615, 0
        %vm710 = vcmp.lt.s32.totalorder %v622, 0
        %vm711 = vcmp.lt.s32.totalorder %v629, 0
        %vm712 = vcmp.lt.s32.totalorder %v636, 0
        %vm713 = vcmp.lt.s32.totalorder %v643, 0
        %vm714 = vcmp.lt.s32.totalorder %v650, 0
        %vm715 = vmand %vm683, %vm651
        %vm716 = vmand %vm684, %vm652
        %vm717 = vmand %vm685, %vm653
        %vm718 = vmand %vm686, %vm654
        %vm719 = vmand %vm687, %vm655
        %vm720 = vmand %vm688, %vm656
        %vm721 = vmand %vm689, %vm657
        %vm722 = vmand %vm690, %vm658
        %vm723 = vmand %vm691, %vm659
        %vm724 = vmand %vm692, %vm660
        %vm725 = vmand %vm693, %vm661
        %vm726 = vmand %vm694, %vm662
        %vm727 = vmand %vm695, %vm663
        %vm728 = vmand %vm696, %vm664
        %vm729 = vmand %vm697, %vm665
        %vm730 = vmand %vm698, %vm666
        %vm731 = vmand %vm699, %vm667
        %vm732 = vmand %vm700, %vm668
        %vm733 = vmand %vm701, %vm669
        %vm734 = vmand %vm702, %vm670
        %vm735 = vmand %vm703, %vm671
        %vm736 = vmand %vm704, %vm672
        %vm737 = vmand %vm705, %vm673
        %vm738 = vmand %vm706, %vm674
        %vm739 = vmand %vm707, %vm675
        %vm740 = vmand %vm708, %vm676
        %vm741 = vmand %vm709, %vm677
        %vm742 = vmand %vm710, %vm678
        %vm743 = vmand %vm711, %vm679
        %vm744 = vmand %vm712, %vm680
        %vm745 = vmand %vm713, %vm681
        %vm746 = vmand %vm714, %vm682
        %v747 = vadd.s32 %v433, 16
        %v748 = vadd.s32 %v440, 16
        %v749 = vadd.s32 %v447, 16
        %v750 = vadd.s32 %v454, 16
        %v751 = vadd.s32 %v461, 16
        %v752 = vadd.s32 %v468, 16
        %v753 = vadd.s32 %v475, 16
        %v754 = vadd.s32 %v482, 16
        %v755 = vadd.s32 %v489, 16
        %v756 = vadd.s32 %v496, 16
        %v757 = vadd.s32 %v503, 16
        %v758 = vadd.s32 %v510, 16
        %v759 = vadd.s32 %v517, 16
        %v760 = vadd.s32 %v524, 16
        %v761 = vadd.s32 %v531, 16
        %v762 = vadd.s32 %v538, 16
        %v763 = vadd.s32 %v545, 16
        %v764 = vadd.s32 %v552, 16
        %v765 = vadd.s32 %v559, 16
        %v766 = vadd.s32 %v566, 16
        %v767 = vadd.s32 %v573, 16
        %v768 = vadd.s32 %v580, 16
        %v769 = vadd.s32 %v587, 16
        %v770 = vadd.s32 %v594, 16
        %v771 = vadd.s32 %v601, 16
        %v772 = vadd.s32 %v608, 16
        %v773 = vadd.s32 %v615, 16
        %v774 = vadd.s32 %v622, 16
        %v775 = vadd.s32 %v629, 16
        %v776 = vadd.s32 %v636, 16
        %v777 = vadd.s32 %v643, 16
        %v778 = vadd.s32 %v650, 16
        %v779 = vsel %vm715, %v747, %v433
        %v780 = vsel %vm716, %v748, %v440
        %v781 = vsel %vm717, %v749, %v447
        %v782 = vsel %vm718, %v750, %v454
        %v783 = vsel %vm719, %v751, %v461
        %v784 = vsel %vm720, %v752, %v468
        %v785 = vsel %vm721, %v753, %v475
        %v786 = vsel %vm722, %v754, %v482
        %v787 = vsel %vm723, %v755, %v489
        %v788 = vsel %vm724, %v756, %v496
        %v789 = vsel %vm725, %v757, %v503
        %v790 = vsel %vm726, %v758, %v510
        %v791 = vsel %vm727, %v759, %v517
        %v792 = vsel %vm728, %v760, %v524
        %v793 = vsel %vm729, %v761, %v531
        %v794 = vsel %vm730, %v762, %v538
        %v795 = vsel %vm731, %v763, %v545
        %v796 = vsel %vm732, %v764, %v552
        %v797 = vsel %vm733, %v765, %v559
        %v798 = vsel %vm734, %v766, %v566
        %v799 = vsel %vm735, %v767, %v573
        %v800 = vsel %vm736, %v768, %v580
        %v801 = vsel %vm737, %v769, %v587
        %v802 = vsel %vm738, %v770, %v594
        %v803 = vsel %vm739, %v771, %v601
        %v804 = vsel %vm740, %v772, %v608
        %v805 = vsel %vm741, %v773, %v615
        %v806 = vsel %vm742, %v774, %v622
        %v807 = vsel %vm743, %v775, %v629
        %v808 = vsel %vm744, %v776, %v636
        %v809 = vsel %vm745, %v777, %v643
        %v810 = vsel %vm746, %v778, %v650
        %vm811 = vcmp.ne.s32.totalorder %v779, 0
        %vm812 = vcmp.ne.s32.totalorder %v780, 0
        %vm813 = vcmp.ne.s32.totalorder %v781, 0
        %vm814 = vcmp.ne.s32.totalorder %v782, 0
        %vm815 = vcmp.ne.s32.totalorder %v783, 0
        %vm816 = vcmp.ne.s32.totalorder %v784, 0
        %vm817 = vcmp.ne.s32.totalorder %v785, 0
        %vm818 = vcmp.ne.s32.totalorder %v786, 0
        %vm819 = vcmp.ne.s32.totalorder %v787, 0
        %vm820 = vcmp.ne.s32.totalorder %v788, 0
        %vm821 = vcmp.ne.s32.totalorder %v789, 0
        %vm822 = vcmp.ne.s32.totalorder %v790, 0
        %vm823 = vcmp.ne.s32.totalorder %v791, 0
        %vm824 = vcmp.ne.s32.totalorder %v792, 0
        %vm825 = vcmp.ne.s32.totalorder %v793, 0
        %vm826 = vcmp.ne.s32.totalorder %v794, 0
        %vm827 = vcmp.ne.s32.totalorder %v795, 0
        %vm828 = vcmp.ne.s32.totalorder %v796, 0
        %vm829 = vcmp.ne.s32.totalorder %v797, 0
        %vm830 = vcmp.ne.s32.totalorder %v798, 0
        %vm831 = vcmp.ne.s32.totalorder %v799, 0
        %vm832 = vcmp.ne.s32.totalorder %v800, 0
        %vm833 = vcmp.ne.s32.totalorder %v801, 0
        %vm834 = vcmp.ne.s32.totalorder %v802, 0
        %vm835 = vcmp.ne.s32.totalorder %v803, 0
        %vm836 = vcmp.ne.s32.totalorder %v804, 0
        %vm837 = vcmp.ne.s32.totalorder %v805, 0
        %vm838 = vcmp.ne.s32.totalorder %v806, 0
        %vm839 = vcmp.ne.s32.totalorder %v807, 0
        %vm840 = vcmp.ne.s32.totalorder %v808, 0
        %vm841 = vcmp.ne.s32.totalorder %v809, 0
        %vm842 = vcmp.ne.s32.totalorder %v810, 0
        %vm843 = vcmp.ne.s32.totalorder %v779, 15
        %vm844 = vcmp.ne.s32.totalorder %v780, 15
        %vm845 = vcmp.ne.s32.totalorder %v781, 15
        %vm846 = vcmp.ne.s32.totalorder %v782, 15
        %vm847 = vcmp.ne.s32.totalorder %v783, 15
        %vm848 = vcmp.ne.s32.totalorder %v784, 15
        %vm849 = vcmp.ne.s32.totalorder %v785, 15
        %vm850 = vcmp.ne.s32.totalorder %v786, 15
        %vm851 = vcmp.ne.s32.totalorder %v787, 15
        %vm852 = vcmp.ne.s32.totalorder %v788, 15
        %vm853 = vcmp.ne.s32.totalorder %v789, 15
        %vm854 = vcmp.ne.s32.totalorder %v790, 15
        %vm855 = vcmp.ne.s32.totalorder %v791, 15
        %vm856 = vcmp.ne.s32.totalorder %v792, 15
        %vm857 = vcmp.ne.s32.totalorder %v793, 15
        %vm858 = vcmp.ne.s32.totalorder %v794, 15
        %vm859 = vcmp.ne.s32.totalorder %v795, 15
        %vm860 = vcmp.ne.s32.totalorder %v796, 15
        %vm861 = vcmp.ne.s32.totalorder %v797, 15
        %vm862 = vcmp.ne.s32.totalorder %v798, 15
        %vm863 = vcmp.ne.s32.totalorder %v799, 15
        %vm864 = vcmp.ne.s32.totalorder %v800, 15
        %vm865 = vcmp.ne.s32.totalorder %v801, 15
        %vm866 = vcmp.ne.s32.totalorder %v802, 15
        %vm867 = vcmp.ne.s32.totalorder %v803, 15
        %vm868 = vcmp.ne.s32.totalorder %v804, 15
        %vm869 = vcmp.ne.s32.totalorder %v805, 15
        %vm870 = vcmp.ne.s32.totalorder %v806, 15
        %vm871 = vcmp.ne.s32.totalorder %v807, 15
        %vm872 = vcmp.ne.s32.totalorder %v808, 15
        %vm873 = vcmp.ne.s32.totalorder %v809, 15
        %vm874 = vcmp.ne.s32.totalorder %v810, 15
        %v875 = vld [vmem:[%s2] sm:$0xff]
        %v876 = vld [vmem:[%s2 + $0x8] sm:$0xff]
        %v877 = vld [vmem:[%s2 + $0x10] sm:$0xff]
        %v878 = vld [vmem:[%s2 + $0x18] sm:$0xff]
        %v879 = vld [vmem:[%s2 + $0x20] sm:$0xff]
        %v880 = vld [vmem:[%s2 + $0x28] sm:$0xff]
        %v881 = vld [vmem:[%s2 + $0x30] sm:$0xff]
        %v882 = vld [vmem:[%s2 + $0x38] sm:$0xff]
        %v915 = vunpack.c.l.b16 %v362
        %v916 = vunpack.c.l.b16 %v363
        %v917 = vunpack.c.l.b16 %v364
        %v918 = vunpack.c.l.b16 %v365
        %v919 = vunpack.c.l.b16 %v366
        %v920 = vunpack.c.l.b16 %v367
        %v921 = vunpack.c.l.b16 %v368
        %v922 = vunpack.c.l.b16 %v369
        %v923 = vunpack.c.l.b16 %v370
        %v924 = vunpack.c.l.b16 %v371
        %v925 = vunpack.c.l.b16 %v372
        %v926 = vunpack.c.l.b16 %v373
        %v927 = vunpack.c.l.b16 %v374
        %v928 = vunpack.c.l.b16 %v375
        %v929 = vunpack.c.l.b16 %v376
        %v930 = vunpack.c.l.b16 %v377
        %v931 = vunpack.c.l.b16 %v378
        %v932 = vunpack.c.l.b16 %v379
        %v933 = vunpack.c.l.b16 %v380
        %v934 = vunpack.c.l.b16 %v381
        %v935 = vunpack.c.l.b16 %v382
        %v936 = vunpack.c.l.b16 %v383
        %v937 = vunpack.c.l.b16 %v384
        %v938 = vunpack.c.l.b16 %v385
        %v939 = vunpack.c.l.b16 %v386
        %v940 = vunpack.c.l.b16 %v387
        %v941 = vunpack.c.l.b16 %v388
        %v942 = vunpack.c.l.b16 %v389
        %v943 = vunpack.c.l.b16 %v390
        %v944 = vunpack.c.l.b16 %v391
        %v945 = vunpack.c.l.b16 %v392
        %v946 = vunpack.c.l.b16 %v393
        %v947 = vpack.c.b16 %v916, %v915
        %v948 = vpack.c.b16 %v918, %v917
        %v949 = vpack.c.b16 %v920, %v919
        %v950 = vpack.c.b16 %v922, %v921
        %v951 = vpack.c.b16 %v924, %v923
        %v952 = vpack.c.b16 %v926, %v925
        %v953 = vpack.c.b16 %v928, %v927
        %v954 = vpack.c.b16 %v930, %v929
        %v955 = vpack.c.b16 %v932, %v931
        %v956 = vpack.c.b16 %v934, %v933
        %v957 = vpack.c.b16 %v936, %v935
        %v958 = vpack.c.b16 %v938, %v937
        %v959 = vpack.c.b16 %v940, %v939
        %v960 = vpack.c.b16 %v942, %v941
        %v961 = vpack.c.b16 %v944, %v943
        %v962 = vpack.c.b16 %v946, %v945
        %v971 = vunpack.c.l.b16 %v875
        %v972 = vunpack.c.h.b16 %v875
        %v973 = vunpack.c.l.b16 %v876
        %v974 = vunpack.c.h.b16 %v876
        %v975 = vunpack.c.l.b16 %v877
        %v976 = vunpack.c.h.b16 %v877
        %v977 = vunpack.c.l.b16 %v878
        %v978 = vunpack.c.h.b16 %v878
        %v979 = vunpack.c.l.b16 %v879
        %v980 = vunpack.c.h.b16 %v879
        %v981 = vunpack.c.l.b16 %v880
        %v982 = vunpack.c.h.b16 %v880
        %v983 = vunpack.c.l.b16 %v881
        %v984 = vunpack.c.h.b16 %v881
        %v985 = vunpack.c.l.b16 %v882
        %v986 = vunpack.c.h.b16 %v882
        %v987 = vpack.c.b16 %v973, %v971
        %v988 = vpack.c.b16 %v974, %v972
        %v989 = vpack.c.b16 %v977, %v975
        %v990 = vpack.c.b16 %v978, %v976
        %v991 = vpack.c.b16 %v981, %v979
        %v992 = vpack.c.b16 %v982, %v980
        %v993 = vpack.c.b16 %v985, %v983
        %v994 = vpack.c.b16 %v986, %v984
        %vm1003 = vcmask 523264
        %v1005 = vsel %vm1003, %v947, 0
        %v1008 = vsel %vm1003, %v948, 0
        %v1011 = vsel %vm1003, %v949, 0
        %v1014 = vsel %vm1003, %v950, 0
        %v1017 = vsel %vm1003, %v951, 0
        %v1020 = vsel %vm1003, %v952, 0
        %v1023 = vsel %vm1003, %v953, 0
        %v1026 = vsel %vm1003, %v954, 0
        %v1029 = vsel %vm1003, %v955, 0
        %v1032 = vsel %vm1003, %v956, 0
        %v1035 = vsel %vm1003, %v957, 0
        %v1038 = vsel %vm1003, %v958, 0
        %v1041 = vsel %vm1003, %v959, 0
        %v1044 = vsel %vm1003, %v960, 0
        %v1047 = vsel %vm1003, %v961, 0
        %v1050 = vsel %vm1003, %v962, 0
        %1052 = vmatprep.subr.bf16.mxu0 %v988
        %1053 = vmatpush1.bf16.msra.mxu0 %v987
        %1054 = vmatprep.subr.bf16.mxu0 %v990
        %1055 = vmatpush1.bf16.msra.mxu0 %v989
        %1056 = vmatprep.subr.bf16.mxu0 %v992
        %1057 = vmatpush1.bf16.msra.mxu0 %v991
        %1058 = vmatprep.subr.bf16.mxu0 %v994
        %1059 = vmatpush1.bf16.msra.mxu0 %v993
        %1060 = vmatprep.subr.bf16.mxu0 0
        %1061 = vmatpush1.bf16.msra.mxu0 0
        %1062 = vmatprep.subr.bf16.mxu0 0
        %1063 = vmatpush1.bf16.msra.mxu0 0
        %1064 = vmatprep.subr.bf16.mxu0 0
        %1065 = vmatpush1.bf16.msra.mxu0 0
        %1066 = vmatprep.subr.bf16.mxu0 0
        %1067 = vmatpush1.bf16.msra.mxu0 0
        %1068 = vmatprep.subr.bf16.mxu0 0
        %1069 = vmatpush1.bf16.msra.mxu0 0
        %1070 = vmatprep.subr.bf16.mxu0 0
        %1071 = vmatpush1.bf16.msra.mxu0 0
        %1072 = vmatprep.subr.bf16.mxu0 0
        %1073 = vmatpush1.bf16.msra.mxu0 0
        %1074 = vmatprep.subr.bf16.mxu0 0
        %1075 = vmatpush1.bf16.msra.mxu0 0
        %1076 = vmatprep.subr.bf16.mxu0 0
        %1077 = vmatpush1.bf16.msra.mxu0 0
        %1078 = vmatprep.subr.bf16.mxu0 0
        %1079 = vmatpush1.bf16.msra.mxu0 0
        %1080 = vmatprep.subr.bf16.mxu0 0
        %1081 = vmatpush1.bf16.msra.mxu0 0
        %1082 = vmatprep.subr.bf16.mxu0 0
        %1083 = vmatpush1.bf16.msra.mxu0 0
        %1084 = vmatprep.mubr.bf16.mxu0 0
        %1085 = vmatmul.mubr.bf16.gmra.mrb[0].mxu0 %v1005
        %v1086 = vpop.f32.mrb[0].mxu0
        %v1087 = vadd.f32 0.0, %v1086
        %v1088 = vpop.f32.mrb[0].mxu0
        %v1089 = vadd.f32 0.0, %v1088
        %v1090 = vpop.f32.mrb[0].mxu0
        %v1091 = vadd.f32 0.0, %v1090
        %v1092 = vpop.f32.mrb[0].mxu0
        %v1093 = vadd.f32 0.0, %v1092
        %1094 = vmatprep.mubr.bf16.mxu0 0
        %1095 = vmatmul.mubr.bf16.gmra.mrb[0].mxu0 %v1008
        %v1096 = vpop.f32.mrb[0].mxu0
        %v1097 = vadd.f32 0.0, %v1096
        %v1098 = vpop.f32.mrb[0].mxu0
        %v1099 = vadd.f32 0.0, %v1098
        %v1100 = vpop.f32.mrb[0].mxu0
        %v1101 = vadd.f32 0.0, %v1100
        %v1102 = vpop.f32.mrb[0].mxu0
        %v1103 = vadd.f32 0.0, %v1102
        %1104 = vmatprep.mubr.bf16.mxu0 0
        %1105 = vmatmul.mubr.bf16.gmra.mrb[0].mxu0 %v1011
        %v1106 = vpop.f32.mrb[0].mxu0
        %v1107 = vadd.f32 0.0, %v1106
        %v1108 = vpop.f32.mrb[0].mxu0
        %v1109 = vadd.f32 0.0, %v1108
        %v1110 = vpop.f32.mrb[0].mxu0
        %v1111 = vadd.f32 0.0, %v1110
        %v1112 = vpop.f32.mrb[0].mxu0
        %v1113 = vadd.f32 0.0, %v1112
        %1114 = vmatprep.mubr.bf16.mxu0 0
        %1115 = vmatmul.mubr.bf16.gmra.mrb[0].mxu0 %v1014
        %v1116 = vpop.f32.mrb[0].mxu0
        %v1117 = vadd.f32 0.0, %v1116
        %v1118 = vpop.f32.mrb[0].mxu0
        %v1119 = vadd.f32 0.0, %v1118
        %v1120 = vpop.f32.mrb[0].mxu0
        %v1121 = vadd.f32 0.0, %v1120
        %v1122 = vpop.f32.mrb[0].mxu0
        %v1123 = vadd.f32 0.0, %v1122
        %1124 = vmatprep.mubr.bf16.mxu0 0
        %1125 = vmatmul.mubr.bf16.gmra.mrb[0].mxu0 %v1017
        %v1126 = vpop.f32.mrb[0].mxu0
        %v1127 = vadd.f32 0.0, %v1126
        %v1128 = vpop.f32.mrb[0].mxu0
        %v1129 = vadd.f32 0.0, %v1128
        %v1130 = vpop.f32.mrb[0].mxu0
        %v1131 = vadd.f32 0.0, %v1130
        %v1132 = vpop.f32.mrb[0].mxu0
        %v1133 = vadd.f32 0.0, %v1132
        %1134 = vmatprep.mubr.bf16.mxu0 0
        %1135 = vmatmul.mubr.bf16.gmra.mrb[0].mxu0 %v1020
        %v1136 = vpop.f32.mrb[0].mxu0
        %v1137 = vadd.f32 0.0, %v1136
        %v1138 = vpop.f32.mrb[0].mxu0
        %v1139 = vadd.f32 0.0, %v1138
        %v1140 = vpop.f32.mrb[0].mxu0
        %v1141 = vadd.f32 0.0, %v1140
        %v1142 = vpop.f32.mrb[0].mxu0
        %v1143 = vadd.f32 0.0, %v1142
        %1144 = vmatprep.mubr.bf16.mxu0 0
        %1145 = vmatmul.mubr.bf16.gmra.mrb[0].mxu0 %v1023
        %v1146 = vpop.f32.mrb[0].mxu0
        %v1147 = vadd.f32 0.0, %v1146
        %v1148 = vpop.f32.mrb[0].mxu0
        %v1149 = vadd.f32 0.0, %v1148
        %v1150 = vpop.f32.mrb[0].mxu0
        %v1151 = vadd.f32 0.0, %v1150
        %v1152 = vpop.f32.mrb[0].mxu0
        %v1153 = vadd.f32 0.0, %v1152
        %1154 = vmatprep.mubr.bf16.mxu0 0
        %1155 = vmatmul.mubr.bf16.gmra.mrb[0].mxu0 %v1026
        %v1156 = vpop.f32.mrb[0].mxu0
        %v1157 = vadd.f32 0.0, %v1156
        %v1158 = vpop.f32.mrb[0].mxu0
        %v1159 = vadd.f32 0.0, %v1158
        %v1160 = vpop.f32.mrb[0].mxu0
        %v1161 = vadd.f32 0.0, %v1160
        %v1162 = vpop.f32.mrb[0].mxu0
        %v1163 = vadd.f32 0.0, %v1162
        %1164 = vmatprep.mubr.bf16.mxu0 0
        %1165 = vmatmul.mubr.bf16.gmra.mrb[0].mxu0 %v1029
        %v1166 = vpop.f32.mrb[0].mxu0
        %v1167 = vadd.f32 0.0, %v1166
        %v1168 = vpop.f32.mrb[0].mxu0
        %v1169 = vadd.f32 0.0, %v1168
        %v1170 = vpop.f32.mrb[0].mxu0
        %v1171 = vadd.f32 0.0, %v1170
        %v1172 = vpop.f32.mrb[0].mxu0
        %v1173 = vadd.f32 0.0, %v1172
        %1174 = vmatprep.mubr.bf16.mxu0 0
        %1175 = vmatmul.mubr.bf16.gmra.mrb[0].mxu0 %v1032
        %v1176 = vpop.f32.mrb[0].mxu0
        %v1177 = vadd.f32 0.0, %v1176
        %v1178 = vpop.f32.mrb[0].mxu0
        %v1179 = vadd.f32 0.0, %v1178
        %v1180 = vpop.f32.mrb[0].mxu0
        %v1181 = vadd.f32 0.0, %v1180
        %v1182 = vpop.f32.mrb[0].mxu0
        %v1183 = vadd.f32 0.0, %v1182
        %1184 = vmatprep.mubr.bf16.mxu0 0
        %1185 = vmatmul.mubr.bf16.gmra.mrb[0].mxu0 %v1035
        %v1186 = vpop.f32.mrb[0].mxu0
        %v1187 = vadd.f32 0.0, %v1186
        %v1188 = vpop.f32.mrb[0].mxu0
        %v1189 = vadd.f32 0.0, %v1188
        %v1190 = vpop.f32.mrb[0].mxu0
        %v1191 = vadd.f32 0.0, %v1190
        %v1192 = vpop.f32.mrb[0].mxu0
        %v1193 = vadd.f32 0.0, %v1192
        %1194 = vmatprep.mubr.bf16.mxu0 0
        %1195 = vmatmul.mubr.bf16.gmra.mrb[0].mxu0 %v1038
        %v1196 = vpop.f32.mrb[0].mxu0
        %v1197 = vadd.f32 0.0, %v1196
        %v1198 = vpop.f32.mrb[0].mxu0
        %v1199 = vadd.f32 0.0, %v1198
        %v1200 = vpop.f32.mrb[0].mxu0
        %v1201 = vadd.f32 0.0, %v1200
        %v1202 = vpop.f32.mrb[0].mxu0
        %v1203 = vadd.f32 0.0, %v1202
        %1204 = vmatprep.mubr.bf16.mxu0 0
        %1205 = vmatmul.mubr.bf16.gmra.mrb[0].mxu0 %v1041
        %v1206 = vpop.f32.mrb[0].mxu0
        %v1207 = vadd.f32 0.0, %v1206
        %v1208 = vpop.f32.mrb[0].mxu0
        %v1209 = vadd.f32 0.0, %v1208
        %v1210 = vpop.f32.mrb[0].mxu0
        %v1211 = vadd.f32 0.0, %v1210
        %v1212 = vpop.f32.mrb[0].mxu0
        %v1213 = vadd.f32 0.0, %v1212
        %1214 = vmatprep.mubr.bf16.mxu0 0
        %1215 = vmatmul.mubr.bf16.gmra.mrb[0].mxu0 %v1044
        %v1216 = vpop.f32.mrb[0].mxu0
        %v1217 = vadd.f32 0.0, %v1216
        %v1218 = vpop.f32.mrb[0].mxu0
        %v1219 = vadd.f32 0.0, %v1218
        %v1220 = vpop.f32.mrb[0].mxu0
        %v1221 = vadd.f32 0.0, %v1220
        %v1222 = vpop.f32.mrb[0].mxu0
        %v1223 = vadd.f32 0.0, %v1222
        %1224 = vmatprep.mubr.bf16.mxu0 0
        %1225 = vmatmul.mubr.bf16.gmra.mrb[0].mxu0 %v1047
        %v1226 = vpop.f32.mrb[0].mxu0
        %v1227 = vadd.f32 0.0, %v1226
        %v1228 = vpop.f32.mrb[0].mxu0
        %v1229 = vadd.f32 0.0, %v1228
        %v1230 = vpop.f32.mrb[0].mxu0
        %v1231 = vadd.f32 0.0, %v1230
        %v1232 = vpop.f32.mrb[0].mxu0
        %v1233 = vadd.f32 0.0, %v1232
        %1234 = vmatprep.mubr.bf16.mxu0 0
        %1235 = vmatmul.mubr.bf16.gmra.mrb[0].mxu0 %v1050
        %v1236 = vpop.f32.mrb[0].mxu0
        %v1237 = vadd.f32 0.0, %v1236
        %v1238 = vpop.f32.mrb[0].mxu0
        %v1239 = vadd.f32 0.0, %v1238
        %v1240 = vpop.f32.mrb[0].mxu0
        %v1241 = vadd.f32 0.0, %v1240
        %v1242 = vpop.f32.mrb[0].mxu0
        %v1243 = vadd.f32 0.0, %v1242
        %1244 = vdwg.mxu0
        %v1245 = vld [vmem:[%s1] sm:$0xf]
        %v1246 = vld [vmem:[%s1 + $0x4] sm:$0xf]
        %v1247 = vld [vmem:[%s1 + $0x8] sm:$0xf]
        %v1248 = vld [vmem:[%s1 + $0xc] sm:$0xf]
        %v1249 = vld [vmem:[%s1 + $0x10] sm:$0xf]
        %v1250 = vld [vmem:[%s1 + $0x14] sm:$0xf]
        %v1251 = vld [vmem:[%s1 + $0x18] sm:$0xf]
        %v1252 = vld [vmem:[%s1 + $0x1c] sm:$0xf]
        %v1261 = vunpack.c.l.b16 %v1245
        %v1262 = vunpack.c.l.b16 %v1246
        %v1263 = vunpack.c.l.b16 %v1247
        %v1264 = vunpack.c.l.b16 %v1248
        %v1265 = vunpack.c.l.b16 %v1249
        %v1266 = vunpack.c.l.b16 %v1250
        %v1267 = vunpack.c.l.b16 %v1251
        %v1268 = vunpack.c.l.b16 %v1252
        %v1269 = vpack.c.b16 %v1262, %v1261
        %v1270 = vpack.c.b16 %v1264, %v1263
        %v1271 = vpack.c.b16 %v1266, %v1265
        %v1272 = vpack.c.b16 %v1268, %v1267
        %1277 = vmatprep.subr.bf16.mxu0 0
        %1278 = vmatpush1.bf16.msra.mxu0 %v1269
        %1279 = vmatprep.subr.bf16.mxu0 0
        %1280 = vmatpush1.bf16.msra.mxu0 %v1270
        %1281 = vmatprep.subr.bf16.mxu0 0
        %1282 = vmatpush1.bf16.msra.mxu0 %v1271
        %1283 = vmatprep.subr.bf16.mxu0 0
        %1284 = vmatpush1.bf16.msra.mxu0 %v1272
        %1285 = vmatprep.subr.bf16.mxu0 0
        %1286 = vmatpush1.bf16.msra.mxu0 0
        %1287 = vmatprep.subr.bf16.mxu0 0
        %1288 = vmatpush1.bf16.msra.mxu0 0
        %1289 = vmatprep.subr.bf16.mxu0 0
        %1290 = vmatpush1.bf16.msra.mxu0 0
        %1291 = vmatprep.subr.bf16.mxu0 0
        %1292 = vmatpush1.bf16.msra.mxu0 0
        %1293 = vmatprep.subr.bf16.mxu0 0
        %1294 = vmatpush1.bf16.msra.mxu0 0
        %1295 = vmatprep.subr.bf16.mxu0 0
        %1296 = vmatpush1.bf16.msra.mxu0 0
        %1297 = vmatprep.subr.bf16.mxu0 0
        %1298 = vmatpush1.bf16.msra.mxu0 0
        %1299 = vmatprep.subr.bf16.mxu0 0
        %1300 = vmatpush1.bf16.msra.mxu0 0
        %1301 = vmatprep.subr.bf16.mxu0 0
        %1302 = vmatpush1.bf16.msra.mxu0 0
        %1303 = vmatprep.subr.bf16.mxu0 0
        %1304 = vmatpush1.bf16.msra.mxu0 0
        %1305 = vmatprep.subr.bf16.mxu0 0
        %1306 = vmatpush1.bf16.msra.mxu0 0
        %1307 = vmatprep.subr.bf16.mxu0 0
        %1308 = vmatpush1.bf16.msra.mxu0 0
        %1309 = vmatprep.mubr.bf16.mxu0 0
        %1310 = vmatmul.mubr.bf16.gmra.mrb[0].mxu0 %v1005
        %v1311 = vpop.f32.mrb[0].mxu0
        %v1312 = vadd.f32 0.0, %v1311
        %v1313 = vpop.f32.mrb[0].mxu0
        %v1314 = vpop.f32.mrb[0].mxu0
        %v1315 = vadd.f32 0.0, %v1314
        %v1316 = vpop.f32.mrb[0].mxu0
        %1317 = vmatprep.mubr.bf16.mxu0 0
        %1318 = vmatmul.mubr.bf16.gmra.mrb[0].mxu0 %v1008
        %v1319 = vpop.f32.mrb[0].mxu0
        %v1320 = vadd.f32 0.0, %v1319
        %v1321 = vpop.f32.mrb[0].mxu0
        %v1322 = vpop.f32.mrb[0].mxu0
        %v1323 = vadd.f32 0.0, %v1322
        %v1324 = vpop.f32.mrb[0].mxu0
        %1325 = vmatprep.mubr.bf16.mxu0 0
        %1326 = vmatmul.mubr.bf16.gmra.mrb[0].mxu0 %v1011
        %v1327 = vpop.f32.mrb[0].mxu0
        %v1328 = vadd.f32 0.0, %v1327
        %v1329 = vpop.f32.mrb[0].mxu0
        %v1330 = vpop.f32.mrb[0].mxu0
        %v1331 = vadd.f32 0.0, %v1330
        %v1332 = vpop.f32.mrb[0].mxu0
        %1333 = vmatprep.mubr.bf16.mxu0 0
        %1334 = vmatmul.mubr.bf16.gmra.mrb[0].mxu0 %v1014
        %v1335 = vpop.f32.mrb[0].mxu0
        %v1336 = vadd.f32 0.0, %v1335
        %v1337 = vpop.f32.mrb[0].mxu0
        %v1338 = vpop.f32.mrb[0].mxu0
        %v1339 = vadd.f32 0.0, %v1338
        %v1340 = vpop.f32.mrb[0].mxu0
        %1341 = vmatprep.mubr.bf16.mxu0 0
        %1342 = vmatmul.mubr.bf16.gmra.mrb[0].mxu0 %v1017
        %v1343 = vpop.f32.mrb[0].mxu0
        %v1344 = vadd.f32 0.0, %v1343
        %v1345 = vpop.f32.mrb[0].mxu0
        %v1346 = vpop.f32.mrb[0].mxu0
        %v1347 = vadd.f32 0.0, %v1346
        %v1348 = vpop.f32.mrb[0].mxu0
        %1349 = vmatprep.mubr.bf16.mxu0 0
        %1350 = vmatmul.mubr.bf16.gmra.mrb[0].mxu0 %v1020
        %v1351 = vpop.f32.mrb[0].mxu0
        %v1352 = vadd.f32 0.0, %v1351
        %v1353 = vpop.f32.mrb[0].mxu0
        %v1354 = vpop.f32.mrb[0].mxu0
        %v1355 = vadd.f32 0.0, %v1354
        %v1356 = vpop.f32.mrb[0].mxu0
        %1357 = vmatprep.mubr.bf16.mxu0 0
        %1358 = vmatmul.mubr.bf16.gmra.mrb[0].mxu0 %v1023
        %v1359 = vpop.f32.mrb[0].mxu0
        %v1360 = vadd.f32 0.0, %v1359
        %v1361 = vpop.f32.mrb[0].mxu0
        %v1362 = vpop.f32.mrb[0].mxu0
        %v1363 = vadd.f32 0.0, %v1362
        %v1364 = vpop.f32.mrb[0].mxu0
        %1365 = vmatprep.mubr.bf16.mxu0 0
        %1366 = vmatmul.mubr.bf16.gmra.mrb[0].mxu0 %v1026
        %v1367 = vpop.f32.mrb[0].mxu0
        %v1368 = vadd.f32 0.0, %v1367
        %v1369 = vpop.f32.mrb[0].mxu0
        %v1370 = vpop.f32.mrb[0].mxu0
        %v1371 = vadd.f32 0.0, %v1370
        %v1372 = vpop.f32.mrb[0].mxu0
        %1373 = vmatprep.mubr.bf16.mxu0 0
        %1374 = vmatmul.mubr.bf16.gmra.mrb[0].mxu0 %v1029
        %v1375 = vpop.f32.mrb[0].mxu0
        %v1376 = vadd.f32 0.0, %v1375
        %v1377 = vpop.f32.mrb[0].mxu0
        %v1378 = vpop.f32.mrb[0].mxu0
        %v1379 = vadd.f32 0.0, %v1378
        %v1380 = vpop.f32.mrb[0].mxu0
        %1381 = vmatprep.mubr.bf16.mxu0 0
        %1382 = vmatmul.mubr.bf16.gmra.mrb[0].mxu0 %v1032
        %v1383 = vpop.f32.mrb[0].mxu0
        %v1384 = vadd.f32 0.0, %v1383
        %v1385 = vpop.f32.mrb[0].mxu0
        %v1386 = vpop.f32.mrb[0].mxu0
        %v1387 = vadd.f32 0.0, %v1386
        %v1388 = vpop.f32.mrb[0].mxu0
        %1389 = vmatprep.mubr.bf16.mxu0 0
        %1390 = vmatmul.mubr.bf16.gmra.mrb[0].mxu0 %v1035
        %v1391 = vpop.f32.mrb[0].mxu0
        %v1392 = vadd.f32 0.0, %v1391
        %v1393 = vpop.f32.mrb[0].mxu0
        %v1394 = vpop.f32.mrb[0].mxu0
        %v1395 = vadd.f32 0.0, %v1394
        %v1396 = vpop.f32.mrb[0].mxu0
        %1397 = vmatprep.mubr.bf16.mxu0 0
        %1398 = vmatmul.mubr.bf16.gmra.mrb[0].mxu0 %v1038
        %v1399 = vpop.f32.mrb[0].mxu0
        %v1400 = vadd.f32 0.0, %v1399
        %v1401 = vpop.f32.mrb[0].mxu0
        %v1402 = vpop.f32.mrb[0].mxu0
        %v1403 = vadd.f32 0.0, %v1402
        %v1404 = vpop.f32.mrb[0].mxu0
        %1405 = vmatprep.mubr.bf16.mxu0 0
        %1406 = vmatmul.mubr.bf16.gmra.mrb[0].mxu0 %v1041
        %v1407 = vpop.f32.mrb[0].mxu0
        %v1408 = vadd.f32 0.0, %v1407
        %v1409 = vpop.f32.mrb[0].mxu0
        %v1410 = vpop.f32.mrb[0].mxu0
        %v1411 = vadd.f32 0.0, %v1410
        %v1412 = vpop.f32.mrb[0].mxu0
        %1413 = vmatprep.mubr.bf16.mxu0 0
        %1414 = vmatmul.mubr.bf16.gmra.mrb[0].mxu0 %v1044
        %v1415 = vpop.f32.mrb[0].mxu0
        %v1416 = vadd.f32 0.0, %v1415
        %v1417 = vpop.f32.mrb[0].mxu0
        %v1418 = vpop.f32.mrb[0].mxu0
        %v1419 = vadd.f32 0.0, %v1418
        %v1420 = vpop.f32.mrb[0].mxu0
        %1421 = vmatprep.mubr.bf16.mxu0 0
        %1422 = vmatmul.mubr.bf16.gmra.mrb[0].mxu0 %v1047
        %v1423 = vpop.f32.mrb[0].mxu0
        %v1424 = vadd.f32 0.0, %v1423
        %v1425 = vpop.f32.mrb[0].mxu0
        %v1426 = vpop.f32.mrb[0].mxu0
        %v1427 = vadd.f32 0.0, %v1426
        %v1428 = vpop.f32.mrb[0].mxu0
        %1429 = vmatprep.mubr.bf16.mxu0 0
        %1430 = vmatmul.mubr.bf16.gmra.mrb[0].mxu0 %v1050
        %v1431 = vpop.f32.mrb[0].mxu0
        %v1432 = vadd.f32 0.0, %v1431
        %v1433 = vpop.f32.mrb[0].mxu0
        %v1434 = vpop.f32.mrb[0].mxu0
        %v1435 = vadd.f32 0.0, %v1434
        %v1436 = vpop.f32.mrb[0].mxu0
        %1437 = vdwg.mxu0
        %v1438 = vld [vmem:[%s3] sm:$0xf]
        %v1439 = vld [vmem:[%s3 + $0x4] sm:$0xf]
        %v1440 = vld [vmem:[%s3 + $0x8] sm:$0xf]
        %v1441 = vld [vmem:[%s3 + $0xc] sm:$0xf]
        %v1442 = vld [vmem:[%s3 + $0x10] sm:$0xf]
        %v1443 = vld [vmem:[%s3 + $0x14] sm:$0xf]
        %v1444 = vld [vmem:[%s3 + $0x18] sm:$0xf]
        %v1445 = vld [vmem:[%s3 + $0x1c] sm:$0xf]
        %v1454 = vunpack.c.l.b16 %v1438
        %v1455 = vunpack.c.l.b16 %v1439
        %v1456 = vunpack.c.l.b16 %v1440
        %v1457 = vunpack.c.l.b16 %v1441
        %v1458 = vunpack.c.l.b16 %v1442
        %v1459 = vunpack.c.l.b16 %v1443
        %v1460 = vunpack.c.l.b16 %v1444
        %v1461 = vunpack.c.l.b16 %v1445
        %v1462 = vpack.c.b16 %v1455, %v1454
        %v1463 = vpack.c.b16 %v1457, %v1456
        %v1464 = vpack.c.b16 %v1459, %v1458
        %v1465 = vpack.c.b16 %v1461, %v1460
        %1470 = vmatprep.subr.bf16.mxu0 0
        %1471 = vmatpush1.bf16.msra.mxu0 %v1462
        %1472 = vmatprep.subr.bf16.mxu0 0
        %1473 = vmatpush1.bf16.msra.mxu0 %v1463
        %1474 = vmatprep.subr.bf16.mxu0 0
        %1475 = vmatpush1.bf16.msra.mxu0 %v1464
        %1476 = vmatprep.subr.bf16.mxu0 0
        %1477 = vmatpush1.bf16.msra.mxu0 %v1465
        %1478 = vmatprep.subr.bf16.mxu0 0
        %1479 = vmatpush1.bf16.msra.mxu0 0
        %1480 = vmatprep.subr.bf16.mxu0 0
        %1481 = vmatpush1.bf16.msra.mxu0 0
        %1482 = vmatprep.subr.bf16.mxu0 0
        %1483 = vmatpush1.bf16.msra.mxu0 0
        %1484 = vmatprep.subr.bf16.mxu0 0
        %1485 = vmatpush1.bf16.msra.mxu0 0
        %1486 = vmatprep.subr.bf16.mxu0 0
        %1487 = vmatpush1.bf16.msra.mxu0 0
        %1488 = vmatprep.subr.bf16.mxu0 0
        %1489 = vmatpush1.bf16.msra.mxu0 0
        %1490 = vmatprep.subr.bf16.mxu0 0
        %1491 = vmatpush1.bf16.msra.mxu0 0
        %1492 = vmatprep.subr.bf16.mxu0 0
        %1493 = vmatpush1.bf16.msra.mxu0 0
        %1494 = vmatprep.subr.bf16.mxu0 0
        %1495 = vmatpush1.bf16.msra.mxu0 0
        %1496 = vmatprep.subr.bf16.mxu0 0
        %1497 = vmatpush1.bf16.msra.mxu0 0
        %1498 = vmatprep.subr.bf16.mxu0 0
        %1499 = vmatpush1.bf16.msra.mxu0 0
        %1500 = vmatprep.subr.bf16.mxu0 0
        %1501 = vmatpush1.bf16.msra.mxu0 0
        %1502 = vmatprep.mubr.bf16.mxu0 0
        %1503 = vmatmul.mubr.bf16.gmra.mrb[0].mxu0 %v1005
        %v1504 = vpop.f32.mrb[0].mxu0
        %v1505 = vadd.f32 0.0, %v1504
        %v1506 = vpop.f32.mrb[0].mxu0
        %v1507 = vpop.f32.mrb[0].mxu0
        %v1508 = vadd.f32 0.0, %v1507
        %v1509 = vpop.f32.mrb[0].mxu0
        %1510 = vmatprep.mubr.bf16.mxu0 0
        %1511 = vmatmul.mubr.bf16.gmra.mrb[0].mxu0 %v1008
        %v1512 = vpop.f32.mrb[0].mxu0
        %v1513 = vadd.f32 0.0, %v1512
        %v1514 = vpop.f32.mrb[0].mxu0
        %v1515 = vpop.f32.mrb[0].mxu0
        %v1516 = vadd.f32 0.0, %v1515
        %v1517 = vpop.f32.mrb[0].mxu0
        %1518 = vmatprep.mubr.bf16.mxu0 0
        %1519 = vmatmul.mubr.bf16.gmra.mrb[0].mxu0 %v1011
        %v1520 = vpop.f32.mrb[0].mxu0
        %v1521 = vadd.f32 0.0, %v1520
        %v1522 = vpop.f32.mrb[0].mxu0
        %v1523 = vpop.f32.mrb[0].mxu0
        %v1524 = vadd.f32 0.0, %v1523
        %v1525 = vpop.f32.mrb[0].mxu0
        %1526 = vmatprep.mubr.bf16.mxu0 0
        %1527 = vmatmul.mubr.bf16.gmra.mrb[0].mxu0 %v1014
        %v1528 = vpop.f32.mrb[0].mxu0
        %v1529 = vadd.f32 0.0, %v1528
        %v1530 = vpop.f32.mrb[0].mxu0
        %v1531 = vpop.f32.mrb[0].mxu0
        %v1532 = vadd.f32 0.0, %v1531
        %v1533 = vpop.f32.mrb[0].mxu0
        %1534 = vmatprep.mubr.bf16.mxu0 0
        %1535 = vmatmul.mubr.bf16.gmra.mrb[0].mxu0 %v1017
        %v1536 = vpop.f32.mrb[0].mxu0
        %v1537 = vadd.f32 0.0, %v1536
        %v1538 = vpop.f32.mrb[0].mxu0
        %v1539 = vpop.f32.mrb[0].mxu0
        %v1540 = vadd.f32 0.0, %v1539
        %v1541 = vpop.f32.mrb[0].mxu0
        %1542 = vmatprep.mubr.bf16.mxu0 0
        %1543 = vmatmul.mubr.bf16.gmra.mrb[0].mxu0 %v1020
        %v1544 = vpop.f32.mrb[0].mxu0
        %v1545 = vadd.f32 0.0, %v1544
        %v1546 = vpop.f32.mrb[0].mxu0
        %v1547 = vpop.f32.mrb[0].mxu0
        %v1548 = vadd.f32 0.0, %v1547
        %v1549 = vpop.f32.mrb[0].mxu0
        %1550 = vmatprep.mubr.bf16.mxu0 0
        %1551 = vmatmul.mubr.bf16.gmra.mrb[0].mxu0 %v1023
        %v1552 = vpop.f32.mrb[0].mxu0
        %v1553 = vadd.f32 0.0, %v1552
        %v1554 = vpop.f32.mrb[0].mxu0
        %v1555 = vpop.f32.mrb[0].mxu0
        %v1556 = vadd.f32 0.0, %v1555
        %v1557 = vpop.f32.mrb[0].mxu0
        %1558 = vmatprep.mubr.bf16.mxu0 0
        %1559 = vmatmul.mubr.bf16.gmra.mrb[0].mxu0 %v1026
        %v1560 = vpop.f32.mrb[0].mxu0
        %v1561 = vadd.f32 0.0, %v1560
        %v1562 = vpop.f32.mrb[0].mxu0
        %v1563 = vpop.f32.mrb[0].mxu0
        %v1564 = vadd.f32 0.0, %v1563
        %v1565 = vpop.f32.mrb[0].mxu0
        %1566 = vmatprep.mubr.bf16.mxu0 0
        %1567 = vmatmul.mubr.bf16.gmra.mrb[0].mxu0 %v1029
        %v1568 = vpop.f32.mrb[0].mxu0
        %v1569 = vadd.f32 0.0, %v1568
        %v1570 = vpop.f32.mrb[0].mxu0
        %v1571 = vpop.f32.mrb[0].mxu0
        %v1572 = vadd.f32 0.0, %v1571
        %v1573 = vpop.f32.mrb[0].mxu0
        %1574 = vmatprep.mubr.bf16.mxu0 0
        %1575 = vmatmul.mubr.bf16.gmra.mrb[0].mxu0 %v1032
        %v1576 = vpop.f32.mrb[0].mxu0
        %v1577 = vadd.f32 0.0, %v1576
        %v1578 = vpop.f32.mrb[0].mxu0
        %v1579 = vpop.f32.mrb[0].mxu0
        %v1580 = vadd.f32 0.0, %v1579
        %v1581 = vpop.f32.mrb[0].mxu0
        %1582 = vmatprep.mubr.bf16.mxu0 0
        %1583 = vmatmul.mubr.bf16.gmra.mrb[0].mxu0 %v1035
        %v1584 = vpop.f32.mrb[0].mxu0
        %v1585 = vadd.f32 0.0, %v1584
        %v1586 = vpop.f32.mrb[0].mxu0
        %v1587 = vpop.f32.mrb[0].mxu0
        %v1588 = vadd.f32 0.0, %v1587
        %v1589 = vpop.f32.mrb[0].mxu0
        %1590 = vmatprep.mubr.bf16.mxu0 0
        %1591 = vmatmul.mubr.bf16.gmra.mrb[0].mxu0 %v1038
        %v1592 = vpop.f32.mrb[0].mxu0
        %v1593 = vadd.f32 0.0, %v1592
        %v1594 = vpop.f32.mrb[0].mxu0
        %v1595 = vpop.f32.mrb[0].mxu0
        %v1596 = vadd.f32 0.0, %v1595
        %v1597 = vpop.f32.mrb[0].mxu0
        %1598 = vmatprep.mubr.bf16.mxu0 0
        %1599 = vmatmul.mubr.bf16.gmra.mrb[0].mxu0 %v1041
        %v1600 = vpop.f32.mrb[0].mxu0
        %v1601 = vadd.f32 0.0, %v1600
        %v1602 = vpop.f32.mrb[0].mxu0
        %v1603 = vpop.f32.mrb[0].mxu0
        %v1604 = vadd.f32 0.0, %v1603
        %v1605 = vpop.f32.mrb[0].mxu0
        %1606 = vmatprep.mubr.bf16.mxu0 0
        %1607 = vmatmul.mubr.bf16.gmra.mrb[0].mxu0 %v1044
        %v1608 = vpop.f32.mrb[0].mxu0
        %v1609 = vadd.f32 0.0, %v1608
        %v1610 = vpop.f32.mrb[0].mxu0
        %v1611 = vpop.f32.mrb[0].mxu0
        %v1612 = vadd.f32 0.0, %v1611
        %v1613 = vpop.f32.mrb[0].mxu0
        %1614 = vmatprep.mubr.bf16.mxu0 0
        %1615 = vmatmul.mubr.bf16.gmra.mrb[0].mxu0 %v1047
        %v1616 = vpop.f32.mrb[0].mxu0
        %v1617 = vadd.f32 0.0, %v1616
        %v1618 = vpop.f32.mrb[0].mxu0
        %v1619 = vpop.f32.mrb[0].mxu0
        %v1620 = vadd.f32 0.0, %v1619
        %v1621 = vpop.f32.mrb[0].mxu0
        %1622 = vmatprep.mubr.bf16.mxu0 0
        %1623 = vmatmul.mubr.bf16.gmra.mrb[0].mxu0 %v1050
        %v1624 = vpop.f32.mrb[0].mxu0
        %v1625 = vadd.f32 0.0, %v1624
        %v1626 = vpop.f32.mrb[0].mxu0
        %v1627 = vpop.f32.mrb[0].mxu0
        %v1628 = vadd.f32 0.0, %v1627
        %v1629 = vpop.f32.mrb[0].mxu0
        %1630 = vdwg.mxu0
        %v1631 = vrot.slane %v1312, 7
        %v1632 = vrot.slane %v1315, 7
        %v1633 = vrot.slane %v1320, 7
        %v1634 = vrot.slane %v1323, 7
        %v1635 = vrot.slane %v1328, 7
        %v1636 = vrot.slane %v1331, 7
        %v1637 = vrot.slane %v1336, 7
        %v1638 = vrot.slane %v1339, 7
        %v1639 = vrot.slane %v1344, 7
        %v1640 = vrot.slane %v1347, 7
        %v1641 = vrot.slane %v1352, 7
        %v1642 = vrot.slane %v1355, 7
        %v1643 = vrot.slane %v1360, 7
        %v1644 = vrot.slane %v1363, 7
        %v1645 = vrot.slane %v1368, 7
        %v1646 = vrot.slane %v1371, 7
        %v1647 = vrot.slane %v1376, 7
        %v1648 = vrot.slane %v1379, 7
        %v1649 = vrot.slane %v1384, 7
        %v1650 = vrot.slane %v1387, 7
        %v1651 = vrot.slane %v1392, 7
        %v1652 = vrot.slane %v1395, 7
        %v1653 = vrot.slane %v1400, 7
        %v1654 = vrot.slane %v1403, 7
        %v1655 = vrot.slane %v1408, 7
        %v1656 = vrot.slane %v1411, 7
        %v1657 = vrot.slane %v1416, 7
        %v1658 = vrot.slane %v1419, 7
        %v1659 = vrot.slane %v1424, 7
        %v1660 = vrot.slane %v1427, 7
        %v1661 = vrot.slane %v1432, 7
        %v1662 = vrot.slane %v1435, 7
        %vm1663 = vcmp.lt.s32.totalorder %v395, 1
        %v1664 = vsel %vm1663, %v1661, %v1662
        %v1665 = vsel %vm1663, %v1660, %v1661
        %v1666 = vsel %vm1663, %v1659, %v1660
        %v1667 = vsel %vm1663, %v1658, %v1659
        %v1668 = vsel %vm1663, %v1657, %v1658
        %v1669 = vsel %vm1663, %v1656, %v1657
        %v1670 = vsel %vm1663, %v1655, %v1656
        %v1671 = vsel %vm1663, %v1654, %v1655
        %v1672 = vsel %vm1663, %v1653, %v1654
        %v1673 = vsel %vm1663, %v1652, %v1653
        %v1674 = vsel %vm1663, %v1651, %v1652
        %v1675 = vsel %vm1663, %v1650, %v1651
        %v1676 = vsel %vm1663, %v1649, %v1650
        %v1677 = vsel %vm1663, %v1648, %v1649
        %v1678 = vsel %vm1663, %v1647, %v1648
        %v1679 = vsel %vm1663, %v1646, %v1647
        %v1680 = vsel %vm1663, %v1645, %v1646
        %v1681 = vsel %vm1663, %v1644, %v1645
        %v1682 = vsel %vm1663, %v1643, %v1644
        %v1683 = vsel %vm1663, %v1642, %v1643
        %v1684 = vsel %vm1663, %v1641, %v1642
        %v1685 = vsel %vm1663, %v1640, %v1641
        %v1686 = vsel %vm1663, %v1639, %v1640
        %v1687 = vsel %vm1663, %v1638, %v1639
        %v1688 = vsel %vm1663, %v1637, %v1638
        %v1689 = vsel %vm1663, %v1636, %v1637
        %v1690 = vsel %vm1663, %v1635, %v1636
        %v1691 = vsel %vm1663, %v1634, %v1635
        %v1692 = vsel %vm1663, %v1633, %v1634
        %v1693 = vsel %vm1663, %v1632, %v1633
        %v1694 = vsel %vm1663, %v1631, %v1632
        %v1695 = vsel %vm1663, %v1662, %v1631
        %v1696 = vsel %vm811, %v1695, 0.0
        %v1697 = vsel %vm812, %v1694, 0.0
        %v1698 = vsel %vm813, %v1693, 0.0
        %v1699 = vsel %vm814, %v1692, 0.0
        %v1700 = vsel %vm815, %v1691, 0.0
        %v1701 = vsel %vm816, %v1690, 0.0
        %v1702 = vsel %vm817, %v1689, 0.0
        %v1703 = vsel %vm818, %v1688, 0.0
        %v1704 = vsel %vm819, %v1687, 0.0
        %v1705 = vsel %vm820, %v1686, 0.0
        %v1706 = vsel %vm821, %v1685, 0.0
        %v1707 = vsel %vm822, %v1684, 0.0
        %v1708 = vsel %vm823, %v1683, 0.0
        %v1709 = vsel %vm824, %v1682, 0.0
        %v1710 = vsel %vm825, %v1681, 0.0
        %v1711 = vsel %vm826, %v1680, 0.0
        %v1712 = vsel %vm827, %v1679, 0.0
        %v1713 = vsel %vm828, %v1678, 0.0
        %v1714 = vsel %vm829, %v1677, 0.0
        %v1715 = vsel %vm830, %v1676, 0.0
        %v1716 = vsel %vm831, %v1675, 0.0
        %v1717 = vsel %vm832, %v1674, 0.0
        %v1718 = vsel %vm833, %v1673, 0.0
        %v1719 = vsel %vm834, %v1672, 0.0
        %v1720 = vsel %vm835, %v1671, 0.0
        %v1721 = vsel %vm836, %v1670, 0.0
        %v1722 = vsel %vm837, %v1669, 0.0
        %v1723 = vsel %vm838, %v1668, 0.0
        %v1724 = vsel %vm839, %v1667, 0.0
        %v1725 = vsel %vm840, %v1666, 0.0
        %v1726 = vsel %vm841, %v1665, 0.0
        %v1727 = vsel %vm842, %v1664, 0.0
        %v1728 = vadd.f32 %v1696, %v1087
        %v1729 = vadd.f32 %v1697, %v1091
        %v1730 = vadd.f32 %v1698, %v1097
        %v1731 = vadd.f32 %v1699, %v1101
        %v1732 = vadd.f32 %v1700, %v1107
        %v1733 = vadd.f32 %v1701, %v1111
        %v1734 = vadd.f32 %v1702, %v1117
        %v1735 = vadd.f32 %v1703, %v1121
        %v1736 = vadd.f32 %v1704, %v1127
        %v1737 = vadd.f32 %v1705, %v1131
        %v1738 = vadd.f32 %v1706, %v1137
        %v1739 = vadd.f32 %v1707, %v1141
        %v1740 = vadd.f32 %v1708, %v1147
        %v1741 = vadd.f32 %v1709, %v1151
        %v1742 = vadd.f32 %v1710, %v1157
        %v1743 = vadd.f32 %v1711, %v1161
        %v1744 = vadd.f32 %v1712, %v1167
        %v1745 = vadd.f32 %v1713, %v1171
        %v1746 = vadd.f32 %v1714, %v1177
        %v1747 = vadd.f32 %v1715, %v1181
        %v1748 = vadd.f32 %v1716, %v1187
        %v1749 = vadd.f32 %v1717, %v1191
        %v1750 = vadd.f32 %v1718, %v1197
        %v1751 = vadd.f32 %v1719, %v1201
        %v1752 = vadd.f32 %v1720, %v1207
        %v1753 = vadd.f32 %v1721, %v1211
        %v1754 = vadd.f32 %v1722, %v1217
        %v1755 = vadd.f32 %v1723, %v1221
        %v1756 = vadd.f32 %v1724, %v1227
        %v1757 = vadd.f32 %v1725, %v1231
        %v1758 = vadd.f32 %v1726, %v1237
        %v1759 = vadd.f32 %v1727, %v1241
        %v1760 = vrot.slane %v1505, 1
        %v1761 = vrot.slane %v1508, 1
        %v1762 = vrot.slane %v1513, 1
        %v1763 = vrot.slane %v1516, 1
        %v1764 = vrot.slane %v1521, 1
        %v1765 = vrot.slane %v1524, 1
        %v1766 = vrot.slane %v1529, 1
        %v1767 = vrot.slane %v1532, 1
        %v1768 = vrot.slane %v1537, 1
        %v1769 = vrot.slane %v1540, 1
        %v1770 = vrot.slane %v1545, 1
        %v1771 = vrot.slane %v1548, 1
        %v1772 = vrot.slane %v1553, 1
        %v1773 = vrot.slane %v1556, 1
        %v1774 = vrot.slane %v1561, 1
        %v1775 = vrot.slane %v1564, 1
        %v1776 = vrot.slane %v1569, 1
        %v1777 = vrot.slane %v1572, 1
        %v1778 = vrot.slane %v1577, 1
        %v1779 = vrot.slane %v1580, 1
        %v1780 = vrot.slane %v1585, 1
        %v1781 = vrot.slane %v1588, 1
        %v1782 = vrot.slane %v1593, 1
        %v1783 = vrot.slane %v1596, 1
        %v1784 = vrot.slane %v1601, 1
        %v1785 = vrot.slane %v1604, 1
        %v1786 = vrot.slane %v1609, 1
        %v1787 = vrot.slane %v1612, 1
        %v1788 = vrot.slane %v1617, 1
        %v1789 = vrot.slane %v1620, 1
        %v1790 = vrot.slane %v1625, 1
        %v1791 = vrot.slane %v1628, 1
        %vm1792 = vcmp.lt.s32.totalorder %v395, 7
        %v1793 = vsel %vm1792, %v1790, %v1791
        %v1794 = vsel %vm1792, %v1789, %v1790
        %v1795 = vsel %vm1792, %v1788, %v1789
        %v1796 = vsel %vm1792, %v1787, %v1788
        %v1797 = vsel %vm1792, %v1786, %v1787
        %v1798 = vsel %vm1792, %v1785, %v1786
        %v1799 = vsel %vm1792, %v1784, %v1785
        %v1800 = vsel %vm1792, %v1783, %v1784
        %v1801 = vsel %vm1792, %v1782, %v1783
        %v1802 = vsel %vm1792, %v1781, %v1782
        %v1803 = vsel %vm1792, %v1780, %v1781
        %v1804 = vsel %vm1792, %v1779, %v1780
        %v1805 = vsel %vm1792, %v1778, %v1779
        %v1806 = vsel %vm1792, %v1777, %v1778
        %v1807 = vsel %vm1792, %v1776, %v1777
        %v1808 = vsel %vm1792, %v1775, %v1776
        %v1809 = vsel %vm1792, %v1774, %v1775
        %v1810 = vsel %vm1792, %v1773, %v1774
        %v1811 = vsel %vm1792, %v1772, %v1773
        %v1812 = vsel %vm1792, %v1771, %v1772
        %v1813 = vsel %vm1792, %v1770, %v1771
        %v1814 = vsel %vm1792, %v1769, %v1770
        %v1815 = vsel %vm1792, %v1768, %v1769
        %v1816 = vsel %vm1792, %v1767, %v1768
        %v1817 = vsel %vm1792, %v1766, %v1767
        %v1818 = vsel %vm1792, %v1765, %v1766
        %v1819 = vsel %vm1792, %v1764, %v1765
        %v1820 = vsel %vm1792, %v1763, %v1764
        %v1821 = vsel %vm1792, %v1762, %v1763
        %v1822 = vsel %vm1792, %v1761, %v1762
        %v1823 = vsel %vm1792, %v1760, %v1761
        %v1824 = vsel %vm1792, %v1791, %v1760
        %v1825 = vsel %vm843, %v1823, 0.0
        %v1826 = vsel %vm844, %v1822, 0.0
        %v1827 = vsel %vm845, %v1821, 0.0
        %v1828 = vsel %vm846, %v1820, 0.0
        %v1829 = vsel %vm847, %v1819, 0.0
        %v1830 = vsel %vm848, %v1818, 0.0
        %v1831 = vsel %vm849, %v1817, 0.0
        %v1832 = vsel %vm850, %v1816, 0.0
        %v1833 = vsel %vm851, %v1815, 0.0
        %v1834 = vsel %vm852, %v1814, 0.0
        %v1835 = vsel %vm853, %v1813, 0.0
        %v1836 = vsel %vm854, %v1812, 0.0
        %v1837 = vsel %vm855, %v1811, 0.0
        %v1838 = vsel %vm856, %v1810, 0.0
        %v1839 = vsel %vm857, %v1809, 0.0
        %v1840 = vsel %vm858, %v1808, 0.0
        %v1841 = vsel %vm859, %v1807, 0.0
        %v1842 = vsel %vm860, %v1806, 0.0
        %v1843 = vsel %vm861, %v1805, 0.0
        %v1844 = vsel %vm862, %v1804, 0.0
        %v1845 = vsel %vm863, %v1803, 0.0
        %v1846 = vsel %vm864, %v1802, 0.0
        %v1847 = vsel %vm865, %v1801, 0.0
        %v1848 = vsel %vm866, %v1800, 0.0
        %v1849 = vsel %vm867, %v1799, 0.0
        %v1850 = vsel %vm868, %v1798, 0.0
        %v1851 = vsel %vm869, %v1797, 0.0
        %v1852 = vsel %vm870, %v1796, 0.0
        %v1853 = vsel %vm871, %v1795, 0.0
        %v1854 = vsel %vm872, %v1794, 0.0
        %v1855 = vsel %vm873, %v1793, 0.0
        %v1856 = vsel %vm874, %v1824, 0.0
        %v1857 = vadd.f32 %v1728, %v1825
        %v1858 = vadd.f32 %v1729, %v1826
        %v1859 = vadd.f32 %v1730, %v1827
        %v1860 = vadd.f32 %v1731, %v1828
        %v1861 = vadd.f32 %v1732, %v1829
        %v1862 = vadd.f32 %v1733, %v1830
        %v1863 = vadd.f32 %v1734, %v1831
        %v1864 = vadd.f32 %v1735, %v1832
        %v1865 = vadd.f32 %v1736, %v1833
        %v1866 = vadd.f32 %v1737, %v1834
        %v1867 = vadd.f32 %v1738, %v1835
        %v1868 = vadd.f32 %v1739, %v1836
        %v1869 = vadd.f32 %v1740, %v1837
        %v1870 = vadd.f32 %v1741, %v1838
        %v1871 = vadd.f32 %v1742, %v1839
        %v1872 = vadd.f32 %v1743, %v1840
        %v1873 = vadd.f32 %v1744, %v1841
        %v1874 = vadd.f32 %v1745, %v1842
        %v1875 = vadd.f32 %v1746, %v1843
        %v1876 = vadd.f32 %v1747, %v1844
        %v1877 = vadd.f32 %v1748, %v1845
        %v1878 = vadd.f32 %v1749, %v1846
        %v1879 = vadd.f32 %v1750, %v1847
        %v1880 = vadd.f32 %v1751, %v1848
        %v1881 = vadd.f32 %v1752, %v1849
        %v1882 = vadd.f32 %v1753, %v1850
        %v1883 = vadd.f32 %v1754, %v1851
        %v1884 = vadd.f32 %v1755, %v1852
        %v1885 = vadd.f32 %v1756, %v1853
        %v1886 = vadd.f32 %v1757, %v1854
        %v1887 = vadd.f32 %v1758, %v1855
        %v1888 = vadd.f32 %v1759, %v1856
        %v1889 = vld [vmem:[%s7] sm:$0x1]
        %v1891 = vlaneseq
        %v1892 = vshrl.u32 %v1891, 7
        %v1893 = vsub.s32 0, %v1892
        %v1894 = vrot.slane %v1889, %v1893
        %v1896 = vadd.f32 %v1857, %v1894
        %v1897 = vadd.f32 %v1858, %v1894
        %v1898 = vadd.f32 %v1859, %v1894
        %v1899 = vadd.f32 %v1860, %v1894
        %v1900 = vadd.f32 %v1861, %v1894
        %v1901 = vadd.f32 %v1862, %v1894
        %v1902 = vadd.f32 %v1863, %v1894
        %v1903 = vadd.f32 %v1864, %v1894
        %v1904 = vadd.f32 %v1865, %v1894
        %v1905 = vadd.f32 %v1866, %v1894
        %v1906 = vadd.f32 %v1867, %v1894
        %v1907 = vadd.f32 %v1868, %v1894
        %v1908 = vadd.f32 %v1869, %v1894
        %v1909 = vadd.f32 %v1870, %v1894
        %v1910 = vadd.f32 %v1871, %v1894
        %v1911 = vadd.f32 %v1872, %v1894
        %v1912 = vadd.f32 %v1873, %v1894
        %v1913 = vadd.f32 %v1874, %v1894
        %v1914 = vadd.f32 %v1875, %v1894
        %v1915 = vadd.f32 %v1876, %v1894
        %v1916 = vadd.f32 %v1877, %v1894
        %v1917 = vadd.f32 %v1878, %v1894
        %v1918 = vadd.f32 %v1879, %v1894
        %v1919 = vadd.f32 %v1880, %v1894
        %v1920 = vadd.f32 %v1881, %v1894
        %v1921 = vadd.f32 %v1882, %v1894
        %v1922 = vadd.f32 %v1883, %v1894
        %v1923 = vadd.f32 %v1884, %v1894
        %v1924 = vadd.f32 %v1885, %v1894
        %v1925 = vadd.f32 %v1886, %v1894
        %v1926 = vadd.f32 %v1887, %v1894
        %v1927 = vadd.f32 %v1888, %v1894
        %v1928 = vmax.f32 %v1896, 0.0
        %v1929 = vmax.f32 %v1897, 0.0
        %v1930 = vmax.f32 %v1898, 0.0
        %v1931 = vmax.f32 %v1899, 0.0
        %v1932 = vmax.f32 %v1900, 0.0
        %v1933 = vmax.f32 %v1901, 0.0
        %v1934 = vmax.f32 %v1902, 0.0
        %v1935 = vmax.f32 %v1903, 0.0
        %v1936 = vmax.f32 %v1904, 0.0
        %v1937 = vmax.f32 %v1905, 0.0
        %v1938 = vmax.f32 %v1906, 0.0
        %v1939 = vmax.f32 %v1907, 0.0
        %v1940 = vmax.f32 %v1908, 0.0
        %v1941 = vmax.f32 %v1909, 0.0
        %v1942 = vmax.f32 %v1910, 0.0
        %v1943 = vmax.f32 %v1911, 0.0
        %v1944 = vmax.f32 %v1912, 0.0
        %v1945 = vmax.f32 %v1913, 0.0
        %v1946 = vmax.f32 %v1914, 0.0
        %v1947 = vmax.f32 %v1915, 0.0
        %v1948 = vmax.f32 %v1916, 0.0
        %v1949 = vmax.f32 %v1917, 0.0
        %v1950 = vmax.f32 %v1918, 0.0
        %v1951 = vmax.f32 %v1919, 0.0
        %v1952 = vmax.f32 %v1920, 0.0
        %v1953 = vmax.f32 %v1921, 0.0
        %v1954 = vmax.f32 %v1922, 0.0
        %v1955 = vmax.f32 %v1923, 0.0
        %v1956 = vmax.f32 %v1924, 0.0
        %v1957 = vmax.f32 %v1925, 0.0
        %v1958 = vmax.f32 %v1926, 0.0
        %v1959 = vmax.f32 %v1927, 0.0
        %v1960 = vpack.c.bf16 %v1929, %v1928
        %v1961 = vpack.c.bf16 %v1931, %v1930
        %v1962 = vpack.c.bf16 %v1933, %v1932
        %v1963 = vpack.c.bf16 %v1935, %v1934
        %v1964 = vpack.c.bf16 %v1937, %v1936
        %v1965 = vpack.c.bf16 %v1939, %v1938
        %v1966 = vpack.c.bf16 %v1941, %v1940
        %v1967 = vpack.c.bf16 %v1943, %v1942
        %v1968 = vpack.c.bf16 %v1945, %v1944
        %v1969 = vpack.c.bf16 %v1947, %v1946
        %v1970 = vpack.c.bf16 %v1949, %v1948
        %v1971 = vpack.c.bf16 %v1951, %v1950
        %v1972 = vpack.c.bf16 %v1953, %v1952
        %v1973 = vpack.c.bf16 %v1955, %v1954
        %v1974 = vpack.c.bf16 %v1957, %v1956
        %v1975 = vpack.c.bf16 %v1959, %v1958
        %v1976 = vld [vmem:[%s5] sm:$0xf]
        %v1977 = vld [vmem:[%s5 + $0x4] sm:$0xf]
        %v1978 = vld [vmem:[%s5 + $0x8] sm:$0xf]
        %v1979 = vld [vmem:[%s5 + $0xc] sm:$0xf]
        %v1980 = vld [vmem:[%s5 + $0x10] sm:$0xf]
        %v1981 = vld [vmem:[%s5 + $0x14] sm:$0xf]
        %v1982 = vld [vmem:[%s5 + $0x18] sm:$0xf]
        %v1983 = vld [vmem:[%s5 + $0x1c] sm:$0xf]
        %v1984 = vld [vmem:[%s5 + $0x20] sm:$0xf]
        %v1985 = vld [vmem:[%s5 + $0x24] sm:$0xf]
        %v1986 = vld [vmem:[%s5 + $0x28] sm:$0xf]
        %v1987 = vld [vmem:[%s5 + $0x2c] sm:$0xf]
        %v1988 = vld [vmem:[%s5 + $0x30] sm:$0xf]
        %v1989 = vld [vmem:[%s5 + $0x34] sm:$0xf]
        %v1990 = vld [vmem:[%s5 + $0x38] sm:$0xf]
        %v1991 = vld [vmem:[%s5 + $0x3c] sm:$0xf]
        %v2008 = vunpack.c.l.b16 %v1976
        %v2009 = vunpack.c.l.b16 %v1977
        %v2010 = vunpack.c.l.b16 %v1978
        %v2011 = vunpack.c.l.b16 %v1979
        %v2012 = vunpack.c.l.b16 %v1980
        %v2013 = vunpack.c.l.b16 %v1981
        %v2014 = vunpack.c.l.b16 %v1982
        %v2015 = vunpack.c.l.b16 %v1983
        %v2016 = vunpack.c.l.b16 %v1984
        %v2017 = vunpack.c.l.b16 %v1985
        %v2018 = vunpack.c.l.b16 %v1986
        %v2019 = vunpack.c.l.b16 %v1987
        %v2020 = vunpack.c.l.b16 %v1988
        %v2021 = vunpack.c.l.b16 %v1989
        %v2022 = vunpack.c.l.b16 %v1990
        %v2023 = vunpack.c.l.b16 %v1991
        %v2024 = vpack.c.b16 %v2009, %v2008
        %v2025 = vpack.c.b16 %v2011, %v2010
        %v2026 = vpack.c.b16 %v2013, %v2012
        %v2027 = vpack.c.b16 %v2015, %v2014
        %v2028 = vpack.c.b16 %v2017, %v2016
        %v2029 = vpack.c.b16 %v2019, %v2018
        %v2030 = vpack.c.b16 %v2021, %v2020
        %v2031 = vpack.c.b16 %v2023, %v2022
        %2040 = vmatprep.subr.bf16.mxu0 0
        %2041 = vmatpush1.bf16.msra.mxu0 %v2024
        %2042 = vmatprep.subr.bf16.mxu0 0
        %2043 = vmatpush1.bf16.msra.mxu0 %v2025
        %2044 = vmatprep.subr.bf16.mxu0 0
        %2045 = vmatpush1.bf16.msra.mxu0 %v2026
        %2046 = vmatprep.subr.bf16.mxu0 0
        %2047 = vmatpush1.bf16.msra.mxu0 %v2027
        %2048 = vmatprep.subr.bf16.mxu0 0
        %2049 = vmatpush1.bf16.msra.mxu0 %v2028
        %2050 = vmatprep.subr.bf16.mxu0 0
        %2051 = vmatpush1.bf16.msra.mxu0 %v2029
        %2052 = vmatprep.subr.bf16.mxu0 0
        %2053 = vmatpush1.bf16.msra.mxu0 %v2030
        %2054 = vmatprep.subr.bf16.mxu0 0
        %2055 = vmatpush1.bf16.msra.mxu0 %v2031
        %2056 = vmatprep.subr.bf16.mxu0 0
        %2057 = vmatpush1.bf16.msra.mxu0 0
        %2058 = vmatprep.subr.bf16.mxu0 0
        %2059 = vmatpush1.bf16.msra.mxu0 0
        %2060 = vmatprep.subr.bf16.mxu0 0
        %2061 = vmatpush1.bf16.msra.mxu0 0
        %2062 = vmatprep.subr.bf16.mxu0 0
        %2063 = vmatpush1.bf16.msra.mxu0 0
        %2064 = vmatprep.subr.bf16.mxu0 0
        %2065 = vmatpush1.bf16.msra.mxu0 0
        %2066 = vmatprep.subr.bf16.mxu0 0
        %2067 = vmatpush1.bf16.msra.mxu0 0
        %2068 = vmatprep.subr.bf16.mxu0 0
        %2069 = vmatpush1.bf16.msra.mxu0 0
        %2070 = vmatprep.subr.bf16.mxu0 0
        %2071 = vmatpush1.bf16.msra.mxu0 0
        %2072 = vmatprep.mubr.bf16.mxu0 0
        %2073 = vmatmul.mubr.bf16.gmra.mrb[0].mxu0 %v1960
        %v2074 = vpop.f32.mrb[0].mxu0
        %v2075 = vadd.f32 0.0, %v2074
        %v2076 = vpop.f32.mrb[0].mxu0
        %v2077 = vpop.f32.mrb[0].mxu0
        %v2078 = vadd.f32 0.0, %v2077
        %v2079 = vpop.f32.mrb[0].mxu0
        %2080 = vmatprep.mubr.bf16.mxu0 0
        %2081 = vmatmul.mubr.bf16.gmra.mrb[0].mxu0 %v1961
        %v2082 = vpop.f32.mrb[0].mxu0
        %v2083 = vadd.f32 0.0, %v2082
        %v2084 = vpop.f32.mrb[0].mxu0
        %v2085 = vpop.f32.mrb[0].mxu0
        %v2086 = vadd.f32 0.0, %v2085
        %v2087 = vpop.f32.mrb[0].mxu0
        %2088 = vmatprep.mubr.bf16.mxu0 0
        %2089 = vmatmul.mubr.bf16.gmra.mrb[0].mxu0 %v1962
        %v2090 = vpop.f32.mrb[0].mxu0
        %v2091 = vadd.f32 0.0, %v2090
        %v2092 = vpop.f32.mrb[0].mxu0
        %v2093 = vpop.f32.mrb[0].mxu0
        %v2094 = vadd.f32 0.0, %v2093
        %v2095 = vpop.f32.mrb[0].mxu0
        %2096 = vmatprep.mubr.bf16.mxu0 0
        %2097 = vmatmul.mubr.bf16.gmra.mrb[0].mxu0 %v1963
        %v2098 = vpop.f32.mrb[0].mxu0
        %v2099 = vadd.f32 0.0, %v2098
        %v2100 = vpop.f32.mrb[0].mxu0
        %v2101 = vpop.f32.mrb[0].mxu0
        %v2102 = vadd.f32 0.0, %v2101
        %v2103 = vpop.f32.mrb[0].mxu0
        %2104 = vmatprep.mubr.bf16.mxu0 0
        %2105 = vmatmul.mubr.bf16.gmra.mrb[0].mxu0 %v1964
        %v2106 = vpop.f32.mrb[0].mxu0
        %v2107 = vadd.f32 0.0, %v2106
        %v2108 = vpop.f32.mrb[0].mxu0
        %v2109 = vpop.f32.mrb[0].mxu0
        %v2110 = vadd.f32 0.0, %v2109
        %v2111 = vpop.f32.mrb[0].mxu0
        %2112 = vmatprep.mubr.bf16.mxu0 0
        %2113 = vmatmul.mubr.bf16.gmra.mrb[0].mxu0 %v1965
        %v2114 = vpop.f32.mrb[0].mxu0
        %v2115 = vadd.f32 0.0, %v2114
        %v2116 = vpop.f32.mrb[0].mxu0
        %v2117 = vpop.f32.mrb[0].mxu0
        %v2118 = vadd.f32 0.0, %v2117
        %v2119 = vpop.f32.mrb[0].mxu0
        %2120 = vmatprep.mubr.bf16.mxu0 0
        %2121 = vmatmul.mubr.bf16.gmra.mrb[0].mxu0 %v1966
        %v2122 = vpop.f32.mrb[0].mxu0
        %v2123 = vadd.f32 0.0, %v2122
        %v2124 = vpop.f32.mrb[0].mxu0
        %v2125 = vpop.f32.mrb[0].mxu0
        %v2126 = vadd.f32 0.0, %v2125
        %v2127 = vpop.f32.mrb[0].mxu0
        %2128 = vmatprep.mubr.bf16.mxu0 0
        %2129 = vmatmul.mubr.bf16.gmra.mrb[0].mxu0 %v1967
        %v2130 = vpop.f32.mrb[0].mxu0
        %v2131 = vadd.f32 0.0, %v2130
        %v2132 = vpop.f32.mrb[0].mxu0
        %v2133 = vpop.f32.mrb[0].mxu0
        %v2134 = vadd.f32 0.0, %v2133
        %v2135 = vpop.f32.mrb[0].mxu0
        %2136 = vmatprep.mubr.bf16.mxu0 0
        %2137 = vmatmul.mubr.bf16.gmra.mrb[0].mxu0 %v1968
        %v2138 = vpop.f32.mrb[0].mxu0
        %v2139 = vadd.f32 0.0, %v2138
        %v2140 = vpop.f32.mrb[0].mxu0
        %v2141 = vpop.f32.mrb[0].mxu0
        %v2142 = vadd.f32 0.0, %v2141
        %v2143 = vpop.f32.mrb[0].mxu0
        %2144 = vmatprep.mubr.bf16.mxu0 0
        %2145 = vmatmul.mubr.bf16.gmra.mrb[0].mxu0 %v1969
        %v2146 = vpop.f32.mrb[0].mxu0
        %v2147 = vadd.f32 0.0, %v2146
        %v2148 = vpop.f32.mrb[0].mxu0
        %v2149 = vpop.f32.mrb[0].mxu0
        %v2150 = vadd.f32 0.0, %v2149
        %v2151 = vpop.f32.mrb[0].mxu0
        %2152 = vmatprep.mubr.bf16.mxu0 0
        %2153 = vmatmul.mubr.bf16.gmra.mrb[0].mxu0 %v1970
        %v2154 = vpop.f32.mrb[0].mxu0
        %v2155 = vadd.f32 0.0, %v2154
        %v2156 = vpop.f32.mrb[0].mxu0
        %v2157 = vpop.f32.mrb[0].mxu0
        %v2158 = vadd.f32 0.0, %v2157
        %v2159 = vpop.f32.mrb[0].mxu0
        %2160 = vmatprep.mubr.bf16.mxu0 0
        %2161 = vmatmul.mubr.bf16.gmra.mrb[0].mxu0 %v1971
        %v2162 = vpop.f32.mrb[0].mxu0
        %v2163 = vadd.f32 0.0, %v2162
        %v2164 = vpop.f32.mrb[0].mxu0
        %v2165 = vpop.f32.mrb[0].mxu0
        %v2166 = vadd.f32 0.0, %v2165
        %v2167 = vpop.f32.mrb[0].mxu0
        %2168 = vmatprep.mubr.bf16.mxu0 0
        %2169 = vmatmul.mubr.bf16.gmra.mrb[0].mxu0 %v1972
        %v2170 = vpop.f32.mrb[0].mxu0
        %v2171 = vadd.f32 0.0, %v2170
        %v2172 = vpop.f32.mrb[0].mxu0
        %v2173 = vpop.f32.mrb[0].mxu0
        %v2174 = vadd.f32 0.0, %v2173
        %v2175 = vpop.f32.mrb[0].mxu0
        %2176 = vmatprep.mubr.bf16.mxu0 0
        %2177 = vmatmul.mubr.bf16.gmra.mrb[0].mxu0 %v1973
        %v2178 = vpop.f32.mrb[0].mxu0
        %v2179 = vadd.f32 0.0, %v2178
        %v2180 = vpop.f32.mrb[0].mxu0
        %v2181 = vpop.f32.mrb[0].mxu0
        %v2182 = vadd.f32 0.0, %v2181
        %v2183 = vpop.f32.mrb[0].mxu0
        %2184 = vmatprep.mubr.bf16.mxu0 0
        %2185 = vmatmul.mubr.bf16.gmra.mrb[0].mxu0 %v1974
        %v2186 = vpop.f32.mrb[0].mxu0
        %v2187 = vadd.f32 0.0, %v2186
        %v2188 = vpop.f32.mrb[0].mxu0
        %v2189 = vpop.f32.mrb[0].mxu0
        %v2190 = vadd.f32 0.0, %v2189
        %v2191 = vpop.f32.mrb[0].mxu0
        %2192 = vmatprep.mubr.bf16.mxu0 0
        %2193 = vmatmul.mubr.bf16.gmra.mrb[0].mxu0 %v1975
        %v2194 = vpop.f32.mrb[0].mxu0
        %v2195 = vadd.f32 0.0, %v2194
        %v2196 = vpop.f32.mrb[0].mxu0
        %v2197 = vpop.f32.mrb[0].mxu0
        %v2198 = vadd.f32 0.0, %v2197
        %v2199 = vpop.f32.mrb[0].mxu0
        %2200 = vdwg.mxu0
        %v2201 = vld [vmem:[%s4] sm:$0xf]
        %v2202 = vld [vmem:[%s4 + $0x4] sm:$0xf]
        %v2203 = vld [vmem:[%s4 + $0x8] sm:$0xf]
        %v2204 = vld [vmem:[%s4 + $0xc] sm:$0xf]
        %v2205 = vld [vmem:[%s4 + $0x10] sm:$0xf]
        %v2206 = vld [vmem:[%s4 + $0x14] sm:$0xf]
        %v2207 = vld [vmem:[%s4 + $0x18] sm:$0xf]
        %v2208 = vld [vmem:[%s4 + $0x1c] sm:$0xf]
        %v2209 = vld [vmem:[%s4 + $0x20] sm:$0xf]
        %v2210 = vld [vmem:[%s4 + $0x24] sm:$0xf]
        %v2211 = vld [vmem:[%s4 + $0x28] sm:$0xf]
        %v2212 = vld [vmem:[%s4 + $0x2c] sm:$0xf]
        %v2213 = vld [vmem:[%s4 + $0x30] sm:$0xf]
        %v2214 = vld [vmem:[%s4 + $0x34] sm:$0xf]
        %v2215 = vld [vmem:[%s4 + $0x38] sm:$0xf]
        %v2216 = vld [vmem:[%s4 + $0x3c] sm:$0xf]
        %v2233 = vunpack.c.l.b16 %v2201
        %v2234 = vunpack.c.l.b16 %v2202
        %v2235 = vunpack.c.l.b16 %v2203
        %v2236 = vunpack.c.l.b16 %v2204
        %v2237 = vunpack.c.l.b16 %v2205
        %v2238 = vunpack.c.l.b16 %v2206
        %v2239 = vunpack.c.l.b16 %v2207
        %v2240 = vunpack.c.l.b16 %v2208
        %v2241 = vunpack.c.l.b16 %v2209
        %v2242 = vunpack.c.l.b16 %v2210
        %v2243 = vunpack.c.l.b16 %v2211
        %v2244 = vunpack.c.l.b16 %v2212
        %v2245 = vunpack.c.l.b16 %v2213
        %v2246 = vunpack.c.l.b16 %v2214
        %v2247 = vunpack.c.l.b16 %v2215
        %v2248 = vunpack.c.l.b16 %v2216
        %v2249 = vpack.c.b16 %v2234, %v2233
        %v2250 = vpack.c.b16 %v2236, %v2235
        %v2251 = vpack.c.b16 %v2238, %v2237
        %v2252 = vpack.c.b16 %v2240, %v2239
        %v2253 = vpack.c.b16 %v2242, %v2241
        %v2254 = vpack.c.b16 %v2244, %v2243
        %v2255 = vpack.c.b16 %v2246, %v2245
        %v2256 = vpack.c.b16 %v2248, %v2247
        %2265 = vmatprep.subr.bf16.mxu0 0
        %2266 = vmatpush1.bf16.msra.mxu0 %v2249
        %2267 = vmatprep.subr.bf16.mxu0 0
        %2268 = vmatpush1.bf16.msra.mxu0 %v2250
        %2269 = vmatprep.subr.bf16.mxu0 0
        %2270 = vmatpush1.bf16.msra.mxu0 %v2251
        %2271 = vmatprep.subr.bf16.mxu0 0
        %2272 = vmatpush1.bf16.msra.mxu0 %v2252
        %2273 = vmatprep.subr.bf16.mxu0 0
        %2274 = vmatpush1.bf16.msra.mxu0 %v2253
        %2275 = vmatprep.subr.bf16.mxu0 0
        %2276 = vmatpush1.bf16.msra.mxu0 %v2254
        %2277 = vmatprep.subr.bf16.mxu0 0
        %2278 = vmatpush1.bf16.msra.mxu0 %v2255
        %2279 = vmatprep.subr.bf16.mxu0 0
        %2280 = vmatpush1.bf16.msra.mxu0 %v2256
        %2281 = vmatprep.subr.bf16.mxu0 0
        %2282 = vmatpush1.bf16.msra.mxu0 0
        %2283 = vmatprep.subr.bf16.mxu0 0
        %2284 = vmatpush1.bf16.msra.mxu0 0
        %2285 = vmatprep.subr.bf16.mxu0 0
        %2286 = vmatpush1.bf16.msra.mxu0 0
        %2287 = vmatprep.subr.bf16.mxu0 0
        %2288 = vmatpush1.bf16.msra.mxu0 0
        %2289 = vmatprep.subr.bf16.mxu0 0
        %2290 = vmatpush1.bf16.msra.mxu0 0
        %2291 = vmatprep.subr.bf16.mxu0 0
        %2292 = vmatpush1.bf16.msra.mxu0 0
        %2293 = vmatprep.subr.bf16.mxu0 0
        %2294 = vmatpush1.bf16.msra.mxu0 0
        %2295 = vmatprep.subr.bf16.mxu0 0
        %2296 = vmatpush1.bf16.msra.mxu0 0
        %2297 = vmatprep.mubr.bf16.mxu0 0
        %2298 = vmatmul.mubr.bf16.gmra.mrb[0].mxu0 %v1960
        %v2299 = vpop.f32.mrb[0].mxu0
        %v2300 = vadd.f32 0.0, %v2299
        %v2301 = vpop.f32.mrb[0].mxu0
        %v2302 = vpop.f32.mrb[0].mxu0
        %v2303 = vadd.f32 0.0, %v2302
        %v2304 = vpop.f32.mrb[0].mxu0
        %2305 = vmatprep.mubr.bf16.mxu0 0
        %2306 = vmatmul.mubr.bf16.gmra.mrb[0].mxu0 %v1961
        %v2307 = vpop.f32.mrb[0].mxu0
        %v2308 = vadd.f32 0.0, %v2307
        %v2309 = vpop.f32.mrb[0].mxu0
        %v2310 = vpop.f32.mrb[0].mxu0
        %v2311 = vadd.f32 0.0, %v2310
        %v2312 = vpop.f32.mrb[0].mxu0
        %2313 = vmatprep.mubr.bf16.mxu0 0
        %2314 = vmatmul.mubr.bf16.gmra.mrb[0].mxu0 %v1962
        %v2315 = vpop.f32.mrb[0].mxu0
        %v2316 = vadd.f32 0.0, %v2315
        %v2317 = vpop.f32.mrb[0].mxu0
        %v2318 = vpop.f32.mrb[0].mxu0
        %v2319 = vadd.f32 0.0, %v2318
        %v2320 = vpop.f32.mrb[0].mxu0
        %2321 = vmatprep.mubr.bf16.mxu0 0
        %2322 = vmatmul.mubr.bf16.gmra.mrb[0].mxu0 %v1963
        %v2323 = vpop.f32.mrb[0].mxu0
        %v2324 = vadd.f32 0.0, %v2323
        %v2325 = vpop.f32.mrb[0].mxu0
        %v2326 = vpop.f32.mrb[0].mxu0
        %v2327 = vadd.f32 0.0, %v2326
        %v2328 = vpop.f32.mrb[0].mxu0
        %2329 = vmatprep.mubr.bf16.mxu0 0
        %2330 = vmatmul.mubr.bf16.gmra.mrb[0].mxu0 %v1964
        %v2331 = vpop.f32.mrb[0].mxu0
        %v2332 = vadd.f32 0.0, %v2331
        %v2333 = vpop.f32.mrb[0].mxu0
        %v2334 = vpop.f32.mrb[0].mxu0
        %v2335 = vadd.f32 0.0, %v2334
        %v2336 = vpop.f32.mrb[0].mxu0
        %2337 = vmatprep.mubr.bf16.mxu0 0
        %2338 = vmatmul.mubr.bf16.gmra.mrb[0].mxu0 %v1965
        %v2339 = vpop.f32.mrb[0].mxu0
        %v2340 = vadd.f32 0.0, %v2339
        %v2341 = vpop.f32.mrb[0].mxu0
        %v2342 = vpop.f32.mrb[0].mxu0
        %v2343 = vadd.f32 0.0, %v2342
        %v2344 = vpop.f32.mrb[0].mxu0
        %2345 = vmatprep.mubr.bf16.mxu0 0
        %2346 = vmatmul.mubr.bf16.gmra.mrb[0].mxu0 %v1966
        %v2347 = vpop.f32.mrb[0].mxu0
        %v2348 = vadd.f32 0.0, %v2347
        %v2349 = vpop.f32.mrb[0].mxu0
        %v2350 = vpop.f32.mrb[0].mxu0
        %v2351 = vadd.f32 0.0, %v2350
        %v2352 = vpop.f32.mrb[0].mxu0
        %2353 = vmatprep.mubr.bf16.mxu0 0
        %2354 = vmatmul.mubr.bf16.gmra.mrb[0].mxu0 %v1967
        %v2355 = vpop.f32.mrb[0].mxu0
        %v2356 = vadd.f32 0.0, %v2355
        %v2357 = vpop.f32.mrb[0].mxu0
        %v2358 = vpop.f32.mrb[0].mxu0
        %v2359 = vadd.f32 0.0, %v2358
        %v2360 = vpop.f32.mrb[0].mxu0
        %2361 = vmatprep.mubr.bf16.mxu0 0
        %2362 = vmatmul.mubr.bf16.gmra.mrb[0].mxu0 %v1968
        %v2363 = vpop.f32.mrb[0].mxu0
        %v2364 = vadd.f32 0.0, %v2363
        %v2365 = vpop.f32.mrb[0].mxu0
        %v2366 = vpop.f32.mrb[0].mxu0
        %v2367 = vadd.f32 0.0, %v2366
        %v2368 = vpop.f32.mrb[0].mxu0
        %2369 = vmatprep.mubr.bf16.mxu0 0
        %2370 = vmatmul.mubr.bf16.gmra.mrb[0].mxu0 %v1969
        %v2371 = vpop.f32.mrb[0].mxu0
        %v2372 = vadd.f32 0.0, %v2371
        %v2373 = vpop.f32.mrb[0].mxu0
        %v2374 = vpop.f32.mrb[0].mxu0
        %v2375 = vadd.f32 0.0, %v2374
        %v2376 = vpop.f32.mrb[0].mxu0
        %2377 = vmatprep.mubr.bf16.mxu0 0
        %2378 = vmatmul.mubr.bf16.gmra.mrb[0].mxu0 %v1970
        %v2379 = vpop.f32.mrb[0].mxu0
        %v2380 = vadd.f32 0.0, %v2379
        %v2381 = vpop.f32.mrb[0].mxu0
        %v2382 = vpop.f32.mrb[0].mxu0
        %v2383 = vadd.f32 0.0, %v2382
        %v2384 = vpop.f32.mrb[0].mxu0
        %2385 = vmatprep.mubr.bf16.mxu0 0
        %2386 = vmatmul.mubr.bf16.gmra.mrb[0].mxu0 %v1971
        %v2387 = vpop.f32.mrb[0].mxu0
        %v2388 = vadd.f32 0.0, %v2387
        %v2389 = vpop.f32.mrb[0].mxu0
        %v2390 = vpop.f32.mrb[0].mxu0
        %v2391 = vadd.f32 0.0, %v2390
        %v2392 = vpop.f32.mrb[0].mxu0
        %2393 = vmatprep.mubr.bf16.mxu0 0
        %2394 = vmatmul.mubr.bf16.gmra.mrb[0].mxu0 %v1972
        %v2395 = vpop.f32.mrb[0].mxu0
        %v2396 = vadd.f32 0.0, %v2395
        %v2397 = vpop.f32.mrb[0].mxu0
        %v2398 = vpop.f32.mrb[0].mxu0
        %v2399 = vadd.f32 0.0, %v2398
        %v2400 = vpop.f32.mrb[0].mxu0
        %2401 = vmatprep.mubr.bf16.mxu0 0
        %2402 = vmatmul.mubr.bf16.gmra.mrb[0].mxu0 %v1973
        %v2403 = vpop.f32.mrb[0].mxu0
        %v2404 = vadd.f32 0.0, %v2403
        %v2405 = vpop.f32.mrb[0].mxu0
        %v2406 = vpop.f32.mrb[0].mxu0
        %v2407 = vadd.f32 0.0, %v2406
        %v2408 = vpop.f32.mrb[0].mxu0
        %2409 = vmatprep.mubr.bf16.mxu0 0
        %2410 = vmatmul.mubr.bf16.gmra.mrb[0].mxu0 %v1974
        %v2411 = vpop.f32.mrb[0].mxu0
        %v2412 = vadd.f32 0.0, %v2411
        %v2413 = vpop.f32.mrb[0].mxu0
        %v2414 = vpop.f32.mrb[0].mxu0
        %v2415 = vadd.f32 0.0, %v2414
        %v2416 = vpop.f32.mrb[0].mxu0
        %2417 = vmatprep.mubr.bf16.mxu0 0
        %2418 = vmatmul.mubr.bf16.gmra.mrb[0].mxu0 %v1975
        %v2419 = vpop.f32.mrb[0].mxu0
        %v2420 = vadd.f32 0.0, %v2419
        %v2421 = vpop.f32.mrb[0].mxu0
        %v2422 = vpop.f32.mrb[0].mxu0
        %v2423 = vadd.f32 0.0, %v2422
        %v2424 = vpop.f32.mrb[0].mxu0
        %2425 = vdwg.mxu0
        %v2426 = vld [vmem:[%s6] sm:$0xf]
        %v2427 = vld [vmem:[%s6 + $0x4] sm:$0xf]
        %v2428 = vld [vmem:[%s6 + $0x8] sm:$0xf]
        %v2429 = vld [vmem:[%s6 + $0xc] sm:$0xf]
        %v2430 = vld [vmem:[%s6 + $0x10] sm:$0xf]
        %v2431 = vld [vmem:[%s6 + $0x14] sm:$0xf]
        %v2432 = vld [vmem:[%s6 + $0x18] sm:$0xf]
        %v2433 = vld [vmem:[%s6 + $0x1c] sm:$0xf]
        %v2434 = vld [vmem:[%s6 + $0x20] sm:$0xf]
        %v2435 = vld [vmem:[%s6 + $0x24] sm:$0xf]
        %v2436 = vld [vmem:[%s6 + $0x28] sm:$0xf]
        %v2437 = vld [vmem:[%s6 + $0x2c] sm:$0xf]
        %v2438 = vld [vmem:[%s6 + $0x30] sm:$0xf]
        %v2439 = vld [vmem:[%s6 + $0x34] sm:$0xf]
        %v2440 = vld [vmem:[%s6 + $0x38] sm:$0xf]
        %v2441 = vld [vmem:[%s6 + $0x3c] sm:$0xf]
        %v2458 = vunpack.c.l.b16 %v2426
        %v2459 = vunpack.c.l.b16 %v2427
        %v2460 = vunpack.c.l.b16 %v2428
        %v2461 = vunpack.c.l.b16 %v2429
        %v2462 = vunpack.c.l.b16 %v2430
        %v2463 = vunpack.c.l.b16 %v2431
        %v2464 = vunpack.c.l.b16 %v2432
        %v2465 = vunpack.c.l.b16 %v2433
        %v2466 = vunpack.c.l.b16 %v2434
        %v2467 = vunpack.c.l.b16 %v2435
        %v2468 = vunpack.c.l.b16 %v2436
        %v2469 = vunpack.c.l.b16 %v2437
        %v2470 = vunpack.c.l.b16 %v2438
        %v2471 = vunpack.c.l.b16 %v2439
        %v2472 = vunpack.c.l.b16 %v2440
        %v2473 = vunpack.c.l.b16 %v2441
        %v2474 = vpack.c.b16 %v2459, %v2458
        %v2475 = vpack.c.b16 %v2461, %v2460
        %v2476 = vpack.c.b16 %v2463, %v2462
        %v2477 = vpack.c.b16 %v2465, %v2464
        %v2478 = vpack.c.b16 %v2467, %v2466
        %v2479 = vpack.c.b16 %v2469, %v2468
        %v2480 = vpack.c.b16 %v2471, %v2470
        %v2481 = vpack.c.b16 %v2473, %v2472
        %2490 = vmatprep.subr.bf16.mxu0 0
        %2491 = vmatpush1.bf16.msra.mxu0 %v2474
        %2492 = vmatprep.subr.bf16.mxu0 0
        %2493 = vmatpush1.bf16.msra.mxu0 %v2475
        %2494 = vmatprep.subr.bf16.mxu0 0
        %2495 = vmatpush1.bf16.msra.mxu0 %v2476
        %2496 = vmatprep.subr.bf16.mxu0 0
        %2497 = vmatpush1.bf16.msra.mxu0 %v2477
        %2498 = vmatprep.subr.bf16.mxu0 0
        %2499 = vmatpush1.bf16.msra.mxu0 %v2478
        %2500 = vmatprep.subr.bf16.mxu0 0
        %2501 = vmatpush1.bf16.msra.mxu0 %v2479
        %2502 = vmatprep.subr.bf16.mxu0 0
        %2503 = vmatpush1.bf16.msra.mxu0 %v2480
        %2504 = vmatprep.subr.bf16.mxu0 0
        %2505 = vmatpush1.bf16.msra.mxu0 %v2481
        %2506 = vmatprep.subr.bf16.mxu0 0
        %2507 = vmatpush1.bf16.msra.mxu0 0
        %2508 = vmatprep.subr.bf16.mxu0 0
        %2509 = vmatpush1.bf16.msra.mxu0 0
        %2510 = vmatprep.subr.bf16.mxu0 0
        %2511 = vmatpush1.bf16.msra.mxu0 0
        %2512 = vmatprep.subr.bf16.mxu0 0
        %2513 = vmatpush1.bf16.msra.mxu0 0
        %2514 = vmatprep.subr.bf16.mxu0 0
        %2515 = vmatpush1.bf16.msra.mxu0 0
        %2516 = vmatprep.subr.bf16.mxu0 0
        %2517 = vmatpush1.bf16.msra.mxu0 0
        %2518 = vmatprep.subr.bf16.mxu0 0
        %2519 = vmatpush1.bf16.msra.mxu0 0
        %2520 = vmatprep.subr.bf16.mxu0 0
        %2521 = vmatpush1.bf16.msra.mxu0 0
        %2522 = vmatprep.mubr.bf16.mxu0 0
        %2523 = vmatmul.mubr.bf16.gmra.mrb[0].mxu0 %v1960
        %v2524 = vpop.f32.mrb[0].mxu0
        %v2525 = vadd.f32 0.0, %v2524
        %v2526 = vpop.f32.mrb[0].mxu0
        %v2527 = vpop.f32.mrb[0].mxu0
        %v2528 = vadd.f32 0.0, %v2527
        %v2529 = vpop.f32.mrb[0].mxu0
        %2530 = vmatprep.mubr.bf16.mxu0 0
        %2531 = vmatmul.mubr.bf16.gmra.mrb[0].mxu0 %v1961
        %v2532 = vpop.f32.mrb[0].mxu0
        %v2533 = vadd.f32 0.0, %v2532
        %v2534 = vpop.f32.mrb[0].mxu0
        %v2535 = vpop.f32.mrb[0].mxu0
        %v2536 = vadd.f32 0.0, %v2535
        %v2537 = vpop.f32.mrb[0].mxu0
        %2538 = vmatprep.mubr.bf16.mxu0 0
        %2539 = vmatmul.mubr.bf16.gmra.mrb[0].mxu0 %v1962
        %v2540 = vpop.f32.mrb[0].mxu0
        %v2541 = vadd.f32 0.0, %v2540
        %v2542 = vpop.f32.mrb[0].mxu0
        %v2543 = vpop.f32.mrb[0].mxu0
        %v2544 = vadd.f32 0.0, %v2543
        %v2545 = vpop.f32.mrb[0].mxu0
        %2546 = vmatprep.mubr.bf16.mxu0 0
        %2547 = vmatmul.mubr.bf16.gmra.mrb[0].mxu0 %v1963
        %v2548 = vpop.f32.mrb[0].mxu0
        %v2549 = vadd.f32 0.0, %v2548
        %v2550 = vpop.f32.mrb[0].mxu0
        %v2551 = vpop.f32.mrb[0].mxu0
        %v2552 = vadd.f32 0.0, %v2551
        %v2553 = vpop.f32.mrb[0].mxu0
        %2554 = vmatprep.mubr.bf16.mxu0 0
        %2555 = vmatmul.mubr.bf16.gmra.mrb[0].mxu0 %v1964
        %v2556 = vpop.f32.mrb[0].mxu0
        %v2557 = vadd.f32 0.0, %v2556
        %v2558 = vpop.f32.mrb[0].mxu0
        %v2559 = vpop.f32.mrb[0].mxu0
        %v2560 = vadd.f32 0.0, %v2559
        %v2561 = vpop.f32.mrb[0].mxu0
        %2562 = vmatprep.mubr.bf16.mxu0 0
        %2563 = vmatmul.mubr.bf16.gmra.mrb[0].mxu0 %v1965
        %v2564 = vpop.f32.mrb[0].mxu0
        %v2565 = vadd.f32 0.0, %v2564
        %v2566 = vpop.f32.mrb[0].mxu0
        %v2567 = vpop.f32.mrb[0].mxu0
        %v2568 = vadd.f32 0.0, %v2567
        %v2569 = vpop.f32.mrb[0].mxu0
        %2570 = vmatprep.mubr.bf16.mxu0 0
        %2571 = vmatmul.mubr.bf16.gmra.mrb[0].mxu0 %v1966
        %v2572 = vpop.f32.mrb[0].mxu0
        %v2573 = vadd.f32 0.0, %v2572
        %v2574 = vpop.f32.mrb[0].mxu0
        %v2575 = vpop.f32.mrb[0].mxu0
        %v2576 = vadd.f32 0.0, %v2575
        %v2577 = vpop.f32.mrb[0].mxu0
        %2578 = vmatprep.mubr.bf16.mxu0 0
        %2579 = vmatmul.mubr.bf16.gmra.mrb[0].mxu0 %v1967
        %v2580 = vpop.f32.mrb[0].mxu0
        %v2581 = vadd.f32 0.0, %v2580
        %v2582 = vpop.f32.mrb[0].mxu0
        %v2583 = vpop.f32.mrb[0].mxu0
        %v2584 = vadd.f32 0.0, %v2583
        %v2585 = vpop.f32.mrb[0].mxu0
        %2586 = vmatprep.mubr.bf16.mxu0 0
        %2587 = vmatmul.mubr.bf16.gmra.mrb[0].mxu0 %v1968
        %v2588 = vpop.f32.mrb[0].mxu0
        %v2589 = vadd.f32 0.0, %v2588
        %v2590 = vpop.f32.mrb[0].mxu0
        %v2591 = vpop.f32.mrb[0].mxu0
        %v2592 = vadd.f32 0.0, %v2591
        %v2593 = vpop.f32.mrb[0].mxu0
        %2594 = vmatprep.mubr.bf16.mxu0 0
        %2595 = vmatmul.mubr.bf16.gmra.mrb[0].mxu0 %v1969
        %v2596 = vpop.f32.mrb[0].mxu0
        %v2597 = vadd.f32 0.0, %v2596
        %v2598 = vpop.f32.mrb[0].mxu0
        %v2599 = vpop.f32.mrb[0].mxu0
        %v2600 = vadd.f32 0.0, %v2599
        %v2601 = vpop.f32.mrb[0].mxu0
        %2602 = vmatprep.mubr.bf16.mxu0 0
        %2603 = vmatmul.mubr.bf16.gmra.mrb[0].mxu0 %v1970
        %v2604 = vpop.f32.mrb[0].mxu0
        %v2605 = vadd.f32 0.0, %v2604
        %v2606 = vpop.f32.mrb[0].mxu0
        %v2607 = vpop.f32.mrb[0].mxu0
        %v2608 = vadd.f32 0.0, %v2607
        %v2609 = vpop.f32.mrb[0].mxu0
        %2610 = vmatprep.mubr.bf16.mxu0 0
        %2611 = vmatmul.mubr.bf16.gmra.mrb[0].mxu0 %v1971
        %v2612 = vpop.f32.mrb[0].mxu0
        %v2613 = vadd.f32 0.0, %v2612
        %v2614 = vpop.f32.mrb[0].mxu0
        %v2615 = vpop.f32.mrb[0].mxu0
        %v2616 = vadd.f32 0.0, %v2615
        %v2617 = vpop.f32.mrb[0].mxu0
        %2618 = vmatprep.mubr.bf16.mxu0 0
        %2619 = vmatmul.mubr.bf16.gmra.mrb[0].mxu0 %v1972
        %v2620 = vpop.f32.mrb[0].mxu0
        %v2621 = vadd.f32 0.0, %v2620
        %v2622 = vpop.f32.mrb[0].mxu0
        %v2623 = vpop.f32.mrb[0].mxu0
        %v2624 = vadd.f32 0.0, %v2623
        %v2625 = vpop.f32.mrb[0].mxu0
        %2626 = vmatprep.mubr.bf16.mxu0 0
        %2627 = vmatmul.mubr.bf16.gmra.mrb[0].mxu0 %v1973
        %v2628 = vpop.f32.mrb[0].mxu0
        %v2629 = vadd.f32 0.0, %v2628
        %v2630 = vpop.f32.mrb[0].mxu0
        %v2631 = vpop.f32.mrb[0].mxu0
        %v2632 = vadd.f32 0.0, %v2631
        %v2633 = vpop.f32.mrb[0].mxu0
        %2634 = vmatprep.mubr.bf16.mxu0 0
        %2635 = vmatmul.mubr.bf16.gmra.mrb[0].mxu0 %v1974
        %v2636 = vpop.f32.mrb[0].mxu0
        %v2637 = vadd.f32 0.0, %v2636
        %v2638 = vpop.f32.mrb[0].mxu0
        %v2639 = vpop.f32.mrb[0].mxu0
        %v2640 = vadd.f32 0.0, %v2639
        %v2641 = vpop.f32.mrb[0].mxu0
        %2642 = vmatprep.mubr.bf16.mxu0 0
        %2643 = vmatmul.mubr.bf16.gmra.mrb[0].mxu0 %v1975
        %v2644 = vpop.f32.mrb[0].mxu0
        %v2645 = vadd.f32 0.0, %v2644
        %v2646 = vpop.f32.mrb[0].mxu0
        %v2647 = vpop.f32.mrb[0].mxu0
        %v2648 = vadd.f32 0.0, %v2647
        %v2649 = vpop.f32.mrb[0].mxu0
        %2650 = vdwg.mxu0
        %v2651 = vrot.slane %v2300, 7
        %v2652 = vrot.slane %v2303, 7
        %v2653 = vrot.slane %v2308, 7
        %v2654 = vrot.slane %v2311, 7
        %v2655 = vrot.slane %v2316, 7
        %v2656 = vrot.slane %v2319, 7
        %v2657 = vrot.slane %v2324, 7
        %v2658 = vrot.slane %v2327, 7
        %v2659 = vrot.slane %v2332, 7
        %v2660 = vrot.slane %v2335, 7
        %v2661 = vrot.slane %v2340, 7
        %v2662 = vrot.slane %v2343, 7
        %v2663 = vrot.slane %v2348, 7
        %v2664 = vrot.slane %v2351, 7
        %v2665 = vrot.slane %v2356, 7
        %v2666 = vrot.slane %v2359, 7
        %v2667 = vrot.slane %v2364, 7
        %v2668 = vrot.slane %v2367, 7
        %v2669 = vrot.slane %v2372, 7
        %v2670 = vrot.slane %v2375, 7
        %v2671 = vrot.slane %v2380, 7
        %v2672 = vrot.slane %v2383, 7
        %v2673 = vrot.slane %v2388, 7
        %v2674 = vrot.slane %v2391, 7
        %v2675 = vrot.slane %v2396, 7
        %v2676 = vrot.slane %v2399, 7
        %v2677 = vrot.slane %v2404, 7
        %v2678 = vrot.slane %v2407, 7
        %v2679 = vrot.slane %v2412, 7
        %v2680 = vrot.slane %v2415, 7
        %v2681 = vrot.slane %v2420, 7
        %v2682 = vrot.slane %v2423, 7
        %v2683 = vsel %vm1663, %v2681, %v2682
        %v2684 = vsel %vm1663, %v2680, %v2681
        %v2685 = vsel %vm1663, %v2679, %v2680
        %v2686 = vsel %vm1663, %v2678, %v2679
        %v2687 = vsel %vm1663, %v2677, %v2678
        %v2688 = vsel %vm1663, %v2676, %v2677
        %v2689 = vsel %vm1663, %v2675, %v2676
        %v2690 = vsel %vm1663, %v2674, %v2675
        %v2691 = vsel %vm1663, %v2673, %v2674
        %v2692 = vsel %vm1663, %v2672, %v2673
        %v2693 = vsel %vm1663, %v2671, %v2672
        %v2694 = vsel %vm1663, %v2670, %v2671
        %v2695 = vsel %vm1663, %v2669, %v2670
        %v2696 = vsel %vm1663, %v2668, %v2669
        %v2697 = vsel %vm1663, %v2667, %v2668
        %v2698 = vsel %vm1663, %v2666, %v2667
        %v2699 = vsel %vm1663, %v2665, %v2666
        %v2700 = vsel %vm1663, %v2664, %v2665
        %v2701 = vsel %vm1663, %v2663, %v2664
        %v2702 = vsel %vm1663, %v2662, %v2663
        %v2703 = vsel %vm1663, %v2661, %v2662
        %v2704 = vsel %vm1663, %v2660, %v2661
        %v2705 = vsel %vm1663, %v2659, %v2660
        %v2706 = vsel %vm1663, %v2658, %v2659
        %v2707 = vsel %vm1663, %v2657, %v2658
        %v2708 = vsel %vm1663, %v2656, %v2657
        %v2709 = vsel %vm1663, %v2655, %v2656
        %v2710 = vsel %vm1663, %v2654, %v2655
        %v2711 = vsel %vm1663, %v2653, %v2654
        %v2712 = vsel %vm1663, %v2652, %v2653
        %v2713 = vsel %vm1663, %v2651, %v2652
        %v2714 = vsel %vm1663, %v2682, %v2651
        %v2715 = vsel %vm811, %v2714, 0.0
        %v2716 = vsel %vm812, %v2713, 0.0
        %v2717 = vsel %vm813, %v2712, 0.0
        %v2718 = vsel %vm814, %v2711, 0.0
        %v2719 = vsel %vm815, %v2710, 0.0
        %v2720 = vsel %vm816, %v2709, 0.0
        %v2721 = vsel %vm817, %v2708, 0.0
        %v2722 = vsel %vm818, %v2707, 0.0
        %v2723 = vsel %vm819, %v2706, 0.0
        %v2724 = vsel %vm820, %v2705, 0.0
        %v2725 = vsel %vm821, %v2704, 0.0
        %v2726 = vsel %vm822, %v2703, 0.0
        %v2727 = vsel %vm823, %v2702, 0.0
        %v2728 = vsel %vm824, %v2701, 0.0
        %v2729 = vsel %vm825, %v2700, 0.0
        %v2730 = vsel %vm826, %v2699, 0.0
        %v2731 = vsel %vm827, %v2698, 0.0
        %v2732 = vsel %vm828, %v2697, 0.0
        %v2733 = vsel %vm829, %v2696, 0.0
        %v2734 = vsel %vm830, %v2695, 0.0
        %v2735 = vsel %vm831, %v2694, 0.0
        %v2736 = vsel %vm832, %v2693, 0.0
        %v2737 = vsel %vm833, %v2692, 0.0
        %v2738 = vsel %vm834, %v2691, 0.0
        %v2739 = vsel %vm835, %v2690, 0.0
        %v2740 = vsel %vm836, %v2689, 0.0
        %v2741 = vsel %vm837, %v2688, 0.0
        %v2742 = vsel %vm838, %v2687, 0.0
        %v2743 = vsel %vm839, %v2686, 0.0
        %v2744 = vsel %vm840, %v2685, 0.0
        %v2745 = vsel %vm841, %v2684, 0.0
        %v2746 = vsel %vm842, %v2683, 0.0
        %v2747 = vadd.f32 %v2715, %v2075
        %v2748 = vadd.f32 %v2716, %v2078
        %v2749 = vadd.f32 %v2717, %v2083
        %v2750 = vadd.f32 %v2718, %v2086
        %v2751 = vadd.f32 %v2719, %v2091
        %v2752 = vadd.f32 %v2720, %v2094
        %v2753 = vadd.f32 %v2721, %v2099
        %v2754 = vadd.f32 %v2722, %v2102
        %v2755 = vadd.f32 %v2723, %v2107
        %v2756 = vadd.f32 %v2724, %v2110
        %v2757 = vadd.f32 %v2725, %v2115
        %v2758 = vadd.f32 %v2726, %v2118
        %v2759 = vadd.f32 %v2727, %v2123
        %v2760 = vadd.f32 %v2728, %v2126
        %v2761 = vadd.f32 %v2729, %v2131
        %v2762 = vadd.f32 %v2730, %v2134
        %v2763 = vadd.f32 %v2731, %v2139
        %v2764 = vadd.f32 %v2732, %v2142
        %v2765 = vadd.f32 %v2733, %v2147
        %v2766 = vadd.f32 %v2734, %v2150
        %v2767 = vadd.f32 %v2735, %v2155
        %v2768 = vadd.f32 %v2736, %v2158
        %v2769 = vadd.f32 %v2737, %v2163
        %v2770 = vadd.f32 %v2738, %v2166
        %v2771 = vadd.f32 %v2739, %v2171
        %v2772 = vadd.f32 %v2740, %v2174
        %v2773 = vadd.f32 %v2741, %v2179
        %v2774 = vadd.f32 %v2742, %v2182
        %v2775 = vadd.f32 %v2743, %v2187
        %v2776 = vadd.f32 %v2744, %v2190
        %v2777 = vadd.f32 %v2745, %v2195
        %v2778 = vadd.f32 %v2746, %v2198
        %v2779 = vrot.slane %v2525, 1
        %v2780 = vrot.slane %v2528, 1
        %v2781 = vrot.slane %v2533, 1
        %v2782 = vrot.slane %v2536, 1
        %v2783 = vrot.slane %v2541, 1
        %v2784 = vrot.slane %v2544, 1
        %v2785 = vrot.slane %v2549, 1
        %v2786 = vrot.slane %v2552, 1
        %v2787 = vrot.slane %v2557, 1
        %v2788 = vrot.slane %v2560, 1
        %v2789 = vrot.slane %v2565, 1
        %v2790 = vrot.slane %v2568, 1
        %v2791 = vrot.slane %v2573, 1
        %v2792 = vrot.slane %v2576, 1
        %v2793 = vrot.slane %v2581, 1
        %v2794 = vrot.slane %v2584, 1
        %v2795 = vrot.slane %v2589, 1
        %v2796 = vrot.slane %v2592, 1
        %v2797 = vrot.slane %v2597, 1
        %v2798 = vrot.slane %v2600, 1
        %v2799 = vrot.slane %v2605, 1
        %v2800 = vrot.slane %v2608, 1
        %v2801 = vrot.slane %v2613, 1
        %v2802 = vrot.slane %v2616, 1
        %v2803 = vrot.slane %v2621, 1
        %v2804 = vrot.slane %v2624, 1
        %v2805 = vrot.slane %v2629, 1
        %v2806 = vrot.slane %v2632, 1
        %v2807 = vrot.slane %v2637, 1
        %v2808 = vrot.slane %v2640, 1
        %v2809 = vrot.slane %v2645, 1
        %v2810 = vrot.slane %v2648, 1
        %v2811 = vsel %vm1792, %v2809, %v2810
        %v2812 = vsel %vm1792, %v2808, %v2809
        %v2813 = vsel %vm1792, %v2807, %v2808
        %v2814 = vsel %vm1792, %v2806, %v2807
        %v2815 = vsel %vm1792, %v2805, %v2806
        %v2816 = vsel %vm1792, %v2804, %v2805
        %v2817 = vsel %vm1792, %v2803, %v2804
        %v2818 = vsel %vm1792, %v2802, %v2803
        %v2819 = vsel %vm1792, %v2801, %v2802
        %v2820 = vsel %vm1792, %v2800, %v2801
        %v2821 = vsel %vm1792, %v2799, %v2800
        %v2822 = vsel %vm1792, %v2798, %v2799
        %v2823 = vsel %vm1792, %v2797, %v2798
        %v2824 = vsel %vm1792, %v2796, %v2797
        %v2825 = vsel %vm1792, %v2795, %v2796
        %v2826 = vsel %vm1792, %v2794, %v2795
        %v2827 = vsel %vm1792, %v2793, %v2794
        %v2828 = vsel %vm1792, %v2792, %v2793
        %v2829 = vsel %vm1792, %v2791, %v2792
        %v2830 = vsel %vm1792, %v2790, %v2791
        %v2831 = vsel %vm1792, %v2789, %v2790
        %v2832 = vsel %vm1792, %v2788, %v2789
        %v2833 = vsel %vm1792, %v2787, %v2788
        %v2834 = vsel %vm1792, %v2786, %v2787
        %v2835 = vsel %vm1792, %v2785, %v2786
        %v2836 = vsel %vm1792, %v2784, %v2785
        %v2837 = vsel %vm1792, %v2783, %v2784
        %v2838 = vsel %vm1792, %v2782, %v2783
        %v2839 = vsel %vm1792, %v2781, %v2782
        %v2840 = vsel %vm1792, %v2780, %v2781
        %v2841 = vsel %vm1792, %v2779, %v2780
        %v2842 = vsel %vm1792, %v2810, %v2779
        %v2843 = vsel %vm843, %v2841, 0.0
        %v2844 = vsel %vm844, %v2840, 0.0
        %v2845 = vsel %vm845, %v2839, 0.0
        %v2846 = vsel %vm846, %v2838, 0.0
        %v2847 = vsel %vm847, %v2837, 0.0
        %v2848 = vsel %vm848, %v2836, 0.0
        %v2849 = vsel %vm849, %v2835, 0.0
        %v2850 = vsel %vm850, %v2834, 0.0
        %v2851 = vsel %vm851, %v2833, 0.0
        %v2852 = vsel %vm852, %v2832, 0.0
        %v2853 = vsel %vm853, %v2831, 0.0
        %v2854 = vsel %vm854, %v2830, 0.0
        %v2855 = vsel %vm855, %v2829, 0.0
        %v2856 = vsel %vm856, %v2828, 0.0
        %v2857 = vsel %vm857, %v2827, 0.0
        %v2858 = vsel %vm858, %v2826, 0.0
        %v2859 = vsel %vm859, %v2825, 0.0
        %v2860 = vsel %vm860, %v2824, 0.0
        %v2861 = vsel %vm861, %v2823, 0.0
        %v2862 = vsel %vm862, %v2822, 0.0
        %v2863 = vsel %vm863, %v2821, 0.0
        %v2864 = vsel %vm864, %v2820, 0.0
        %v2865 = vsel %vm865, %v2819, 0.0
        %v2866 = vsel %vm866, %v2818, 0.0
        %v2867 = vsel %vm867, %v2817, 0.0
        %v2868 = vsel %vm868, %v2816, 0.0
        %v2869 = vsel %vm869, %v2815, 0.0
        %v2870 = vsel %vm870, %v2814, 0.0
        %v2871 = vsel %vm871, %v2813, 0.0
        %v2872 = vsel %vm872, %v2812, 0.0
        %v2873 = vsel %vm873, %v2811, 0.0
        %v2874 = vsel %vm874, %v2842, 0.0
        %v2875 = vadd.f32 %v2747, %v2843
        %v2876 = vadd.f32 %v2748, %v2844
        %v2877 = vadd.f32 %v2749, %v2845
        %v2878 = vadd.f32 %v2750, %v2846
        %v2879 = vadd.f32 %v2751, %v2847
        %v2880 = vadd.f32 %v2752, %v2848
        %v2881 = vadd.f32 %v2753, %v2849
        %v2882 = vadd.f32 %v2754, %v2850
        %v2883 = vadd.f32 %v2755, %v2851
        %v2884 = vadd.f32 %v2756, %v2852
        %v2885 = vadd.f32 %v2757, %v2853
        %v2886 = vadd.f32 %v2758, %v2854
        %v2887 = vadd.f32 %v2759, %v2855
        %v2888 = vadd.f32 %v2760, %v2856
        %v2889 = vadd.f32 %v2761, %v2857
        %v2890 = vadd.f32 %v2762, %v2858
        %v2891 = vadd.f32 %v2763, %v2859
        %v2892 = vadd.f32 %v2764, %v2860
        %v2893 = vadd.f32 %v2765, %v2861
        %v2894 = vadd.f32 %v2766, %v2862
        %v2895 = vadd.f32 %v2767, %v2863
        %v2896 = vadd.f32 %v2768, %v2864
        %v2897 = vadd.f32 %v2769, %v2865
        %v2898 = vadd.f32 %v2770, %v2866
        %v2899 = vadd.f32 %v2771, %v2867
        %v2900 = vadd.f32 %v2772, %v2868
        %v2901 = vadd.f32 %v2773, %v2869
        %v2902 = vadd.f32 %v2774, %v2870
        %v2903 = vadd.f32 %v2775, %v2871
        %v2904 = vadd.f32 %v2776, %v2872
        %v2905 = vadd.f32 %v2777, %v2873
        %v2906 = vadd.f32 %v2778, %v2874
        %v2907 = vld [vmem:[%s8] sm:$0x1]
        %v2909 = vlaneseq
        %v2910 = vshrl.u32 %v2909, 7
        %v2911 = vsub.s32 0, %v2910
        %v2912 = vrot.slane %v2907, %v2911
        %v2914 = vadd.f32 %v2875, %v2912
        %v2915 = vadd.f32 %v2876, %v2912
        %v2916 = vadd.f32 %v2877, %v2912
        %v2917 = vadd.f32 %v2878, %v2912
        %v2918 = vadd.f32 %v2879, %v2912
        %v2919 = vadd.f32 %v2880, %v2912
        %v2920 = vadd.f32 %v2881, %v2912
        %v2921 = vadd.f32 %v2882, %v2912
        %v2922 = vadd.f32 %v2883, %v2912
        %v2923 = vadd.f32 %v2884, %v2912
        %v2924 = vadd.f32 %v2885, %v2912
        %v2925 = vadd.f32 %v2886, %v2912
        %v2926 = vadd.f32 %v2887, %v2912
        %v2927 = vadd.f32 %v2888, %v2912
        %v2928 = vadd.f32 %v2889, %v2912
        %v2929 = vadd.f32 %v2890, %v2912
        %v2930 = vadd.f32 %v2891, %v2912
        %v2931 = vadd.f32 %v2892, %v2912
        %v2932 = vadd.f32 %v2893, %v2912
        %v2933 = vadd.f32 %v2894, %v2912
        %v2934 = vadd.f32 %v2895, %v2912
        %v2935 = vadd.f32 %v2896, %v2912
        %v2936 = vadd.f32 %v2897, %v2912
        %v2937 = vadd.f32 %v2898, %v2912
        %v2938 = vadd.f32 %v2899, %v2912
        %v2939 = vadd.f32 %v2900, %v2912
        %v2940 = vadd.f32 %v2901, %v2912
        %v2941 = vadd.f32 %v2902, %v2912
        %v2942 = vadd.f32 %v2903, %v2912
        %v2943 = vadd.f32 %v2904, %v2912
        %v2944 = vadd.f32 %v2905, %v2912
        %v2945 = vadd.f32 %v2906, %v2912
        %v2946 = vadd.f32 %v2914, %v1089
        %v2947 = vadd.f32 %v2915, %v1093
        %v2948 = vadd.f32 %v2916, %v1099
        %v2949 = vadd.f32 %v2917, %v1103
        %v2950 = vadd.f32 %v2918, %v1109
        %v2951 = vadd.f32 %v2919, %v1113
        %v2952 = vadd.f32 %v2920, %v1119
        %v2953 = vadd.f32 %v2921, %v1123
        %v2954 = vadd.f32 %v2922, %v1129
        %v2955 = vadd.f32 %v2923, %v1133
        %v2956 = vadd.f32 %v2924, %v1139
        %v2957 = vadd.f32 %v2925, %v1143
        %v2958 = vadd.f32 %v2926, %v1149
        %v2959 = vadd.f32 %v2927, %v1153
        %v2960 = vadd.f32 %v2928, %v1159
        %v2961 = vadd.f32 %v2929, %v1163
        %v2962 = vadd.f32 %v2930, %v1169
        %v2963 = vadd.f32 %v2931, %v1173
        %v2964 = vadd.f32 %v2932, %v1179
        %v2965 = vadd.f32 %v2933, %v1183
        %v2966 = vadd.f32 %v2934, %v1189
        %v2967 = vadd.f32 %v2935, %v1193
        %v2968 = vadd.f32 %v2936, %v1199
        %v2969 = vadd.f32 %v2937, %v1203
        %v2970 = vadd.f32 %v2938, %v1209
        %v2971 = vadd.f32 %v2939, %v1213
        %v2972 = vadd.f32 %v2940, %v1219
        %v2973 = vadd.f32 %v2941, %v1223
        %v2974 = vadd.f32 %v2942, %v1229
        %v2975 = vadd.f32 %v2943, %v1233
        %v2976 = vadd.f32 %v2944, %v1239
        %v2977 = vadd.f32 %v2945, %v1243
        %v2978 = vld [vmem:[%s9] sm:$0x1]
        %v2980 = vlaneseq
        %v2981 = vshrl.u32 %v2980, 7
        %v2982 = vsub.s32 0, %v2981
        %v2983 = vrot.slane %v2978, %v2982
        %v2985 = vadd.f32 %v2946, %v2983
        %v2986 = vadd.f32 %v2947, %v2983
        %v2987 = vadd.f32 %v2948, %v2983
        %v2988 = vadd.f32 %v2949, %v2983
        %v2989 = vadd.f32 %v2950, %v2983
        %v2990 = vadd.f32 %v2951, %v2983
        %v2991 = vadd.f32 %v2952, %v2983
        %v2992 = vadd.f32 %v2953, %v2983
        %v2993 = vadd.f32 %v2954, %v2983
        %v2994 = vadd.f32 %v2955, %v2983
        %v2995 = vadd.f32 %v2956, %v2983
        %v2996 = vadd.f32 %v2957, %v2983
        %v2997 = vadd.f32 %v2958, %v2983
        %v2998 = vadd.f32 %v2959, %v2983
        %v2999 = vadd.f32 %v2960, %v2983
        %v3000 = vadd.f32 %v2961, %v2983
        %v3001 = vadd.f32 %v2962, %v2983
        %v3002 = vadd.f32 %v2963, %v2983
        %v3003 = vadd.f32 %v2964, %v2983
        %v3004 = vadd.f32 %v2965, %v2983
        %v3005 = vadd.f32 %v2966, %v2983
        %v3006 = vadd.f32 %v2967, %v2983
        %v3007 = vadd.f32 %v2968, %v2983
        %v3008 = vadd.f32 %v2969, %v2983
        %v3009 = vadd.f32 %v2970, %v2983
        %v3010 = vadd.f32 %v2971, %v2983
        %v3011 = vadd.f32 %v2972, %v2983
        %v3012 = vadd.f32 %v2973, %v2983
        %v3013 = vadd.f32 %v2974, %v2983
        %v3014 = vadd.f32 %v2975, %v2983
        %v3015 = vadd.f32 %v2976, %v2983
        %v3016 = vadd.f32 %v2977, %v2983
        %v3017 = vmax.f32 %v2985, 0.0
        %v3018 = vmax.f32 %v2986, 0.0
        %v3019 = vmax.f32 %v2987, 0.0
        %v3020 = vmax.f32 %v2988, 0.0
        %v3021 = vmax.f32 %v2989, 0.0
        %v3022 = vmax.f32 %v2990, 0.0
        %v3023 = vmax.f32 %v2991, 0.0
        %v3024 = vmax.f32 %v2992, 0.0
        %v3025 = vmax.f32 %v2993, 0.0
        %v3026 = vmax.f32 %v2994, 0.0
        %v3027 = vmax.f32 %v2995, 0.0
        %v3028 = vmax.f32 %v2996, 0.0
        %v3029 = vmax.f32 %v2997, 0.0
        %v3030 = vmax.f32 %v2998, 0.0
        %v3031 = vmax.f32 %v2999, 0.0
        %v3032 = vmax.f32 %v3000, 0.0
        %v3033 = vmax.f32 %v3001, 0.0
        %v3034 = vmax.f32 %v3002, 0.0
        %v3035 = vmax.f32 %v3003, 0.0
        %v3036 = vmax.f32 %v3004, 0.0
        %v3037 = vmax.f32 %v3005, 0.0
        %v3038 = vmax.f32 %v3006, 0.0
        %v3039 = vmax.f32 %v3007, 0.0
        %v3040 = vmax.f32 %v3008, 0.0
        %v3041 = vmax.f32 %v3009, 0.0
        %v3042 = vmax.f32 %v3010, 0.0
        %v3043 = vmax.f32 %v3011, 0.0
        %v3044 = vmax.f32 %v3012, 0.0
        %v3045 = vmax.f32 %v3013, 0.0
        %v3046 = vmax.f32 %v3014, 0.0
        %v3047 = vmax.f32 %v3015, 0.0
        %v3048 = vmax.f32 %v3016, 0.0
        %3049 = vst [vmem:[%s353] sm:$0xff] %v3017
        %3050 = vst [vmem:[%s353 + $0x8] sm:$0xff] %v3018
        %3051 = vst [vmem:[%s353 + $0x10] sm:$0xff] %v3019
        %3052 = vst [vmem:[%s353 + $0x18] sm:$0xff] %v3020
        %3053 = vst [vmem:[%s353 + $0x20] sm:$0xff] %v3021
        %3054 = vst [vmem:[%s353 + $0x28] sm:$0xff] %v3022
        %3055 = vst [vmem:[%s353 + $0x30] sm:$0xff] %v3023
        %3056 = vst [vmem:[%s353 + $0x38] sm:$0xff] %v3024
        %3057 = vst [vmem:[%s353 + $0x40] sm:$0xff] %v3025
        %3058 = vst [vmem:[%s353 + $0x48] sm:$0xff] %v3026
        %3059 = vst [vmem:[%s353 + $0x50] sm:$0xff] %v3027
        %3060 = vst [vmem:[%s353 + $0x58] sm:$0xff] %v3028
        %3061 = vst [vmem:[%s353 + $0x60] sm:$0xff] %v3029
        %3062 = vst [vmem:[%s353 + $0x68] sm:$0xff] %v3030
        %3063 = vst [vmem:[%s353 + $0x70] sm:$0xff] %v3031
        %3064 = vst [vmem:[%s353 + $0x78] sm:$0xff] %v3032
        %3065 = vst [vmem:[%s353 + $0x80] sm:$0xff] %v3033
        %3066 = vst [vmem:[%s353 + $0x88] sm:$0xff] %v3034
        %3067 = vst [vmem:[%s353 + $0x90] sm:$0xff] %v3035
        %3068 = vst [vmem:[%s353 + $0x98] sm:$0xff] %v3036
        %3069 = vst [vmem:[%s353 + $0xa0] sm:$0xff] %v3037
        %3070 = vst [vmem:[%s353 + $0xa8] sm:$0xff] %v3038
        %3071 = vst [vmem:[%s353 + $0xb0] sm:$0xff] %v3039
        %3072 = vst [vmem:[%s353 + $0xb8] sm:$0xff] %v3040
        %3073 = vst [vmem:[%s353 + $0xc0] sm:$0xff] %v3041
        %3074 = vst [vmem:[%s353 + $0xc8] sm:$0xff] %v3042
        %3075 = vst [vmem:[%s353 + $0xd0] sm:$0xff] %v3043
        %3076 = vst [vmem:[%s353 + $0xd8] sm:$0xff] %v3044
        %3077 = vst [vmem:[%s353 + $0xe0] sm:$0xff] %v3045
        %3078 = vst [vmem:[%s353 + $0xe8] sm:$0xff] %v3046
        %3079 = vst [vmem:[%s353 + $0xf0] sm:$0xff] %v3047
        %3080 = vst [vmem:[%s353 + $0xf8] sm:$0xff] %v3048
        %s3081 = sand.u32 %s247, 1
        %s3082 = scalar_lea.sflag [#allocation3], %s3081
        %s3083 = sand.u32 %s247, 1
        %s3084 = smul.addr %s3083, 256
        %s3085 = scalar_lea.vmem [#allocation2], %s3084
        // Predicated region
        $region61: #{tpu_custom_call.1} parent=59 // pred_check
          %p3086 = pneg %p257
        $region62: #{tpu_custom_call.1} parent=59 // pred_check_branch
          %3088 = sbr.rel (%p3086) target = $region64
        $region63: #{tpu_custom_call.1} parent=59 // pred_region
          %s3089 = smul.u32 32, %s24
          %s3091 = ssub.s32 4096, 4096
          %3092 = vsyncadd %s3082, %s3091
          %s3093 = smul.addr %s3089, 128
          %s3094 = scalar_lea.hbm %s10, %s3093
          %s3095 = sshll.u32 %s3085, 4
          %s3096 = int_to_ptr.vmem [resolvable:$true] %s3095
          %3101 = dma.vmem_to_hbm [thread:$0]  %s3096, 4096, %s3094, %s3082, 128, 128, 8
        $region64: #{tpu_custom_call.1} parent=59 // pred_fallthru
          _
      $region60: #{tpu_custom_call.1} parent=5 // pred_fallthru
        _
      %p3102 = scmp.le.s32.totalorder 2, %s19
      // Predicated region
      $region65: #{tpu_custom_call.1} parent=5 // pred_check
        %p3103 = pneg %p3102
      $region66: #{tpu_custom_call.1} parent=5 // pred_check_branch
        %3105 = sbr.rel (%p3103) target = $region68
      $region67: #{tpu_custom_call.1} parent=5 // pred_region
        %s3106 = ssub.s32 %s19, 2
        // Predicated region
        $region69: #{tpu_custom_call.1} parent=67 // pred_check
          %p3107 = pneg %p263
        $region70: #{tpu_custom_call.1} parent=67 // pred_check_branch
          %3109 = sbr.rel (%p3107) target = $region72
        $region71: #{tpu_custom_call.1} parent=67 // pred_region
          %s3110 = sand.u32 %s248, 1
          %s3111 = scalar_lea.sflag [#allocation3], %s3110
          %s3112 = sand.u32 %s248, 1
          %s3113 = smul.addr %s3112, 256
          %s3114 = scalar_lea.vmem [#allocation2], %s3113
          %3115 = dma.done %s3111, 4096
        $region72: #{tpu_custom_call.1} parent=67 // pred_fallthru
          _
      $region68: #{tpu_custom_call.1} parent=5 // pred_fallthru
        _
    $region6: #{tpu_custom_call.1} parent=1 // loop_footer
      %s23 = sadd.s32 1, %s19
    $region7: #{tpu_custom_call.1} parent=1 // loop_footer_branch
      %18 = sbr.rel target = $region3
    $region8: #{tpu_custom_call.1} parent=1 // loop_exit
      _
    %3116 = vsyncpa [#allocation3], 1
    %s3117 = scalar_lea.sflag [#allocation3], 1
    %3118 = vsyncpa %s3117, 1

</llo_original>
